<compile_context>
chip_gen: v7x
topology: tpu7x:2x2x1
jax: 0.10.0
libtpu: 0.0.40
codegen_flags: <defaults>
</compile_context>

<pallas_src>
import functools

import jax
import jax.numpy as jnp
from jax import lax
from jax.experimental import pallas as pl
from jax.experimental.pallas import tpu as pltpu

# ---- model constants implied by the module ----
EMB = 200               # embedding dim == conv kernel width
C_OUT = 200             # out_channels per conv branch
KS = (2, 3, 4)          # conv kernel heights
NUM_CLASS = 10          # len(label_list) -- synthetic, chosen small
PAD_MAX = max(KS) - 1   # pad the sequence once to the largest padding (3)
N_SHIFTS = PAD_MAX + 1  # number of fused shift matmuls (4)

# ---- lane-aligned padded sizes used inside the kernel ----
EMB_PAD = 256                 # 200 -> two full (8,128) lane groups
C_PAD = 256                   # per-branch channel block, lane aligned
C_TOT = len(KS) * C_PAD       # 768-wide fused conv output
NCLS_PAD = 128                # logits width, lane aligned


def _round_up(a, m):
    return (a + m - 1) // m * m


def _textcnn_kernel(x_ref, w_ref, b_ref, wl_ref, bl_ref, o_ref, xc_ref,
                    *, TB, P, L):
    """One batch tile of the full forward pass.

    x_ref : (TB*P, EMB_PAD)            bf16  zero-padded, row-flattened input
    w_ref : (N_SHIFTS, EMB_PAD, C_TOT) bf16  fused, pre-transposed conv weights
    b_ref : (1, C_TOT)                 f32   fused conv bias (0 in pad columns)
    wl_ref: (C_TOT, NCLS_PAD)          bf16  fused, pre-transposed linear weight
    bl_ref: (1, NCLS_PAD)              f32   linear bias
    o_ref : (TB, NCLS_PAD)             f32   logits (first NUM_CLASS cols valid)
    xc_ref: (TB, C_TOT)                f32   pooled feats (200 valid per branch)
    """
    x = x_ref[...]                                        # (TB*P, EMB_PAD) bf16
    rows = TB * P

    # Conv for all 3 branches == 4 fused shift matmuls into one (rows, 768)
    # f32 accumulator. Shift j uses rows [t+j] of the padded input; branch k
    # occupies its own 256-wide column block of the fused weight.
    acc = jnp.dot(x, w_ref[0], preferred_element_type=jnp.float32)
    for j in range(1, N_SHIFTS):
        xs = lax.concatenate(
            [lax.slice_in_dim(x, j, rows, axis=0),
             jnp.zeros((j, EMB_PAD), x.dtype)], dimension=0)
        acc = acc + jnp.dot(xs, w_ref[j], preferred_element_type=jnp.float32)

    # Per-branch max-pool over the valid conv length (L + k - 1); bias + ReLU
    # applied after the pool (exact: both commute with a per-channel max).
    y3 = acc.reshape(TB, P, C_TOT)                        # free: P % 8 == 0
    feats = []
    for idx, k in enumerate(KS):
        t_k = L + k - 1
        blk = y3[:, :t_k, idx * C_PAD:(idx + 1) * C_PAD]  # (TB, t_k, C_PAD)
        feats.append(jnp.max(blk, axis=1))                # (TB, C_PAD)
    feat = jnp.concatenate(feats, axis=-1)                # (TB, C_TOT) f32
    feat = jnp.maximum(feat + b_ref[...], 0.0)
    xc_ref[...] = feat

    # dropout(0.1) is identity in eval mode; single fused logits matmul.
    # TODO(synk): training-mode dropout RNG mask omitted (eval-mode identity).
    o_ref[...] = jnp.dot(feat.astype(jnp.bfloat16), wl_ref[...],
                         preferred_element_type=jnp.float32) + bl_ref[...]


def _pack_params(params):
    """Fuse + pre-transpose weights on host: bf16 matmul operands, f32 biases."""
    w2, b2, w3, b3, w4, b4, wl, bl = params
    wf = jnp.zeros((N_SHIFTS, EMB_PAD, C_TOT), jnp.float32)
    bf = jnp.zeros((1, C_TOT), jnp.float32)
    wlf = jnp.zeros((C_TOT, NCLS_PAD), jnp.float32)
    blf = jnp.zeros((1, NCLS_PAD), jnp.float32).at[0, :NUM_CLASS].set(bl)
    for idx, (k, w, b) in enumerate(((2, w2, b2), (3, w3, b3), (4, w4, b4))):
        c0 = idx * C_PAD
        for i in range(k):
            j = i + (PAD_MAX - (k - 1))       # shift index of weight row i
            wf = wf.at[j, :EMB, c0:c0 + C_OUT].set(w[:, i, :].T)
        bf = bf.at[0, c0:c0 + C_OUT].set(b)
        wlf = wlf.at[c0:c0 + C_OUT, :NUM_CLASS].set(
            wl[:, idx * C_OUT:(idx + 1) * C_OUT].T)
    return wf.astype(jnp.bfloat16), bf, wlf.astype(jnp.bfloat16), blf


def textcnn_forward(x_emb, params):
    """x_emb: (B, L, EMB) float32. Returns (logits (B, NUM_CLASS), xc (B, 600))."""
    B, L, E = x_emb.shape
    assert E == EMB
    wf, bf, wlf, blf = _pack_params(params)

    # Rows per example, padded so every batch block is sublane (8) aligned.
    P = _round_up(L + 2 * PAD_MAX, 8)

    # Batch tile: keep f32 accumulator + double-buffered bf16 x tile well under
    # the default scoped VMEM (also safe for v7x's smaller 64 MiB VMEM).
    bytes_per_row = P * (C_TOT * 4 + 2 * EMB_PAD * 2)
    cap = max(8, ((8 << 20) // bytes_per_row) // 8 * 8)
    if B <= cap:
        TB, B_pad = B, B
    else:
        TB, B_pad = cap, _round_up(B, cap)
    grid = B_pad // TB

    # Glue: zero-pad (batch, sequence halo, embedding lanes), cast to bf16 for
    # single-pass MXU matmuls, flatten to a lane/sublane aligned slab.
    x_p = jnp.pad(x_emb, ((0, B_pad - B),
                          (PAD_MAX, P - L - PAD_MAX),
                          (0, EMB_PAD - EMB))).astype(jnp.bfloat16)
    x2d = x_p.reshape(B_pad * P, EMB_PAD)

    out_shape = (jax.ShapeDtypeStruct((B_pad, NCLS_PAD), jnp.float32),
                 jax.ShapeDtypeStruct((B_pad, C_TOT), jnp.float32))

    o_pad, xc_pad = pl.pallas_call(
        functools.partial(_textcnn_kernel, TB=TB, P=P, L=L),
        out_shape=out_shape,
        grid=(grid,),
        in_specs=[
            pl.BlockSpec((TB * P, EMB_PAD), lambda i: (i, 0)),
            pl.BlockSpec((N_SHIFTS, EMB_PAD, C_TOT), lambda i: (0, 0, 0)),
            pl.BlockSpec((1, C_TOT), lambda i: (0, 0)),
            pl.BlockSpec((C_TOT, NCLS_PAD), lambda i: (0, 0)),
            pl.BlockSpec((1, NCLS_PAD), lambda i: (0, 0)),
        ],
        out_specs=(pl.BlockSpec((TB, NCLS_PAD), lambda i: (i, 0)),
                   pl.BlockSpec((TB, C_TOT), lambda i: (i, 0))),
        compiler_params=pltpu.CompilerParams(
            dimension_semantics=("parallel",)),
    )(x2d, wf, bf, wlf, blf)

    o = o_pad[:B, :NUM_CLASS]
    xc = jnp.concatenate(
        [xc_pad[:B, i * C_PAD:i * C_PAD + C_OUT] for i in range(len(KS))],
        axis=1)
    return o, xc


def textcnn_reference(x_emb, params):
    """Plain-JAX f32 reference mirroring the PyTorch module (eval mode)."""
    w2, b2, w3, b3, w4, b4, wl, bl = params
    x4 = x_emb[:, None, :, :]  # NCHW: (B, 1, L, EMB)
    feats = []
    for k, w, b in ((2, w2, b2), (3, w3, b3), (4, w4, b4)):
        wf = w[:, None, :, :]  # OIHW: (C, 1, k, EMB)
        y = lax.conv_general_dilated(
            x4, wf, window_strides=(1, 1),
            padding=((k - 1, k - 1), (0, 0)),
            dimension_numbers=('NCHW', 'OIHW', 'NCHW'),
            precision=lax.Precision.HIGHEST)              # (B, C, L+k-1, 1)
        y = jax.nn.relu(y + b[None, :, None, None])[..., 0]
        feats.append(jnp.max(y, axis=2))                  # (B, C)
    xc = jnp.concatenate(feats, axis=1)                   # (B, 600)
    o = xc @ wl.T + bl
    return o, xc


if __name__ == "__main__":
    B, L = 2, 8
    key = jax.random.PRNGKey(0)
    keys = jax.random.split(key, 9)

    def winit(k, shape, scale=0.05):
        return (scale * jax.random.normal(k, shape)).astype(jnp.float32)

    x_emb = jax.random.normal(keys[0], (B, L, EMB), dtype=jnp.float32)
    params = (
        winit(keys[1], (C_OUT, 2, EMB)), winit(keys[2], (C_OUT,)),
        winit(keys[3], (C_OUT, 3, EMB)), winit(keys[4], (C_OUT,)),
        winit(keys[5], (C_OUT, 4, EMB)), winit(keys[6], (C_OUT,)),
        winit(keys[7], (NUM_CLASS, 3 * C_OUT)), winit(keys[8], (NUM_CLASS,)),
    )

    o, xc = jax.block_until_ready(textcnn_forward(x_emb, params))

    o_ref, xc_ref_ = textcnn_reference(x_emb, params)
    assert o.shape == (B, NUM_CLASS) and xc.shape == (B, 3 * C_OUT)
    # bf16 MXU matmuls (f32 accumulate) vs the f32 reference: tolerance sized
    # for bf16 rounding; real bugs would produce O(1) errors.
    assert jnp.allclose(xc, xc_ref_, atol=2e-2, rtol=2e-2), "xc mismatch vs reference"
    assert jnp.allclose(o, o_ref, atol=2e-2, rtol=2e-2), "logits mismatch vs reference"

    print("KERNEL_OK")
</pallas_src>

<mosaic_0001>
module attributes {stable_mosaic.version = 11 : i64} {
  func.func @_textcnn_kernel(%arg0: i32, %arg1: memref<32x256xbf16, #tpu.memory_space<vmem>>, %arg2: memref<4x256x768xbf16, #tpu.memory_space<vmem>>, %arg3: memref<1x768xf32, #tpu.memory_space<vmem>>, %arg4: memref<768x128xbf16, #tpu.memory_space<vmem>>, %arg5: memref<1x128xf32, #tpu.memory_space<vmem>>, %arg6: memref<2x128xf32, #tpu.memory_space<vmem>>, %arg7: memref<2x768xf32, #tpu.memory_space<vmem>>) attributes {dimension_semantics = [#tpu.dimension_semantics<parallel>], iteration_bounds = array<i64: 1>, scalar_prefetch = 0 : i64, scratch_operands = 0 : i64, tpu.core_type = #tpu.core_type<tc>, window_params = [{transform_indices = @transform_0, window_bounds = array<i64: 32, 256>}, {pipeline_mode = #tpu.pipeline_mode<synchronous>, transform_indices = @transform_1, window_bounds = array<i64: 4, 256, 768>}, {pipeline_mode = #tpu.pipeline_mode<synchronous>, transform_indices = @transform_2, window_bounds = array<i64: 1, 768>}, {pipeline_mode = #tpu.pipeline_mode<synchronous>, transform_indices = @transform_3, window_bounds = array<i64: 768, 128>}, {pipeline_mode = #tpu.pipeline_mode<synchronous>, transform_indices = @transform_4, window_bounds = array<i64: 1, 128>}, {transform_indices = @transform_5, window_bounds = array<i64: 2, 128>}, {transform_indices = @transform_6, window_bounds = array<i64: 2, 768>}]} {
    %c0 = arith.constant 0 : index
    %c0_0 = arith.constant 0 : index
    %0 = vector.load %arg1[%c0, %c0_0] : memref<32x256xbf16, #tpu.memory_space<vmem>>, vector<32x256xbf16>
    %c0_1 = arith.constant 0 : index
    %c0_2 = arith.constant 0 : index
    %c0_3 = arith.constant 0 : index
    %1 = vector.load %arg2[%c0_1, %c0_2, %c0_3] : memref<4x256x768xbf16, #tpu.memory_space<vmem>>, vector<1x256x768xbf16>
    %2 = vector.shape_cast %1 : vector<1x256x768xbf16> to vector<256x768xbf16>
    %cst = arith.constant dense<0.000000e+00> : vector<32x768xf32>
    %3 = tpu.matmul %0, %2, %cst {dimension_numbers = #tpu.dot_dimension_numbers<[1], [0], [0], [1], [0, 0, 1, 1], [], []>} : vector<32x256xbf16>, vector<256x768xbf16>, vector<32x768xf32> -> vector<32x768xf32>
    %4 = vector.extract_strided_slice %0 {offsets = [1, 0], sizes = [31, 256], strides = [1, 1]} : vector<32x256xbf16> to vector<31x256xbf16>
    %cst_4 = arith.constant 0.000000e+00 : bf16
    %5 = vector.broadcast %cst_4 : bf16 to vector<1x256xbf16>
    %6 = tpu.concatenate %4, %5 in 0 : vector<31x256xbf16>, vector<1x256xbf16> -> vector<32x256xbf16>
    %c1 = arith.constant 1 : index
    %c0_5 = arith.constant 0 : index
    %c0_6 = arith.constant 0 : index
    %7 = vector.load %arg2[%c1, %c0_5, %c0_6] : memref<4x256x768xbf16, #tpu.memory_space<vmem>>, vector<1x256x768xbf16>
    %8 = vector.shape_cast %7 : vector<1x256x768xbf16> to vector<256x768xbf16>
    %cst_7 = arith.constant dense<0.000000e+00> : vector<32x768xf32>
    %9 = tpu.matmul %6, %8, %cst_7 {dimension_numbers = #tpu.dot_dimension_numbers<[1], [0], [0], [1], [0, 0, 1, 1], [], []>} : vector<32x256xbf16>, vector<256x768xbf16>, vector<32x768xf32> -> vector<32x768xf32>
    %10 = arith.addf %3, %9 : vector<32x768xf32>
    %11 = vector.extract_strided_slice %0 {offsets = [2, 0], sizes = [30, 256], strides = [1, 1]} : vector<32x256xbf16> to vector<30x256xbf16>
    %cst_8 = arith.constant 0.000000e+00 : bf16
    %12 = vector.broadcast %cst_8 : bf16 to vector<2x256xbf16>
    %13 = tpu.concatenate %11, %12 in 0 : vector<30x256xbf16>, vector<2x256xbf16> -> vector<32x256xbf16>
    %c2 = arith.constant 2 : index
    %c0_9 = arith.constant 0 : index
    %c0_10 = arith.constant 0 : index
    %14 = vector.load %arg2[%c2, %c0_9, %c0_10] : memref<4x256x768xbf16, #tpu.memory_space<vmem>>, vector<1x256x768xbf16>
    %15 = vector.shape_cast %14 : vector<1x256x768xbf16> to vector<256x768xbf16>
    %cst_11 = arith.constant dense<0.000000e+00> : vector<32x768xf32>
    %16 = tpu.matmul %13, %15, %cst_11 {dimension_numbers = #tpu.dot_dimension_numbers<[1], [0], [0], [1], [0, 0, 1, 1], [], []>} : vector<32x256xbf16>, vector<256x768xbf16>, vector<32x768xf32> -> vector<32x768xf32>
    %17 = arith.addf %10, %16 : vector<32x768xf32>
    %18 = vector.extract_strided_slice %0 {offsets = [3, 0], sizes = [29, 256], strides = [1, 1]} : vector<32x256xbf16> to vector<29x256xbf16>
    %cst_12 = arith.constant 0.000000e+00 : bf16
    %19 = vector.broadcast %cst_12 : bf16 to vector<3x256xbf16>
    %20 = tpu.concatenate %18, %19 in 0 : vector<29x256xbf16>, vector<3x256xbf16> -> vector<32x256xbf16>
    %c3 = arith.constant 3 : index
    %c0_13 = arith.constant 0 : index
    %c0_14 = arith.constant 0 : index
    %21 = vector.load %arg2[%c3, %c0_13, %c0_14] : memref<4x256x768xbf16, #tpu.memory_space<vmem>>, vector<1x256x768xbf16>
    %22 = vector.shape_cast %21 : vector<1x256x768xbf16> to vector<256x768xbf16>
    %cst_15 = arith.constant dense<0.000000e+00> : vector<32x768xf32>
    %23 = tpu.matmul %20, %22, %cst_15 {dimension_numbers = #tpu.dot_dimension_numbers<[1], [0], [0], [1], [0, 0, 1, 1], [], []>} : vector<32x256xbf16>, vector<256x768xbf16>, vector<32x768xf32> -> vector<32x768xf32>
    %24 = arith.addf %17, %23 : vector<32x768xf32>
    %25 = vector.shape_cast %24 : vector<32x768xf32> to vector<2x16x768xf32>
    %26 = vector.extract_strided_slice %25 {offsets = [0, 0, 0], sizes = [2, 9, 256], strides = [1, 1, 1]} : vector<2x16x768xf32> to vector<2x9x256xf32>
    %cst_16 = arith.constant dense<0xFF800000> : vector<2x256xf32>
    %27 = vector.multi_reduction <maximumf>, %26, %cst_16 [1] : vector<2x9x256xf32> to vector<2x256xf32>
    %28 = vector.extract_strided_slice %25 {offsets = [0, 0, 256], sizes = [2, 10, 256], strides = [1, 1, 1]} : vector<2x16x768xf32> to vector<2x10x256xf32>
    %cst_17 = arith.constant dense<0xFF800000> : vector<2x256xf32>
    %29 = vector.multi_reduction <maximumf>, %28, %cst_17 [1] : vector<2x10x256xf32> to vector<2x256xf32>
    %30 = vector.extract_strided_slice %25 {offsets = [0, 0, 512], sizes = [2, 11, 256], strides = [1, 1, 1]} : vector<2x16x768xf32> to vector<2x11x256xf32>
    %cst_18 = arith.constant dense<0xFF800000> : vector<2x256xf32>
    %31 = vector.multi_reduction <maximumf>, %30, %cst_18 [1] : vector<2x11x256xf32> to vector<2x256xf32>
    %32 = tpu.concatenate %27, %29, %31 in 1 : vector<2x256xf32>, vector<2x256xf32>, vector<2x256xf32> -> vector<2x768xf32>
    %c0_19 = arith.constant 0 : index
    %c0_20 = arith.constant 0 : index
    %33 = vector.load %arg3[%c0_19, %c0_20] : memref<1x768xf32, #tpu.memory_space<vmem>>, vector<1x768xf32>
    %34 = vector.broadcast %33 : vector<1x768xf32> to vector<2x768xf32>
    %35 = arith.addf %32, %34 : vector<2x768xf32>
    %cst_21 = arith.constant 0.000000e+00 : f32
    %36 = vector.broadcast %cst_21 : f32 to vector<2x768xf32>
    %37 = arith.maximumf %35, %36 : vector<2x768xf32>
    %c0_22 = arith.constant 0 : index
    %c0_23 = arith.constant 0 : index
    %38 = vector.load %arg7[%c0_22, %c0_23] : memref<2x768xf32, #tpu.memory_space<vmem>>, vector<2x768xf32>
    tpu.vector_store %arg7[%c0_22, %c0_23], %37 {strides = array<i32>} : memref<2x768xf32, #tpu.memory_space<vmem>>, vector<2x768xf32>,
    %39 = arith.truncf %37 : vector<2x768xf32> to vector<2x768xbf16>
    %c0_24 = arith.constant 0 : index
    %c0_25 = arith.constant 0 : index
    %40 = vector.load %arg4[%c0_24, %c0_25] : memref<768x128xbf16, #tpu.memory_space<vmem>>, vector<768x128xbf16>
    %cst_26 = arith.constant dense<0.000000e+00> : vector<2x128xf32>
    %41 = tpu.matmul %39, %40, %cst_26 {dimension_numbers = #tpu.dot_dimension_numbers<[1], [0], [0], [1], [0, 0, 1, 1], [], []>} : vector<2x768xbf16>, vector<768x128xbf16>, vector<2x128xf32> -> vector<2x128xf32>
    %c0_27 = arith.constant 0 : index
    %c0_28 = arith.constant 0 : index
    %42 = vector.load %arg5[%c0_27, %c0_28] : memref<1x128xf32, #tpu.memory_space<vmem>>, vector<1x128xf32>
    %43 = vector.broadcast %42 : vector<1x128xf32> to vector<2x128xf32>
    %44 = arith.addf %41, %43 : vector<2x128xf32>
    %c0_29 = arith.constant 0 : index
    %c0_30 = arith.constant 0 : index
    %45 = vector.load %arg6[%c0_29, %c0_30] : memref<2x128xf32, #tpu.memory_space<vmem>>, vector<2x128xf32>
    tpu.vector_store %arg6[%c0_29, %c0_30], %44 {strides = array<i32>} : memref<2x128xf32, #tpu.memory_space<vmem>>, vector<2x128xf32>,
    return
  }
  func.func @transform_0(%arg0: i32) -> (i32, i32) {
    %c0_i32 = arith.constant 0 : i32
    %c0_i32_0 = arith.constant 0 : i32
    return %arg0, %c0_i32 : i32, i32
  }
  func.func @transform_1(%arg0: i32) -> (i32, i32, i32) {
    %c0_i32 = arith.constant 0 : i32
    %c0_i32_0 = arith.constant 0 : i32
    %c0_i32_1 = arith.constant 0 : i32
    %c0_i32_2 = arith.constant 0 : i32
    return %c0_i32, %c0_i32_0, %c0_i32_1 : i32, i32, i32
  }
  func.func @transform_2(%arg0: i32) -> (i32, i32) {
    %c0_i32 = arith.constant 0 : i32
    %c0_i32_0 = arith.constant 0 : i32
    %c0_i32_1 = arith.constant 0 : i32
    return %c0_i32, %c0_i32_0 : i32, i32
  }
  func.func @transform_3(%arg0: i32) -> (i32, i32) {
    %c0_i32 = arith.constant 0 : i32
    %c0_i32_0 = arith.constant 0 : i32
    %c0_i32_1 = arith.constant 0 : i32
    return %c0_i32, %c0_i32_0 : i32, i32
  }
  func.func @transform_4(%arg0: i32) -> (i32, i32) {
    %c0_i32 = arith.constant 0 : i32
    %c0_i32_0 = arith.constant 0 : i32
    %c0_i32_1 = arith.constant 0 : i32
    return %c0_i32, %c0_i32_0 : i32, i32
  }
  func.func @transform_5(%arg0: i32) -> (i32, i32) {
    %c0_i32 = arith.constant 0 : i32
    %c0_i32_0 = arith.constant 0 : i32
    return %arg0, %c0_i32 : i32, i32
  }
  func.func @transform_6(%arg0: i32) -> (i32, i32) {
    %c0_i32 = arith.constant 0 : i32
    %c0_i32_0 = arith.constant 0 : i32
    return %arg0, %c0_i32 : i32, i32
  }
}

</mosaic_0001>

<llo_original>
// kernel: tpu_custom_call.1
$region0: #{tpu_custom_call.1}
  #allocation0 [shape = 'u32[]', space=smem, size = 0x4, offset = 0x4, fixed_abs, tag = 'smem constant byte address 0x4 - core index']
  #allocation1 [shape = 'u32[144,128]{1,0:T(1,128)}', space=vmem, size = 0x12000, scoped, tag = 'internal scratch']
  %s0 = inlined_call_operand.hbm [shape: bf16[32,256], index: 0, kind: input, shape index: {}]
  %s1 = inlined_call_operand.hbm [shape: bf16[4,256,768], index: 1, kind: input, shape index: {}]
  %s2 = inlined_call_operand.hbm [shape: f32[1,768], index: 2, kind: input, shape index: {}]
  %s3 = inlined_call_operand.hbm [shape: bf16[768,128], index: 3, kind: input, shape index: {}]
  %s4 = inlined_call_operand.hbm [shape: f32[1,128], index: 4, kind: input, shape index: {}]
  %s5 = inlined_call_operand.hbm [shape: f32[2,128], index: 5, kind: output, shape index: {0}]
  %s6 = inlined_call_operand.hbm [shape: f32[2,768], index: 6, kind: output, shape index: {1}]
  %7 = xla_tuple %s5, %s6
  %s8 = sld [smem:[#allocation0]]
  $region58: #{tpu_custom_call.1} parent=0
    _
  %s10 = ssub.s32 1, %s8
  %s11 = scalar_select 0, %s10, %s8
  $region1: #{tpu_custom_call.1} parent=0
    #allocation2 [shape = 'u8[16384]{0}', space=vmem, size = 0x4000, scoped, tag = 'input window, operand 0, single buffered']
    #allocation3 [shape = 's32[1]{0}', space=sflag, size = 0x4, scoped, tag = 'scoped memory for tpu_custom_call.1']
    #allocation4 [shape = 's32[1]{0}', space=sflag, size = 0x4, scoped, tag = 'scoped memory for tpu_custom_call.1']
    #allocation5 [shape = 'u8[1572864]{0}', space=vmem, size = 0x180000, scoped, tag = 'input window, operand 1, single buffered']
    #allocation6 [shape = 's32[1]{0}', space=sflag, size = 0x4, scoped, tag = 'scoped memory for tpu_custom_call.1']
    #allocation7 [shape = 'u8[3072]{0}', space=vmem, size = 0xc00, scoped, tag = 'input window, operand 2, single buffered']
    #allocation8 [shape = 'u8[196608]{0}', space=vmem, size = 0x30000, scoped, tag = 'input window, operand 3, single buffered']
    #allocation9 [shape = 's32[1]{0}', space=sflag, size = 0x4, scoped, tag = 'scoped memory for tpu_custom_call.1']
    #allocation10 [shape = 'u8[512]{0}', space=vmem, size = 0x400, scoped, tag = 'input window, operand 4, single buffered']
    #allocation11 [shape = 'u8[1024]{0}', space=vmem, size = 0x400, scoped, tag = 'output window, operand 0, single buffered']
    #allocation12 [shape = 'u8[6144]{0}', space=vmem, size = 0x1800, scoped, tag = 'output window, operand 1, single buffered']
    #allocation13 [shape = 's32[1]{0}', space=sflag, size = 0x4, scoped, tag = 'scoped memory for tpu_custom_call.1']
    %12 = vsyncpa [#allocation3], 0
    %13 = vsyncpa [#allocation6], 0
    %14 = vsyncpa [#allocation9], 0
    %15 = vsyncpa [#allocation4], 0
    %16 = vsyncpa [#allocation13], 0
    // Predicated region
    $region2: #{tpu_custom_call.1} parent=1 // pred_check
      _
    $region3: #{tpu_custom_call.1} parent=1 // pred_check_branch
      %18 = sbr.rel (0) target = $region5
    $region4: #{tpu_custom_call.1} parent=1 // pred_region
      %s20 = ssub.s32 512, 512
      %21 = vsyncadd [#allocation3], %s20
      %s22 = sshll.u32 [#allocation2], 4
      %s23 = int_to_ptr.vmem [resolvable:$true] %s22
      %28 = dma.hbm_to_vmem [thread:$0]  %s0, 512, %s23, [#allocation3], 128, 128, 8
    $region5: #{tpu_custom_call.1} parent=1 // pred_fallthru
      _
    // Predicated region
    $region6: #{tpu_custom_call.1} parent=1 // pred_check
      _
    $region7: #{tpu_custom_call.1} parent=1 // pred_check_branch
      %30 = sbr.rel (0) target = $region9
    $region8: #{tpu_custom_call.1} parent=1 // pred_region
      %s32 = ssub.s32 49152, 49152
      %33 = vsyncadd [#allocation6], %s32
      %s34 = sshll.u32 [#allocation5], 4
      %s35 = int_to_ptr.vmem [resolvable:$true] %s34
      %40 = dma.hbm_to_vmem [thread:$0]  %s1, 49152, %s35, [#allocation6], 384, 384, 24
    $region9: #{tpu_custom_call.1} parent=1 // pred_fallthru
      _
    // Predicated region
    $region10: #{tpu_custom_call.1} parent=1 // pred_check
      _
    $region11: #{tpu_custom_call.1} parent=1 // pred_check_branch
      %42 = sbr.rel (0) target = $region13
    $region12: #{tpu_custom_call.1} parent=1 // pred_region
      %s44 = ssub.s32 96, 96
      %45 = vsyncadd [#allocation6], %s44
      %s47 = sshll.u32 [#allocation7], 4
      %s48 = int_to_ptr.vmem [resolvable:$true] %s47
      %50 = dma.hbm_to_vmem [thread:$0]  %s2, 96, %s48, [#allocation6]
    $region13: #{tpu_custom_call.1} parent=1 // pred_fallthru
      _
    // Predicated region
    $region14: #{tpu_custom_call.1} parent=1 // pred_check
      _
    $region15: #{tpu_custom_call.1} parent=1 // pred_check_branch
      %52 = sbr.rel (0) target = $region17
    $region16: #{tpu_custom_call.1} parent=1 // pred_region
      %s54 = ssub.s32 6144, 6144
      %55 = vsyncadd [#allocation9], %s54
      %s56 = sshll.u32 [#allocation8], 4
      %s57 = int_to_ptr.vmem [resolvable:$true] %s56
      %62 = dma.hbm_to_vmem [thread:$0]  %s3, 6144, %s57, [#allocation9], 64, 64, 4
    $region17: #{tpu_custom_call.1} parent=1 // pred_fallthru
      _
    // Predicated region
    $region18: #{tpu_custom_call.1} parent=1 // pred_check
      _
    $region19: #{tpu_custom_call.1} parent=1 // pred_check_branch
      %64 = sbr.rel (0) target = $region21
    $region20: #{tpu_custom_call.1} parent=1 // pred_region
      %s66 = ssub.s32 16, 16
      %67 = vsyncadd [#allocation9], %s66
      %s69 = sshll.u32 [#allocation10], 4
      %s70 = int_to_ptr.vmem [resolvable:$true] %s69
      %72 = dma.hbm_to_vmem [thread:$0]  %s4, 16, %s70, [#allocation9]
    $region21: #{tpu_custom_call.1} parent=1 // pred_fallthru
      _
    // Predicated region
    $region22: #{tpu_custom_call.1} parent=1 // pred_check
      _
    $region23: #{tpu_custom_call.1} parent=1 // pred_check_branch
      %74 = sbr.rel (0) target = $region25
    $region24: #{tpu_custom_call.1} parent=1 // pred_region
      %75 = dma.done [#allocation3], 512
    $region25: #{tpu_custom_call.1} parent=1 // pred_fallthru
      _
    // Predicated region
    $region26: #{tpu_custom_call.1} parent=1 // pred_check
      _
    $region27: #{tpu_custom_call.1} parent=1 // pred_check_branch
      %77 = sbr.rel (0) target = $region29
    $region28: #{tpu_custom_call.1} parent=1 // pred_region
      %78 = dma.done [#allocation6], 49152
    $region29: #{tpu_custom_call.1} parent=1 // pred_fallthru
      _
    // Predicated region
    $region30: #{tpu_custom_call.1} parent=1 // pred_check
      _
    $region31: #{tpu_custom_call.1} parent=1 // pred_check_branch
      %80 = sbr.rel (0) target = $region33
    $region32: #{tpu_custom_call.1} parent=1 // pred_region
      %81 = dma.done [#allocation6], 96
    $region33: #{tpu_custom_call.1} parent=1 // pred_fallthru
      _
    // Predicated region
    $region34: #{tpu_custom_call.1} parent=1 // pred_check
      _
    $region35: #{tpu_custom_call.1} parent=1 // pred_check_branch
      %83 = sbr.rel (0) target = $region37
    $region36: #{tpu_custom_call.1} parent=1 // pred_region
      %84 = dma.done [#allocation9], 6144
    $region37: #{tpu_custom_call.1} parent=1 // pred_fallthru
      _
    // Predicated region
    $region38: #{tpu_custom_call.1} parent=1 // pred_check
      _
    $region39: #{tpu_custom_call.1} parent=1 // pred_check_branch
      %86 = sbr.rel (0) target = $region41
    $region40: #{tpu_custom_call.1} parent=1 // pred_region
      %87 = dma.done [#allocation9], 16
    $region41: #{tpu_custom_call.1} parent=1 // pred_fallthru
      _
    %v89 = vld [vmem:[#allocation2] sm:$0xff]
    %v90 = vld [vmem:[#allocation2 + $0x8] sm:$0xff]
    %v91 = vld [vmem:[#allocation2 + $0x10] sm:$0xff]
    %v92 = vld [vmem:[#allocation2 + $0x18] sm:$0xff]
    %v93 = vld [vmem:[#allocation5] sm:$0xff]
    %v94 = vld [vmem:[#allocation5 + $0x8] sm:$0xff]
    %v95 = vld [vmem:[#allocation5 + $0x10] sm:$0xff]
    %v96 = vld [vmem:[#allocation5 + $0x18] sm:$0xff]
    %v97 = vld [vmem:[#allocation5 + $0x20] sm:$0xff]
    %v98 = vld [vmem:[#allocation5 + $0x28] sm:$0xff]
    %v99 = vld [vmem:[#allocation5 + $0x30] sm:$0xff]
    %v100 = vld [vmem:[#allocation5 + $0x38] sm:$0xff]
    %v101 = vld [vmem:[#allocation5 + $0x40] sm:$0xff]
    %v102 = vld [vmem:[#allocation5 + $0x48] sm:$0xff]
    %v103 = vld [vmem:[#allocation5 + $0x50] sm:$0xff]
    %v104 = vld [vmem:[#allocation5 + $0x58] sm:$0xff]
    %v105 = vld [vmem:[#allocation5 + $0x60] sm:$0xff]
    %v106 = vld [vmem:[#allocation5 + $0x68] sm:$0xff]
    %v107 = vld [vmem:[#allocation5 + $0x70] sm:$0xff]
    %v108 = vld [vmem:[#allocation5 + $0x78] sm:$0xff]
    %v109 = vld [vmem:[#allocation5 + $0x80] sm:$0xff]
    %v110 = vld [vmem:[#allocation5 + $0x88] sm:$0xff]
    %v111 = vld [vmem:[#allocation5 + $0x90] sm:$0xff]
    %v112 = vld [vmem:[#allocation5 + $0x98] sm:$0xff]
    %v113 = vld [vmem:[#allocation5 + $0xa0] sm:$0xff]
    %v114 = vld [vmem:[#allocation5 + $0xa8] sm:$0xff]
    %v115 = vld [vmem:[#allocation5 + $0xb0] sm:$0xff]
    %v116 = vld [vmem:[#allocation5 + $0xb8] sm:$0xff]
    %v117 = vld [vmem:[#allocation5 + $0xc0] sm:$0xff]
    %v118 = vld [vmem:[#allocation5 + $0xc8] sm:$0xff]
    %v119 = vld [vmem:[#allocation5 + $0xd0] sm:$0xff]
    %v120 = vld [vmem:[#allocation5 + $0xd8] sm:$0xff]
    %v121 = vld [vmem:[#allocation5 + $0xe0] sm:$0xff]
    %v122 = vld [vmem:[#allocation5 + $0xe8] sm:$0xff]
    %v123 = vld [vmem:[#allocation5 + $0xf0] sm:$0xff]
    %v124 = vld [vmem:[#allocation5 + $0xf8] sm:$0xff]
    %v125 = vld [vmem:[#allocation5 + $0x100] sm:$0xff]
    %v126 = vld [vmem:[#allocation5 + $0x108] sm:$0xff]
    %v127 = vld [vmem:[#allocation5 + $0x110] sm:$0xff]
    %v128 = vld [vmem:[#allocation5 + $0x118] sm:$0xff]
    %v129 = vld [vmem:[#allocation5 + $0x120] sm:$0xff]
    %v130 = vld [vmem:[#allocation5 + $0x128] sm:$0xff]
    %v131 = vld [vmem:[#allocation5 + $0x130] sm:$0xff]
    %v132 = vld [vmem:[#allocation5 + $0x138] sm:$0xff]
    %v133 = vld [vmem:[#allocation5 + $0x140] sm:$0xff]
    %v134 = vld [vmem:[#allocation5 + $0x148] sm:$0xff]
    %v135 = vld [vmem:[#allocation5 + $0x150] sm:$0xff]
    %v136 = vld [vmem:[#allocation5 + $0x158] sm:$0xff]
    %v137 = vld [vmem:[#allocation5 + $0x160] sm:$0xff]
    %v138 = vld [vmem:[#allocation5 + $0x168] sm:$0xff]
    %v139 = vld [vmem:[#allocation5 + $0x170] sm:$0xff]
    %v140 = vld [vmem:[#allocation5 + $0x178] sm:$0xff]
    %v141 = vld [vmem:[#allocation5 + $0x180] sm:$0xff]
    %v142 = vld [vmem:[#allocation5 + $0x188] sm:$0xff]
    %v143 = vld [vmem:[#allocation5 + $0x190] sm:$0xff]
    %v144 = vld [vmem:[#allocation5 + $0x198] sm:$0xff]
    %v145 = vld [vmem:[#allocation5 + $0x1a0] sm:$0xff]
    %v146 = vld [vmem:[#allocation5 + $0x1a8] sm:$0xff]
    %v147 = vld [vmem:[#allocation5 + $0x1b0] sm:$0xff]
    %v148 = vld [vmem:[#allocation5 + $0x1b8] sm:$0xff]
    %v149 = vld [vmem:[#allocation5 + $0x1c0] sm:$0xff]
    %v150 = vld [vmem:[#allocation5 + $0x1c8] sm:$0xff]
    %v151 = vld [vmem:[#allocation5 + $0x1d0] sm:$0xff]
    %v152 = vld [vmem:[#allocation5 + $0x1d8] sm:$0xff]
    %v153 = vld [vmem:[#allocation5 + $0x1e0] sm:$0xff]
    %v154 = vld [vmem:[#allocation5 + $0x1e8] sm:$0xff]
    %v155 = vld [vmem:[#allocation5 + $0x1f0] sm:$0xff]
    %v156 = vld [vmem:[#allocation5 + $0x1f8] sm:$0xff]
    %v157 = vld [vmem:[#allocation5 + $0x200] sm:$0xff]
    %v158 = vld [vmem:[#allocation5 + $0x208] sm:$0xff]
    %v159 = vld [vmem:[#allocation5 + $0x210] sm:$0xff]
    %v160 = vld [vmem:[#allocation5 + $0x218] sm:$0xff]
    %v161 = vld [vmem:[#allocation5 + $0x220] sm:$0xff]
    %v162 = vld [vmem:[#allocation5 + $0x228] sm:$0xff]
    %v163 = vld [vmem:[#allocation5 + $0x230] sm:$0xff]
    %v164 = vld [vmem:[#allocation5 + $0x238] sm:$0xff]
    %v165 = vld [vmem:[#allocation5 + $0x240] sm:$0xff]
    %v166 = vld [vmem:[#allocation5 + $0x248] sm:$0xff]
    %v167 = vld [vmem:[#allocation5 + $0x250] sm:$0xff]
    %v168 = vld [vmem:[#allocation5 + $0x258] sm:$0xff]
    %v169 = vld [vmem:[#allocation5 + $0x260] sm:$0xff]
    %v170 = vld [vmem:[#allocation5 + $0x268] sm:$0xff]
    %v171 = vld [vmem:[#allocation5 + $0x270] sm:$0xff]
    %v172 = vld [vmem:[#allocation5 + $0x278] sm:$0xff]
    %v173 = vld [vmem:[#allocation5 + $0x280] sm:$0xff]
    %v174 = vld [vmem:[#allocation5 + $0x288] sm:$0xff]
    %v175 = vld [vmem:[#allocation5 + $0x290] sm:$0xff]
    %v176 = vld [vmem:[#allocation5 + $0x298] sm:$0xff]
    %v177 = vld [vmem:[#allocation5 + $0x2a0] sm:$0xff]
    %v178 = vld [vmem:[#allocation5 + $0x2a8] sm:$0xff]
    %v179 = vld [vmem:[#allocation5 + $0x2b0] sm:$0xff]
    %v180 = vld [vmem:[#allocation5 + $0x2b8] sm:$0xff]
    %v181 = vld [vmem:[#allocation5 + $0x2c0] sm:$0xff]
    %v182 = vld [vmem:[#allocation5 + $0x2c8] sm:$0xff]
    %v183 = vld [vmem:[#allocation5 + $0x2d0] sm:$0xff]
    %v184 = vld [vmem:[#allocation5 + $0x2d8] sm:$0xff]
    %v185 = vld [vmem:[#allocation5 + $0x2e0] sm:$0xff]
    %v186 = vld [vmem:[#allocation5 + $0x2e8] sm:$0xff]
    %v187 = vld [vmem:[#allocation5 + $0x2f0] sm:$0xff]
    %v188 = vld [vmem:[#allocation5 + $0x2f8] sm:$0xff]
    %v193 = vunpack.c.l.b16 %v89
    %v194 = vunpack.c.h.b16 %v89
    %v195 = vunpack.c.l.b16 %v90
    %v196 = vunpack.c.h.b16 %v90
    %v197 = vunpack.c.l.b16 %v91
    %v198 = vunpack.c.h.b16 %v91
    %v199 = vunpack.c.l.b16 %v92
    %v200 = vunpack.c.h.b16 %v92
    %v201 = vpack.c.b16 %v195, %v193
    %v202 = vpack.c.b16 %v196, %v194
    %v203 = vpack.c.b16 %v199, %v197
    %v204 = vpack.c.b16 %v200, %v198
    %vm205 = vsmask.f32 7424
    %v207 = vshrl.u32 %v201, 16
    %v209 = vshll.u32 %v201, 16
    %v211 = vrot.slane %v209, 1
    %v212 = vor.u32 %v207, %v211
    %v214 = vshll.u32 %v203, 16
    %v216 = vrot.slane %v214, 1
    %v217 = vsel %vm205, %v212, %v216
    %v219 = vshrl.u32 %v202, 16
    %v221 = vshll.u32 %v202, 16
    %v223 = vrot.slane %v221, 1
    %v224 = vor.u32 %v219, %v223
    %v226 = vshll.u32 %v204, 16
    %v228 = vrot.slane %v226, 1
    %v229 = vsel %vm205, %v224, %v228
    %v230 = vshrl.u32 %v203, 16
    %v232 = vor.u32 %v230, %v216
    %v233 = vshrl.u32 %v204, 16
    %v235 = vor.u32 %v233, %v228
    %vm240 = vcmask 1047552
    %vm241 = vmand %vm240, %vm205
    %v242 = vsel %vm241, %v232, 0
    %v243 = vsel %vm241, %v235, 0
    %s244 = scalar_lea.vmem [#allocation5], 768
    %v245 = vld [vmem:[%s244] sm:$0xff]
    %v246 = vld [vmem:[%s244 + $0x8] sm:$0xff]
    %v247 = vld [vmem:[%s244 + $0x10] sm:$0xff]
    %v248 = vld [vmem:[%s244 + $0x18] sm:$0xff]
    %v249 = vld [vmem:[%s244 + $0x20] sm:$0xff]
    %v250 = vld [vmem:[%s244 + $0x28] sm:$0xff]
    %v251 = vld [vmem:[%s244 + $0x30] sm:$0xff]
    %v252 = vld [vmem:[%s244 + $0x38] sm:$0xff]
    %v253 = vld [vmem:[%s244 + $0x40] sm:$0xff]
    %v254 = vld [vmem:[%s244 + $0x48] sm:$0xff]
    %v255 = vld [vmem:[%s244 + $0x50] sm:$0xff]
    %v256 = vld [vmem:[%s244 + $0x58] sm:$0xff]
    %v257 = vld [vmem:[%s244 + $0x60] sm:$0xff]
    %v258 = vld [vmem:[%s244 + $0x68] sm:$0xff]
    %v259 = vld [vmem:[%s244 + $0x70] sm:$0xff]
    %v260 = vld [vmem:[%s244 + $0x78] sm:$0xff]
    %v261 = vld [vmem:[%s244 + $0x80] sm:$0xff]
    %v262 = vld [vmem:[%s244 + $0x88] sm:$0xff]
    %v263 = vld [vmem:[%s244 + $0x90] sm:$0xff]
    %v264 = vld [vmem:[%s244 + $0x98] sm:$0xff]
    %v265 = vld [vmem:[%s244 + $0xa0] sm:$0xff]
    %v266 = vld [vmem:[%s244 + $0xa8] sm:$0xff]
    %v267 = vld [vmem:[%s244 + $0xb0] sm:$0xff]
    %v268 = vld [vmem:[%s244 + $0xb8] sm:$0xff]
    %v269 = vld [vmem:[%s244 + $0xc0] sm:$0xff]
    %v270 = vld [vmem:[%s244 + $0xc8] sm:$0xff]
    %v271 = vld [vmem:[%s244 + $0xd0] sm:$0xff]
    %v272 = vld [vmem:[%s244 + $0xd8] sm:$0xff]
    %v273 = vld [vmem:[%s244 + $0xe0] sm:$0xff]
    %v274 = vld [vmem:[%s244 + $0xe8] sm:$0xff]
    %v275 = vld [vmem:[%s244 + $0xf0] sm:$0xff]
    %v276 = vld [vmem:[%s244 + $0xf8] sm:$0xff]
    %v277 = vld [vmem:[%s244 + $0x100] sm:$0xff]
    %v278 = vld [vmem:[%s244 + $0x108] sm:$0xff]
    %v279 = vld [vmem:[%s244 + $0x110] sm:$0xff]
    %v280 = vld [vmem:[%s244 + $0x118] sm:$0xff]
    %v281 = vld [vmem:[%s244 + $0x120] sm:$0xff]
    %v282 = vld [vmem:[%s244 + $0x128] sm:$0xff]
    %v283 = vld [vmem:[%s244 + $0x130] sm:$0xff]
    %v284 = vld [vmem:[%s244 + $0x138] sm:$0xff]
    %v285 = vld [vmem:[%s244 + $0x140] sm:$0xff]
    %v286 = vld [vmem:[%s244 + $0x148] sm:$0xff]
    %v287 = vld [vmem:[%s244 + $0x150] sm:$0xff]
    %v288 = vld [vmem:[%s244 + $0x158] sm:$0xff]
    %v289 = vld [vmem:[%s244 + $0x160] sm:$0xff]
    %v290 = vld [vmem:[%s244 + $0x168] sm:$0xff]
    %v291 = vld [vmem:[%s244 + $0x170] sm:$0xff]
    %v292 = vld [vmem:[%s244 + $0x178] sm:$0xff]
    %v293 = vld [vmem:[%s244 + $0x180] sm:$0xff]
    %v294 = vld [vmem:[%s244 + $0x188] sm:$0xff]
    %v295 = vld [vmem:[%s244 + $0x190] sm:$0xff]
    %v296 = vld [vmem:[%s244 + $0x198] sm:$0xff]
    %v297 = vld [vmem:[%s244 + $0x1a0] sm:$0xff]
    %v298 = vld [vmem:[%s244 + $0x1a8] sm:$0xff]
    %v299 = vld [vmem:[%s244 + $0x1b0] sm:$0xff]
    %v300 = vld [vmem:[%s244 + $0x1b8] sm:$0xff]
    %v301 = vld [vmem:[%s244 + $0x1c0] sm:$0xff]
    %v302 = vld [vmem:[%s244 + $0x1c8] sm:$0xff]
    %v303 = vld [vmem:[%s244 + $0x1d0] sm:$0xff]
    %v304 = vld [vmem:[%s244 + $0x1d8] sm:$0xff]
    %v305 = vld [vmem:[%s244 + $0x1e0] sm:$0xff]
    %v306 = vld [vmem:[%s244 + $0x1e8] sm:$0xff]
    %v307 = vld [vmem:[%s244 + $0x1f0] sm:$0xff]
    %v308 = vld [vmem:[%s244 + $0x1f8] sm:$0xff]
    %v309 = vld [vmem:[%s244 + $0x200] sm:$0xff]
    %v310 = vld [vmem:[%s244 + $0x208] sm:$0xff]
    %v311 = vld [vmem:[%s244 + $0x210] sm:$0xff]
    %v312 = vld [vmem:[%s244 + $0x218] sm:$0xff]
    %v313 = vld [vmem:[%s244 + $0x220] sm:$0xff]
    %v314 = vld [vmem:[%s244 + $0x228] sm:$0xff]
    %v315 = vld [vmem:[%s244 + $0x230] sm:$0xff]
    %v316 = vld [vmem:[%s244 + $0x238] sm:$0xff]
    %v317 = vld [vmem:[%s244 + $0x240] sm:$0xff]
    %v318 = vld [vmem:[%s244 + $0x248] sm:$0xff]
    %v319 = vld [vmem:[%s244 + $0x250] sm:$0xff]
    %v320 = vld [vmem:[%s244 + $0x258] sm:$0xff]
    %v321 = vld [vmem:[%s244 + $0x260] sm:$0xff]
    %v322 = vld [vmem:[%s244 + $0x268] sm:$0xff]
    %v323 = vld [vmem:[%s244 + $0x270] sm:$0xff]
    %v324 = vld [vmem:[%s244 + $0x278] sm:$0xff]
    %v325 = vld [vmem:[%s244 + $0x280] sm:$0xff]
    %v326 = vld [vmem:[%s244 + $0x288] sm:$0xff]
    %v327 = vld [vmem:[%s244 + $0x290] sm:$0xff]
    %v328 = vld [vmem:[%s244 + $0x298] sm:$0xff]
    %v329 = vld [vmem:[%s244 + $0x2a0] sm:$0xff]
    %v330 = vld [vmem:[%s244 + $0x2a8] sm:$0xff]
    %v331 = vld [vmem:[%s244 + $0x2b0] sm:$0xff]
    %v332 = vld [vmem:[%s244 + $0x2b8] sm:$0xff]
    %v333 = vld [vmem:[%s244 + $0x2c0] sm:$0xff]
    %v334 = vld [vmem:[%s244 + $0x2c8] sm:$0xff]
    %v335 = vld [vmem:[%s244 + $0x2d0] sm:$0xff]
    %v336 = vld [vmem:[%s244 + $0x2d8] sm:$0xff]
    %v337 = vld [vmem:[%s244 + $0x2e0] sm:$0xff]
    %v338 = vld [vmem:[%s244 + $0x2e8] sm:$0xff]
    %v339 = vld [vmem:[%s244 + $0x2f0] sm:$0xff]
    %v340 = vld [vmem:[%s244 + $0x2f8] sm:$0xff]
    %v437 = vunpack.c.l.b16 %v245
    %v438 = vunpack.c.h.b16 %v245
    %v439 = vunpack.c.l.b16 %v246
    %v440 = vunpack.c.h.b16 %v246
    %v441 = vunpack.c.l.b16 %v247
    %v442 = vunpack.c.h.b16 %v247
    %v443 = vunpack.c.l.b16 %v248
    %v444 = vunpack.c.h.b16 %v248
    %v445 = vunpack.c.l.b16 %v249
    %v446 = vunpack.c.h.b16 %v249
    %v447 = vunpack.c.l.b16 %v250
    %v448 = vunpack.c.h.b16 %v250
    %v449 = vunpack.c.l.b16 %v251
    %v450 = vunpack.c.h.b16 %v251
    %v451 = vunpack.c.l.b16 %v252
    %v452 = vunpack.c.h.b16 %v252
    %v453 = vunpack.c.l.b16 %v253
    %v454 = vunpack.c.h.b16 %v253
    %v455 = vunpack.c.l.b16 %v254
    %v456 = vunpack.c.h.b16 %v254
    %v457 = vunpack.c.l.b16 %v255
    %v458 = vunpack.c.h.b16 %v255
    %v459 = vunpack.c.l.b16 %v256
    %v460 = vunpack.c.h.b16 %v256
    %v461 = vunpack.c.l.b16 %v257
    %v462 = vunpack.c.h.b16 %v257
    %v463 = vunpack.c.l.b16 %v258
    %v464 = vunpack.c.h.b16 %v258
    %v465 = vunpack.c.l.b16 %v259
    %v466 = vunpack.c.h.b16 %v259
    %v467 = vunpack.c.l.b16 %v260
    %v468 = vunpack.c.h.b16 %v260
    %v469 = vunpack.c.l.b16 %v261
    %v470 = vunpack.c.h.b16 %v261
    %v471 = vunpack.c.l.b16 %v262
    %v472 = vunpack.c.h.b16 %v262
    %v473 = vunpack.c.l.b16 %v263
    %v474 = vunpack.c.h.b16 %v263
    %v475 = vunpack.c.l.b16 %v264
    %v476 = vunpack.c.h.b16 %v264
    %v477 = vunpack.c.l.b16 %v265
    %v478 = vunpack.c.h.b16 %v265
    %v479 = vunpack.c.l.b16 %v266
    %v480 = vunpack.c.h.b16 %v266
    %v481 = vunpack.c.l.b16 %v267
    %v482 = vunpack.c.h.b16 %v267
    %v483 = vunpack.c.l.b16 %v268
    %v484 = vunpack.c.h.b16 %v268
    %v485 = vunpack.c.l.b16 %v269
    %v486 = vunpack.c.h.b16 %v269
    %v487 = vunpack.c.l.b16 %v270
    %v488 = vunpack.c.h.b16 %v270
    %v489 = vunpack.c.l.b16 %v271
    %v490 = vunpack.c.h.b16 %v271
    %v491 = vunpack.c.l.b16 %v272
    %v492 = vunpack.c.h.b16 %v272
    %v493 = vunpack.c.l.b16 %v273
    %v494 = vunpack.c.h.b16 %v273
    %v495 = vunpack.c.l.b16 %v274
    %v496 = vunpack.c.h.b16 %v274
    %v497 = vunpack.c.l.b16 %v275
    %v498 = vunpack.c.h.b16 %v275
    %v499 = vunpack.c.l.b16 %v276
    %v500 = vunpack.c.h.b16 %v276
    %v501 = vunpack.c.l.b16 %v277
    %v502 = vunpack.c.h.b16 %v277
    %v503 = vunpack.c.l.b16 %v278
    %v504 = vunpack.c.h.b16 %v278
    %v505 = vunpack.c.l.b16 %v279
    %v506 = vunpack.c.h.b16 %v279
    %v507 = vunpack.c.l.b16 %v280
    %v508 = vunpack.c.h.b16 %v280
    %v509 = vunpack.c.l.b16 %v281
    %v510 = vunpack.c.h.b16 %v281
    %v511 = vunpack.c.l.b16 %v282
    %v512 = vunpack.c.h.b16 %v282
    %v513 = vunpack.c.l.b16 %v283
    %v514 = vunpack.c.h.b16 %v283
    %v515 = vunpack.c.l.b16 %v284
    %v516 = vunpack.c.h.b16 %v284
    %v517 = vunpack.c.l.b16 %v285
    %v518 = vunpack.c.h.b16 %v285
    %v519 = vunpack.c.l.b16 %v286
    %v520 = vunpack.c.h.b16 %v286
    %v521 = vunpack.c.l.b16 %v287
    %v522 = vunpack.c.h.b16 %v287
    %v523 = vunpack.c.l.b16 %v288
    %v524 = vunpack.c.h.b16 %v288
    %v525 = vunpack.c.l.b16 %v289
    %v526 = vunpack.c.h.b16 %v289
    %v527 = vunpack.c.l.b16 %v290
    %v528 = vunpack.c.h.b16 %v290
    %v529 = vunpack.c.l.b16 %v291
    %v530 = vunpack.c.h.b16 %v291
    %v531 = vunpack.c.l.b16 %v292
    %v532 = vunpack.c.h.b16 %v292
    %v533 = vunpack.c.l.b16 %v293
    %v534 = vunpack.c.h.b16 %v293
    %v535 = vunpack.c.l.b16 %v294
    %v536 = vunpack.c.h.b16 %v294
    %v537 = vunpack.c.l.b16 %v295
    %v538 = vunpack.c.h.b16 %v295
    %v539 = vunpack.c.l.b16 %v296
    %v540 = vunpack.c.h.b16 %v296
    %v541 = vunpack.c.l.b16 %v297
    %v542 = vunpack.c.h.b16 %v297
    %v543 = vunpack.c.l.b16 %v298
    %v544 = vunpack.c.h.b16 %v298
    %v545 = vunpack.c.l.b16 %v299
    %v546 = vunpack.c.h.b16 %v299
    %v547 = vunpack.c.l.b16 %v300
    %v548 = vunpack.c.h.b16 %v300
    %v549 = vunpack.c.l.b16 %v301
    %v550 = vunpack.c.h.b16 %v301
    %v551 = vunpack.c.l.b16 %v302
    %v552 = vunpack.c.h.b16 %v302
    %v553 = vunpack.c.l.b16 %v303
    %v554 = vunpack.c.h.b16 %v303
    %v555 = vunpack.c.l.b16 %v304
    %v556 = vunpack.c.h.b16 %v304
    %v557 = vunpack.c.l.b16 %v305
    %v558 = vunpack.c.h.b16 %v305
    %v559 = vunpack.c.l.b16 %v306
    %v560 = vunpack.c.h.b16 %v306
    %v561 = vunpack.c.l.b16 %v307
    %v562 = vunpack.c.h.b16 %v307
    %v563 = vunpack.c.l.b16 %v308
    %v564 = vunpack.c.h.b16 %v308
    %v565 = vunpack.c.l.b16 %v309
    %v566 = vunpack.c.h.b16 %v309
    %v567 = vunpack.c.l.b16 %v310
    %v568 = vunpack.c.h.b16 %v310
    %v569 = vunpack.c.l.b16 %v311
    %v570 = vunpack.c.h.b16 %v311
    %v571 = vunpack.c.l.b16 %v312
    %v572 = vunpack.c.h.b16 %v312
    %v573 = vunpack.c.l.b16 %v313
    %v574 = vunpack.c.h.b16 %v313
    %v575 = vunpack.c.l.b16 %v314
    %v576 = vunpack.c.h.b16 %v314
    %v577 = vunpack.c.l.b16 %v315
    %v578 = vunpack.c.h.b16 %v315
    %v579 = vunpack.c.l.b16 %v316
    %v580 = vunpack.c.h.b16 %v316
    %v581 = vunpack.c.l.b16 %v317
    %v582 = vunpack.c.h.b16 %v317
    %v583 = vunpack.c.l.b16 %v318
    %v584 = vunpack.c.h.b16 %v318
    %v585 = vunpack.c.l.b16 %v319
    %v586 = vunpack.c.h.b16 %v319
    %v587 = vunpack.c.l.b16 %v320
    %v588 = vunpack.c.h.b16 %v320
    %v589 = vunpack.c.l.b16 %v321
    %v590 = vunpack.c.h.b16 %v321
    %v591 = vunpack.c.l.b16 %v322
    %v592 = vunpack.c.h.b16 %v322
    %v593 = vunpack.c.l.b16 %v323
    %v594 = vunpack.c.h.b16 %v323
    %v595 = vunpack.c.l.b16 %v324
    %v596 = vunpack.c.h.b16 %v324
    %v597 = vunpack.c.l.b16 %v325
    %v598 = vunpack.c.h.b16 %v325
    %v599 = vunpack.c.l.b16 %v326
    %v600 = vunpack.c.h.b16 %v326
    %v601 = vunpack.c.l.b16 %v327
    %v602 = vunpack.c.h.b16 %v327
    %v603 = vunpack.c.l.b16 %v328
    %v604 = vunpack.c.h.b16 %v328
    %v605 = vunpack.c.l.b16 %v329
    %v606 = vunpack.c.h.b16 %v329
    %v607 = vunpack.c.l.b16 %v330
    %v608 = vunpack.c.h.b16 %v330
    %v609 = vunpack.c.l.b16 %v331
    %v610 = vunpack.c.h.b16 %v331
    %v611 = vunpack.c.l.b16 %v332
    %v612 = vunpack.c.h.b16 %v332
    %v613 = vunpack.c.l.b16 %v333
    %v614 = vunpack.c.h.b16 %v333
    %v615 = vunpack.c.l.b16 %v334
    %v616 = vunpack.c.h.b16 %v334
    %v617 = vunpack.c.l.b16 %v335
    %v618 = vunpack.c.h.b16 %v335
    %v619 = vunpack.c.l.b16 %v336
    %v620 = vunpack.c.h.b16 %v336
    %v621 = vunpack.c.l.b16 %v337
    %v622 = vunpack.c.h.b16 %v337
    %v623 = vunpack.c.l.b16 %v338
    %v624 = vunpack.c.h.b16 %v338
    %v625 = vunpack.c.l.b16 %v339
    %v626 = vunpack.c.h.b16 %v339
    %v627 = vunpack.c.l.b16 %v340
    %v628 = vunpack.c.h.b16 %v340
    %v629 = vpack.c.b16 %v443, %v437
    %v630 = vpack.c.b16 %v444, %v438
    %v631 = vpack.c.b16 %v445, %v439
    %v632 = vpack.c.b16 %v446, %v440
    %v633 = vpack.c.b16 %v447, %v441
    %v634 = vpack.c.b16 %v448, %v442
    %v635 = vpack.c.b16 %v455, %v449
    %v636 = vpack.c.b16 %v456, %v450
    %v637 = vpack.c.b16 %v457, %v451
    %v638 = vpack.c.b16 %v458, %v452
    %v639 = vpack.c.b16 %v459, %v453
    %v640 = vpack.c.b16 %v460, %v454
    %v641 = vpack.c.b16 %v467, %v461
    %v642 = vpack.c.b16 %v468, %v462
    %v643 = vpack.c.b16 %v469, %v463
    %v644 = vpack.c.b16 %v470, %v464
    %v645 = vpack.c.b16 %v471, %v465
    %v646 = vpack.c.b16 %v472, %v466
    %v647 = vpack.c.b16 %v479, %v473
    %v648 = vpack.c.b16 %v480, %v474
    %v649 = vpack.c.b16 %v481, %v475
    %v650 = vpack.c.b16 %v482, %v476
    %v651 = vpack.c.b16 %v483, %v477
    %v652 = vpack.c.b16 %v484, %v478
    %v653 = vpack.c.b16 %v491, %v485
    %v654 = vpack.c.b16 %v492, %v486
    %v655 = vpack.c.b16 %v493, %v487
    %v656 = vpack.c.b16 %v494, %v488
    %v657 = vpack.c.b16 %v495, %v489
    %v658 = vpack.c.b16 %v496, %v490
    %v659 = vpack.c.b16 %v503, %v497
    %v660 = vpack.c.b16 %v504, %v498
    %v661 = vpack.c.b16 %v505, %v499
    %v662 = vpack.c.b16 %v506, %v500
    %v663 = vpack.c.b16 %v507, %v501
    %v664 = vpack.c.b16 %v508, %v502
    %v665 = vpack.c.b16 %v515, %v509
    %v666 = vpack.c.b16 %v516, %v510
    %v667 = vpack.c.b16 %v517, %v511
    %v668 = vpack.c.b16 %v518, %v512
    %v669 = vpack.c.b16 %v519, %v513
    %v670 = vpack.c.b16 %v520, %v514
    %v671 = vpack.c.b16 %v527, %v521
    %v672 = vpack.c.b16 %v528, %v522
    %v673 = vpack.c.b16 %v529, %v523
    %v674 = vpack.c.b16 %v530, %v524
    %v675 = vpack.c.b16 %v531, %v525
    %v676 = vpack.c.b16 %v532, %v526
    %v677 = vpack.c.b16 %v539, %v533
    %v678 = vpack.c.b16 %v540, %v534
    %v679 = vpack.c.b16 %v541, %v535
    %v680 = vpack.c.b16 %v542, %v536
    %v681 = vpack.c.b16 %v543, %v537
    %v682 = vpack.c.b16 %v544, %v538
    %v683 = vpack.c.b16 %v551, %v545
    %v684 = vpack.c.b16 %v552, %v546
    %v685 = vpack.c.b16 %v553, %v547
    %v686 = vpack.c.b16 %v554, %v548
    %v687 = vpack.c.b16 %v555, %v549
    %v688 = vpack.c.b16 %v556, %v550
    %v689 = vpack.c.b16 %v563, %v557
    %v690 = vpack.c.b16 %v564, %v558
    %v691 = vpack.c.b16 %v565, %v559
    %v692 = vpack.c.b16 %v566, %v560
    %v693 = vpack.c.b16 %v567, %v561
    %v694 = vpack.c.b16 %v568, %v562
    %v695 = vpack.c.b16 %v575, %v569
    %v696 = vpack.c.b16 %v576, %v570
    %v697 = vpack.c.b16 %v577, %v571
    %v698 = vpack.c.b16 %v578, %v572
    %v699 = vpack.c.b16 %v579, %v573
    %v700 = vpack.c.b16 %v580, %v574
    %v701 = vpack.c.b16 %v587, %v581
    %v702 = vpack.c.b16 %v588, %v582
    %v703 = vpack.c.b16 %v589, %v583
    %v704 = vpack.c.b16 %v590, %v584
    %v705 = vpack.c.b16 %v591, %v585
    %v706 = vpack.c.b16 %v592, %v586
    %v707 = vpack.c.b16 %v599, %v593
    %v708 = vpack.c.b16 %v600, %v594
    %v709 = vpack.c.b16 %v601, %v595
    %v710 = vpack.c.b16 %v602, %v596
    %v711 = vpack.c.b16 %v603, %v597
    %v712 = vpack.c.b16 %v604, %v598
    %v713 = vpack.c.b16 %v611, %v605
    %v714 = vpack.c.b16 %v612, %v606
    %v715 = vpack.c.b16 %v613, %v607
    %v716 = vpack.c.b16 %v614, %v608
    %v717 = vpack.c.b16 %v615, %v609
    %v718 = vpack.c.b16 %v616, %v610
    %v719 = vpack.c.b16 %v623, %v617
    %v720 = vpack.c.b16 %v624, %v618
    %v721 = vpack.c.b16 %v625, %v619
    %v722 = vpack.c.b16 %v626, %v620
    %v723 = vpack.c.b16 %v627, %v621
    %v724 = vpack.c.b16 %v628, %v622
    %821 = vmatprep.subr.bf16.mxu0 %v630
    %822 = vmatpush1.bf16.msra.mxu0 %v629
    %823 = vmatprep.subr.bf16.mxu0 %v636
    %824 = vmatpush1.bf16.msra.mxu0 %v635
    %825 = vmatprep.subr.bf16.mxu0 %v642
    %826 = vmatpush1.bf16.msra.mxu0 %v641
    %827 = vmatprep.subr.bf16.mxu0 %v648
    %828 = vmatpush1.bf16.msra.mxu0 %v647
    %829 = vmatprep.subr.bf16.mxu0 %v654
    %830 = vmatpush1.bf16.msra.mxu0 %v653
    %831 = vmatprep.subr.bf16.mxu0 %v660
    %832 = vmatpush1.bf16.msra.mxu0 %v659
    %833 = vmatprep.subr.bf16.mxu0 %v666
    %834 = vmatpush1.bf16.msra.mxu0 %v665
    %835 = vmatprep.subr.bf16.mxu0 %v672
    %836 = vmatpush1.bf16.msra.mxu0 %v671
    %837 = vmatprep.subr.bf16.mxu0 %v678
    %838 = vmatpush1.bf16.msra.mxu0 %v677
    %839 = vmatprep.subr.bf16.mxu0 %v684
    %840 = vmatpush1.bf16.msra.mxu0 %v683
    %841 = vmatprep.subr.bf16.mxu0 %v690
    %842 = vmatpush1.bf16.msra.mxu0 %v689
    %843 = vmatprep.subr.bf16.mxu0 %v696
    %844 = vmatpush1.bf16.msra.mxu0 %v695
    %845 = vmatprep.subr.bf16.mxu0 %v702
    %846 = vmatpush1.bf16.msra.mxu0 %v701
    %847 = vmatprep.subr.bf16.mxu0 %v708
    %848 = vmatpush1.bf16.msra.mxu0 %v707
    %849 = vmatprep.subr.bf16.mxu0 %v714
    %850 = vmatpush1.bf16.msra.mxu0 %v713
    %851 = vmatprep.subr.bf16.mxu0 %v720
    %852 = vmatpush1.bf16.msra.mxu0 %v719
    %853 = vmatprep.mubr.bf16.mxu0 %v229
    %854 = vmatmul.mubr.bf16.gmra.mrb[0].mxu0 %v217
    %v855 = vpop.f32.mrb[0].mxu0
    %v856 = vadd.f32 0.0, %v855
    %v857 = vpop.f32.mrb[0].mxu0
    %v858 = vadd.f32 0.0, %v857
    %v859 = vpop.f32.mrb[0].mxu0
    %v860 = vadd.f32 0.0, %v859
    %v861 = vpop.f32.mrb[0].mxu0
    %v862 = vadd.f32 0.0, %v861
    %863 = vmatprep.mubr.bf16.mxu0 %v243
    %864 = vmatmul.mubr.bf16.gmra.mrb[0].mxu0 %v242
    %v865 = vpop.f32.mrb[0].mxu0
    %v866 = vadd.f32 0.0, %v865
    %v867 = vpop.f32.mrb[0].mxu0
    %v868 = vadd.f32 0.0, %v867
    %v869 = vpop.f32.mrb[0].mxu0
    %v870 = vadd.f32 0.0, %v869
    %v871 = vpop.f32.mrb[0].mxu0
    %v872 = vadd.f32 0.0, %v871
    %873 = vdwg.mxu0
    %874 = vmatprep.subr.bf16.mxu0 %v632
    %875 = vmatpush1.bf16.msra.mxu0 %v631
    %876 = vmatprep.subr.bf16.mxu0 %v638
    %877 = vmatpush1.bf16.msra.mxu0 %v637
    %878 = vmatprep.subr.bf16.mxu0 %v644
    %879 = vmatpush1.bf16.msra.mxu0 %v643
    %880 = vmatprep.subr.bf16.mxu0 %v650
    %881 = vmatpush1.bf16.msra.mxu0 %v649
    %882 = vmatprep.subr.bf16.mxu0 %v656
    %883 = vmatpush1.bf16.msra.mxu0 %v655
    %884 = vmatprep.subr.bf16.mxu0 %v662
    %885 = vmatpush1.bf16.msra.mxu0 %v661
    %886 = vmatprep.subr.bf16.mxu0 %v668
    %887 = vmatpush1.bf16.msra.mxu0 %v667
    %888 = vmatprep.subr.bf16.mxu0 %v674
    %889 = vmatpush1.bf16.msra.mxu0 %v673
    %890 = vmatprep.subr.bf16.mxu0 %v680
    %891 = vmatpush1.bf16.msra.mxu0 %v679
    %892 = vmatprep.subr.bf16.mxu0 %v686
    %893 = vmatpush1.bf16.msra.mxu0 %v685
    %894 = vmatprep.subr.bf16.mxu0 %v692
    %895 = vmatpush1.bf16.msra.mxu0 %v691
    %896 = vmatprep.subr.bf16.mxu0 %v698
    %897 = vmatpush1.bf16.msra.mxu0 %v697
    %898 = vmatprep.subr.bf16.mxu0 %v704
    %899 = vmatpush1.bf16.msra.mxu0 %v703
    %900 = vmatprep.subr.bf16.mxu0 %v710
    %901 = vmatpush1.bf16.msra.mxu0 %v709
    %902 = vmatprep.subr.bf16.mxu0 %v716
    %903 = vmatpush1.bf16.msra.mxu0 %v715
    %904 = vmatprep.subr.bf16.mxu0 %v722
    %905 = vmatpush1.bf16.msra.mxu0 %v721
    %906 = vmatprep.mubr.bf16.mxu0 %v229
    %907 = vmatmul.mubr.bf16.gmra.mrb[0].mxu0 %v217
    %v908 = vpop.f32.mrb[0].mxu0
    %v909 = vadd.f32 0.0, %v908
    %v910 = vpop.f32.mrb[0].mxu0
    %v911 = vadd.f32 0.0, %v910
    %v912 = vpop.f32.mrb[0].mxu0
    %v913 = vadd.f32 0.0, %v912
    %v914 = vpop.f32.mrb[0].mxu0
    %v915 = vadd.f32 0.0, %v914
    %916 = vmatprep.mubr.bf16.mxu0 %v243
    %917 = vmatmul.mubr.bf16.gmra.mrb[0].mxu0 %v242
    %v918 = vpop.f32.mrb[0].mxu0
    %v919 = vadd.f32 0.0, %v918
    %v920 = vpop.f32.mrb[0].mxu0
    %v921 = vadd.f32 0.0, %v920
    %v922 = vpop.f32.mrb[0].mxu0
    %v923 = vadd.f32 0.0, %v922
    %v924 = vpop.f32.mrb[0].mxu0
    %v925 = vadd.f32 0.0, %v924
    %926 = vdwg.mxu0
    %927 = vmatprep.subr.bf16.mxu0 %v634
    %928 = vmatpush1.bf16.msra.mxu0 %v633
    %929 = vmatprep.subr.bf16.mxu0 %v640
    %930 = vmatpush1.bf16.msra.mxu0 %v639
    %931 = vmatprep.subr.bf16.mxu0 %v646
    %932 = vmatpush1.bf16.msra.mxu0 %v645
    %933 = vmatprep.subr.bf16.mxu0 %v652
    %934 = vmatpush1.bf16.msra.mxu0 %v651
    %935 = vmatprep.subr.bf16.mxu0 %v658
    %936 = vmatpush1.bf16.msra.mxu0 %v657
    %937 = vmatprep.subr.bf16.mxu0 %v664
    %938 = vmatpush1.bf16.msra.mxu0 %v663
    %939 = vmatprep.subr.bf16.mxu0 %v670
    %940 = vmatpush1.bf16.msra.mxu0 %v669
    %941 = vmatprep.subr.bf16.mxu0 %v676
    %942 = vmatpush1.bf16.msra.mxu0 %v675
    %943 = vmatprep.subr.bf16.mxu0 %v682
    %944 = vmatpush1.bf16.msra.mxu0 %v681
    %945 = vmatprep.subr.bf16.mxu0 %v688
    %946 = vmatpush1.bf16.msra.mxu0 %v687
    %947 = vmatprep.subr.bf16.mxu0 %v694
    %948 = vmatpush1.bf16.msra.mxu0 %v693
    %949 = vmatprep.subr.bf16.mxu0 %v700
    %950 = vmatpush1.bf16.msra.mxu0 %v699
    %951 = vmatprep.subr.bf16.mxu0 %v706
    %952 = vmatpush1.bf16.msra.mxu0 %v705
    %953 = vmatprep.subr.bf16.mxu0 %v712
    %954 = vmatpush1.bf16.msra.mxu0 %v711
    %955 = vmatprep.subr.bf16.mxu0 %v718
    %956 = vmatpush1.bf16.msra.mxu0 %v717
    %957 = vmatprep.subr.bf16.mxu0 %v724
    %958 = vmatpush1.bf16.msra.mxu0 %v723
    %959 = vmatprep.mubr.bf16.mxu0 %v229
    %960 = vmatmul.mubr.bf16.gmra.mrb[0].mxu0 %v217
    %v961 = vpop.f32.mrb[0].mxu0
    %v962 = vadd.f32 0.0, %v961
    %v963 = vpop.f32.mrb[0].mxu0
    %v964 = vadd.f32 0.0, %v963
    %v965 = vpop.f32.mrb[0].mxu0
    %v966 = vadd.f32 0.0, %v965
    %v967 = vpop.f32.mrb[0].mxu0
    %v968 = vadd.f32 0.0, %v967
    %969 = vmatprep.mubr.bf16.mxu0 %v243
    %970 = vmatmul.mubr.bf16.gmra.mrb[0].mxu0 %v242
    %v971 = vpop.f32.mrb[0].mxu0
    %v972 = vadd.f32 0.0, %v971
    %v973 = vpop.f32.mrb[0].mxu0
    %v974 = vadd.f32 0.0, %v973
    %v975 = vpop.f32.mrb[0].mxu0
    %v976 = vadd.f32 0.0, %v975
    %v977 = vpop.f32.mrb[0].mxu0
    %v978 = vadd.f32 0.0, %v977
    %979 = vdwg.mxu0
    %v1080 = vunpack.c.l.b16 %v93
    %v1081 = vunpack.c.h.b16 %v93
    %v1082 = vunpack.c.l.b16 %v94
    %v1083 = vunpack.c.h.b16 %v94
    %v1084 = vunpack.c.l.b16 %v95
    %v1085 = vunpack.c.h.b16 %v95
    %v1086 = vunpack.c.l.b16 %v96
    %v1087 = vunpack.c.h.b16 %v96
    %v1088 = vunpack.c.l.b16 %v97
    %v1089 = vunpack.c.h.b16 %v97
    %v1090 = vunpack.c.l.b16 %v98
    %v1091 = vunpack.c.h.b16 %v98
    %v1092 = vunpack.c.l.b16 %v99
    %v1093 = vunpack.c.h.b16 %v99
    %v1094 = vunpack.c.l.b16 %v100
    %v1095 = vunpack.c.h.b16 %v100
    %v1096 = vunpack.c.l.b16 %v101
    %v1097 = vunpack.c.h.b16 %v101
    %v1098 = vunpack.c.l.b16 %v102
    %v1099 = vunpack.c.h.b16 %v102
    %v1100 = vunpack.c.l.b16 %v103
    %v1101 = vunpack.c.h.b16 %v103
    %v1102 = vunpack.c.l.b16 %v104
    %v1103 = vunpack.c.h.b16 %v104
    %v1104 = vunpack.c.l.b16 %v105
    %v1105 = vunpack.c.h.b16 %v105
    %v1106 = vunpack.c.l.b16 %v106
    %v1107 = vunpack.c.h.b16 %v106
    %v1108 = vunpack.c.l.b16 %v107
    %v1109 = vunpack.c.h.b16 %v107
    %v1110 = vunpack.c.l.b16 %v108
    %v1111 = vunpack.c.h.b16 %v108
    %v1112 = vunpack.c.l.b16 %v109
    %v1113 = vunpack.c.h.b16 %v109
    %v1114 = vunpack.c.l.b16 %v110
    %v1115 = vunpack.c.h.b16 %v110
    %v1116 = vunpack.c.l.b16 %v111
    %v1117 = vunpack.c.h.b16 %v111
    %v1118 = vunpack.c.l.b16 %v112
    %v1119 = vunpack.c.h.b16 %v112
    %v1120 = vunpack.c.l.b16 %v113
    %v1121 = vunpack.c.h.b16 %v113
    %v1122 = vunpack.c.l.b16 %v114
    %v1123 = vunpack.c.h.b16 %v114
    %v1124 = vunpack.c.l.b16 %v115
    %v1125 = vunpack.c.h.b16 %v115
    %v1126 = vunpack.c.l.b16 %v116
    %v1127 = vunpack.c.h.b16 %v116
    %v1128 = vunpack.c.l.b16 %v117
    %v1129 = vunpack.c.h.b16 %v117
    %v1130 = vunpack.c.l.b16 %v118
    %v1131 = vunpack.c.h.b16 %v118
    %v1132 = vunpack.c.l.b16 %v119
    %v1133 = vunpack.c.h.b16 %v119
    %v1134 = vunpack.c.l.b16 %v120
    %v1135 = vunpack.c.h.b16 %v120
    %v1136 = vunpack.c.l.b16 %v121
    %v1137 = vunpack.c.h.b16 %v121
    %v1138 = vunpack.c.l.b16 %v122
    %v1139 = vunpack.c.h.b16 %v122
    %v1140 = vunpack.c.l.b16 %v123
    %v1141 = vunpack.c.h.b16 %v123
    %v1142 = vunpack.c.l.b16 %v124
    %v1143 = vunpack.c.h.b16 %v124
    %v1144 = vunpack.c.l.b16 %v125
    %v1145 = vunpack.c.h.b16 %v125
    %v1146 = vunpack.c.l.b16 %v126
    %v1147 = vunpack.c.h.b16 %v126
    %v1148 = vunpack.c.l.b16 %v127
    %v1149 = vunpack.c.h.b16 %v127
    %v1150 = vunpack.c.l.b16 %v128
    %v1151 = vunpack.c.h.b16 %v128
    %v1152 = vunpack.c.l.b16 %v129
    %v1153 = vunpack.c.h.b16 %v129
    %v1154 = vunpack.c.l.b16 %v130
    %v1155 = vunpack.c.h.b16 %v130
    %v1156 = vunpack.c.l.b16 %v131
    %v1157 = vunpack.c.h.b16 %v131
    %v1158 = vunpack.c.l.b16 %v132
    %v1159 = vunpack.c.h.b16 %v132
    %v1160 = vunpack.c.l.b16 %v133
    %v1161 = vunpack.c.h.b16 %v133
    %v1162 = vunpack.c.l.b16 %v134
    %v1163 = vunpack.c.h.b16 %v134
    %v1164 = vunpack.c.l.b16 %v135
    %v1165 = vunpack.c.h.b16 %v135
    %v1166 = vunpack.c.l.b16 %v136
    %v1167 = vunpack.c.h.b16 %v136
    %v1168 = vunpack.c.l.b16 %v137
    %v1169 = vunpack.c.h.b16 %v137
    %v1170 = vunpack.c.l.b16 %v138
    %v1171 = vunpack.c.h.b16 %v138
    %v1172 = vunpack.c.l.b16 %v139
    %v1173 = vunpack.c.h.b16 %v139
    %v1174 = vunpack.c.l.b16 %v140
    %v1175 = vunpack.c.h.b16 %v140
    %v1176 = vunpack.c.l.b16 %v141
    %v1177 = vunpack.c.h.b16 %v141
    %v1178 = vunpack.c.l.b16 %v142
    %v1179 = vunpack.c.h.b16 %v142
    %v1180 = vunpack.c.l.b16 %v143
    %v1181 = vunpack.c.h.b16 %v143
    %v1182 = vunpack.c.l.b16 %v144
    %v1183 = vunpack.c.h.b16 %v144
    %v1184 = vunpack.c.l.b16 %v145
    %v1185 = vunpack.c.h.b16 %v145
    %v1186 = vunpack.c.l.b16 %v146
    %v1187 = vunpack.c.h.b16 %v146
    %v1188 = vunpack.c.l.b16 %v147
    %v1189 = vunpack.c.h.b16 %v147
    %v1190 = vunpack.c.l.b16 %v148
    %v1191 = vunpack.c.h.b16 %v148
    %v1192 = vunpack.c.l.b16 %v149
    %v1193 = vunpack.c.h.b16 %v149
    %v1194 = vunpack.c.l.b16 %v150
    %v1195 = vunpack.c.h.b16 %v150
    %v1196 = vunpack.c.l.b16 %v151
    %v1197 = vunpack.c.h.b16 %v151
    %v1198 = vunpack.c.l.b16 %v152
    %v1199 = vunpack.c.h.b16 %v152
    %v1200 = vunpack.c.l.b16 %v153
    %v1201 = vunpack.c.h.b16 %v153
    %v1202 = vunpack.c.l.b16 %v154
    %v1203 = vunpack.c.h.b16 %v154
    %v1204 = vunpack.c.l.b16 %v155
    %v1205 = vunpack.c.h.b16 %v155
    %v1206 = vunpack.c.l.b16 %v156
    %v1207 = vunpack.c.h.b16 %v156
    %v1208 = vunpack.c.l.b16 %v157
    %v1209 = vunpack.c.h.b16 %v157
    %v1210 = vunpack.c.l.b16 %v158
    %v1211 = vunpack.c.h.b16 %v158
    %v1212 = vunpack.c.l.b16 %v159
    %v1213 = vunpack.c.h.b16 %v159
    %v1214 = vunpack.c.l.b16 %v160
    %v1215 = vunpack.c.h.b16 %v160
    %v1216 = vunpack.c.l.b16 %v161
    %v1217 = vunpack.c.h.b16 %v161
    %v1218 = vunpack.c.l.b16 %v162
    %v1219 = vunpack.c.h.b16 %v162
    %v1220 = vunpack.c.l.b16 %v163
    %v1221 = vunpack.c.h.b16 %v163
    %v1222 = vunpack.c.l.b16 %v164
    %v1223 = vunpack.c.h.b16 %v164
    %v1224 = vunpack.c.l.b16 %v165
    %v1225 = vunpack.c.h.b16 %v165
    %v1226 = vunpack.c.l.b16 %v166
    %v1227 = vunpack.c.h.b16 %v166
    %v1228 = vunpack.c.l.b16 %v167
    %v1229 = vunpack.c.h.b16 %v167
    %v1230 = vunpack.c.l.b16 %v168
    %v1231 = vunpack.c.h.b16 %v168
    %v1232 = vunpack.c.l.b16 %v169
    %v1233 = vunpack.c.h.b16 %v169
    %v1234 = vunpack.c.l.b16 %v170
    %v1235 = vunpack.c.h.b16 %v170
    %v1236 = vunpack.c.l.b16 %v171
    %v1237 = vunpack.c.h.b16 %v171
    %v1238 = vunpack.c.l.b16 %v172
    %v1239 = vunpack.c.h.b16 %v172
    %v1240 = vunpack.c.l.b16 %v173
    %v1241 = vunpack.c.h.b16 %v173
    %v1242 = vunpack.c.l.b16 %v174
    %v1243 = vunpack.c.h.b16 %v174
    %v1244 = vunpack.c.l.b16 %v175
    %v1245 = vunpack.c.h.b16 %v175
    %v1246 = vunpack.c.l.b16 %v176
    %v1247 = vunpack.c.h.b16 %v176
    %v1248 = vunpack.c.l.b16 %v177
    %v1249 = vunpack.c.h.b16 %v177
    %v1250 = vunpack.c.l.b16 %v178
    %v1251 = vunpack.c.h.b16 %v178
    %v1252 = vunpack.c.l.b16 %v179
    %v1253 = vunpack.c.h.b16 %v179
    %v1254 = vunpack.c.l.b16 %v180
    %v1255 = vunpack.c.h.b16 %v180
    %v1256 = vunpack.c.l.b16 %v181
    %v1257 = vunpack.c.h.b16 %v181
    %v1258 = vunpack.c.l.b16 %v182
    %v1259 = vunpack.c.h.b16 %v182
    %v1260 = vunpack.c.l.b16 %v183
    %v1261 = vunpack.c.h.b16 %v183
    %v1262 = vunpack.c.l.b16 %v184
    %v1263 = vunpack.c.h.b16 %v184
    %v1264 = vunpack.c.l.b16 %v185
    %v1265 = vunpack.c.h.b16 %v185
    %v1266 = vunpack.c.l.b16 %v186
    %v1267 = vunpack.c.h.b16 %v186
    %v1268 = vunpack.c.l.b16 %v187
    %v1269 = vunpack.c.h.b16 %v187
    %v1270 = vunpack.c.l.b16 %v188
    %v1271 = vunpack.c.h.b16 %v188
    %v1272 = vpack.c.b16 %v1086, %v1080
    %v1273 = vpack.c.b16 %v1087, %v1081
    %v1274 = vpack.c.b16 %v1088, %v1082
    %v1275 = vpack.c.b16 %v1089, %v1083
    %v1276 = vpack.c.b16 %v1090, %v1084
    %v1277 = vpack.c.b16 %v1091, %v1085
    %v1278 = vpack.c.b16 %v1098, %v1092
    %v1279 = vpack.c.b16 %v1099, %v1093
    %v1280 = vpack.c.b16 %v1100, %v1094
    %v1281 = vpack.c.b16 %v1101, %v1095
    %v1282 = vpack.c.b16 %v1102, %v1096
    %v1283 = vpack.c.b16 %v1103, %v1097
    %v1284 = vpack.c.b16 %v1110, %v1104
    %v1285 = vpack.c.b16 %v1111, %v1105
    %v1286 = vpack.c.b16 %v1112, %v1106
    %v1287 = vpack.c.b16 %v1113, %v1107
    %v1288 = vpack.c.b16 %v1114, %v1108
    %v1289 = vpack.c.b16 %v1115, %v1109
    %v1290 = vpack.c.b16 %v1122, %v1116
    %v1291 = vpack.c.b16 %v1123, %v1117
    %v1292 = vpack.c.b16 %v1124, %v1118
    %v1293 = vpack.c.b16 %v1125, %v1119
    %v1294 = vpack.c.b16 %v1126, %v1120
    %v1295 = vpack.c.b16 %v1127, %v1121
    %v1296 = vpack.c.b16 %v1134, %v1128
    %v1297 = vpack.c.b16 %v1135, %v1129
    %v1298 = vpack.c.b16 %v1136, %v1130
    %v1299 = vpack.c.b16 %v1137, %v1131
    %v1300 = vpack.c.b16 %v1138, %v1132
    %v1301 = vpack.c.b16 %v1139, %v1133
    %v1302 = vpack.c.b16 %v1146, %v1140
    %v1303 = vpack.c.b16 %v1147, %v1141
    %v1304 = vpack.c.b16 %v1148, %v1142
    %v1305 = vpack.c.b16 %v1149, %v1143
    %v1306 = vpack.c.b16 %v1150, %v1144
    %v1307 = vpack.c.b16 %v1151, %v1145
    %v1308 = vpack.c.b16 %v1158, %v1152
    %v1309 = vpack.c.b16 %v1159, %v1153
    %v1310 = vpack.c.b16 %v1160, %v1154
    %v1311 = vpack.c.b16 %v1161, %v1155
    %v1312 = vpack.c.b16 %v1162, %v1156
    %v1313 = vpack.c.b16 %v1163, %v1157
    %v1314 = vpack.c.b16 %v1170, %v1164
    %v1315 = vpack.c.b16 %v1171, %v1165
    %v1316 = vpack.c.b16 %v1172, %v1166
    %v1317 = vpack.c.b16 %v1173, %v1167
    %v1318 = vpack.c.b16 %v1174, %v1168
    %v1319 = vpack.c.b16 %v1175, %v1169
    %v1320 = vpack.c.b16 %v1182, %v1176
    %v1321 = vpack.c.b16 %v1183, %v1177
    %v1322 = vpack.c.b16 %v1184, %v1178
    %v1323 = vpack.c.b16 %v1185, %v1179
    %v1324 = vpack.c.b16 %v1186, %v1180
    %v1325 = vpack.c.b16 %v1187, %v1181
    %v1326 = vpack.c.b16 %v1194, %v1188
    %v1327 = vpack.c.b16 %v1195, %v1189
    %v1328 = vpack.c.b16 %v1196, %v1190
    %v1329 = vpack.c.b16 %v1197, %v1191
    %v1330 = vpack.c.b16 %v1198, %v1192
    %v1331 = vpack.c.b16 %v1199, %v1193
    %v1332 = vpack.c.b16 %v1206, %v1200
    %v1333 = vpack.c.b16 %v1207, %v1201
    %v1334 = vpack.c.b16 %v1208, %v1202
    %v1335 = vpack.c.b16 %v1209, %v1203
    %v1336 = vpack.c.b16 %v1210, %v1204
    %v1337 = vpack.c.b16 %v1211, %v1205
    %v1338 = vpack.c.b16 %v1218, %v1212
    %v1339 = vpack.c.b16 %v1219, %v1213
    %v1340 = vpack.c.b16 %v1220, %v1214
    %v1341 = vpack.c.b16 %v1221, %v1215
    %v1342 = vpack.c.b16 %v1222, %v1216
    %v1343 = vpack.c.b16 %v1223, %v1217
    %v1344 = vpack.c.b16 %v1230, %v1224
    %v1345 = vpack.c.b16 %v1231, %v1225
    %v1346 = vpack.c.b16 %v1232, %v1226
    %v1347 = vpack.c.b16 %v1233, %v1227
    %v1348 = vpack.c.b16 %v1234, %v1228
    %v1349 = vpack.c.b16 %v1235, %v1229
    %v1350 = vpack.c.b16 %v1242, %v1236
    %v1351 = vpack.c.b16 %v1243, %v1237
    %v1352 = vpack.c.b16 %v1244, %v1238
    %v1353 = vpack.c.b16 %v1245, %v1239
    %v1354 = vpack.c.b16 %v1246, %v1240
    %v1355 = vpack.c.b16 %v1247, %v1241
    %v1356 = vpack.c.b16 %v1254, %v1248
    %v1357 = vpack.c.b16 %v1255, %v1249
    %v1358 = vpack.c.b16 %v1256, %v1250
    %v1359 = vpack.c.b16 %v1257, %v1251
    %v1360 = vpack.c.b16 %v1258, %v1252
    %v1361 = vpack.c.b16 %v1259, %v1253
    %v1362 = vpack.c.b16 %v1266, %v1260
    %v1363 = vpack.c.b16 %v1267, %v1261
    %v1364 = vpack.c.b16 %v1268, %v1262
    %v1365 = vpack.c.b16 %v1269, %v1263
    %v1366 = vpack.c.b16 %v1270, %v1264
    %v1367 = vpack.c.b16 %v1271, %v1265
    %1464 = vmatprep.subr.bf16.mxu0 %v1273
    %1465 = vmatpush1.bf16.msra.mxu0 %v1272
    %1466 = vmatprep.subr.bf16.mxu0 %v1279
    %1467 = vmatpush1.bf16.msra.mxu0 %v1278
    %1468 = vmatprep.subr.bf16.mxu0 %v1285
    %1469 = vmatpush1.bf16.msra.mxu0 %v1284
    %1470 = vmatprep.subr.bf16.mxu0 %v1291
    %1471 = vmatpush1.bf16.msra.mxu0 %v1290
    %1472 = vmatprep.subr.bf16.mxu0 %v1297
    %1473 = vmatpush1.bf16.msra.mxu0 %v1296
    %1474 = vmatprep.subr.bf16.mxu0 %v1303
    %1475 = vmatpush1.bf16.msra.mxu0 %v1302
    %1476 = vmatprep.subr.bf16.mxu0 %v1309
    %1477 = vmatpush1.bf16.msra.mxu0 %v1308
    %1478 = vmatprep.subr.bf16.mxu0 %v1315
    %1479 = vmatpush1.bf16.msra.mxu0 %v1314
    %1480 = vmatprep.subr.bf16.mxu0 %v1321
    %1481 = vmatpush1.bf16.msra.mxu0 %v1320
    %1482 = vmatprep.subr.bf16.mxu0 %v1327
    %1483 = vmatpush1.bf16.msra.mxu0 %v1326
    %1484 = vmatprep.subr.bf16.mxu0 %v1333
    %1485 = vmatpush1.bf16.msra.mxu0 %v1332
    %1486 = vmatprep.subr.bf16.mxu0 %v1339
    %1487 = vmatpush1.bf16.msra.mxu0 %v1338
    %1488 = vmatprep.subr.bf16.mxu0 %v1345
    %1489 = vmatpush1.bf16.msra.mxu0 %v1344
    %1490 = vmatprep.subr.bf16.mxu0 %v1351
    %1491 = vmatpush1.bf16.msra.mxu0 %v1350
    %1492 = vmatprep.subr.bf16.mxu0 %v1357
    %1493 = vmatpush1.bf16.msra.mxu0 %v1356
    %1494 = vmatprep.subr.bf16.mxu0 %v1363
    %1495 = vmatpush1.bf16.msra.mxu0 %v1362
    %1496 = vmatprep.mubr.bf16.mxu0 %v202
    %1497 = vmatmul.mubr.bf16.gmra.mrb[0].mxu0 %v201
    %v1498 = vpop.f32.mrb[0].mxu0
    %v1499 = vadd.f32 %v856, %v1498
    %v1500 = vpop.f32.mrb[0].mxu0
    %v1501 = vadd.f32 %v858, %v1500
    %v1502 = vpop.f32.mrb[0].mxu0
    %v1503 = vadd.f32 %v860, %v1502
    %v1504 = vpop.f32.mrb[0].mxu0
    %v1505 = vadd.f32 %v862, %v1504
    %1506 = vmatprep.mubr.bf16.mxu0 %v204
    %1507 = vmatmul.mubr.bf16.gmra.mrb[0].mxu0 %v203
    %v1508 = vpop.f32.mrb[0].mxu0
    %v1509 = vadd.f32 %v866, %v1508
    %v1510 = vpop.f32.mrb[0].mxu0
    %v1511 = vadd.f32 %v868, %v1510
    %v1512 = vpop.f32.mrb[0].mxu0
    %v1513 = vadd.f32 %v870, %v1512
    %v1514 = vpop.f32.mrb[0].mxu0
    %v1515 = vadd.f32 %v872, %v1514
    %1516 = vdwg.mxu0
    %1517 = vmatprep.subr.bf16.mxu0 %v1275
    %1518 = vmatpush1.bf16.msra.mxu0 %v1274
    %1519 = vmatprep.subr.bf16.mxu0 %v1281
    %1520 = vmatpush1.bf16.msra.mxu0 %v1280
    %1521 = vmatprep.subr.bf16.mxu0 %v1287
    %1522 = vmatpush1.bf16.msra.mxu0 %v1286
    %1523 = vmatprep.subr.bf16.mxu0 %v1293
    %1524 = vmatpush1.bf16.msra.mxu0 %v1292
    %1525 = vmatprep.subr.bf16.mxu0 %v1299
    %1526 = vmatpush1.bf16.msra.mxu0 %v1298
    %1527 = vmatprep.subr.bf16.mxu0 %v1305
    %1528 = vmatpush1.bf16.msra.mxu0 %v1304
    %1529 = vmatprep.subr.bf16.mxu0 %v1311
    %1530 = vmatpush1.bf16.msra.mxu0 %v1310
    %1531 = vmatprep.subr.bf16.mxu0 %v1317
    %1532 = vmatpush1.bf16.msra.mxu0 %v1316
    %1533 = vmatprep.subr.bf16.mxu0 %v1323
    %1534 = vmatpush1.bf16.msra.mxu0 %v1322
    %1535 = vmatprep.subr.bf16.mxu0 %v1329
    %1536 = vmatpush1.bf16.msra.mxu0 %v1328
    %1537 = vmatprep.subr.bf16.mxu0 %v1335
    %1538 = vmatpush1.bf16.msra.mxu0 %v1334
    %1539 = vmatprep.subr.bf16.mxu0 %v1341
    %1540 = vmatpush1.bf16.msra.mxu0 %v1340
    %1541 = vmatprep.subr.bf16.mxu0 %v1347
    %1542 = vmatpush1.bf16.msra.mxu0 %v1346
    %1543 = vmatprep.subr.bf16.mxu0 %v1353
    %1544 = vmatpush1.bf16.msra.mxu0 %v1352
    %1545 = vmatprep.subr.bf16.mxu0 %v1359
    %1546 = vmatpush1.bf16.msra.mxu0 %v1358
    %1547 = vmatprep.subr.bf16.mxu0 %v1365
    %1548 = vmatpush1.bf16.msra.mxu0 %v1364
    %1549 = vmatprep.mubr.bf16.mxu0 %v202
    %1550 = vmatmul.mubr.bf16.gmra.mrb[0].mxu0 %v201
    %v1551 = vpop.f32.mrb[0].mxu0
    %v1552 = vadd.f32 %v909, %v1551
    %v1553 = vpop.f32.mrb[0].mxu0
    %v1554 = vadd.f32 %v911, %v1553
    %v1555 = vpop.f32.mrb[0].mxu0
    %v1556 = vadd.f32 %v913, %v1555
    %v1557 = vpop.f32.mrb[0].mxu0
    %v1558 = vadd.f32 %v915, %v1557
    %1559 = vmatprep.mubr.bf16.mxu0 %v204
    %1560 = vmatmul.mubr.bf16.gmra.mrb[0].mxu0 %v203
    %v1561 = vpop.f32.mrb[0].mxu0
    %v1562 = vadd.f32 %v919, %v1561
    %v1563 = vpop.f32.mrb[0].mxu0
    %v1564 = vadd.f32 %v921, %v1563
    %v1565 = vpop.f32.mrb[0].mxu0
    %v1566 = vadd.f32 %v923, %v1565
    %v1567 = vpop.f32.mrb[0].mxu0
    %v1568 = vadd.f32 %v925, %v1567
    %1569 = vdwg.mxu0
    %1570 = vmatprep.subr.bf16.mxu0 %v1277
    %1571 = vmatpush1.bf16.msra.mxu0 %v1276
    %1572 = vmatprep.subr.bf16.mxu0 %v1283
    %1573 = vmatpush1.bf16.msra.mxu0 %v1282
    %1574 = vmatprep.subr.bf16.mxu0 %v1289
    %1575 = vmatpush1.bf16.msra.mxu0 %v1288
    %1576 = vmatprep.subr.bf16.mxu0 %v1295
    %1577 = vmatpush1.bf16.msra.mxu0 %v1294
    %1578 = vmatprep.subr.bf16.mxu0 %v1301
    %1579 = vmatpush1.bf16.msra.mxu0 %v1300
    %1580 = vmatprep.subr.bf16.mxu0 %v1307
    %1581 = vmatpush1.bf16.msra.mxu0 %v1306
    %1582 = vmatprep.subr.bf16.mxu0 %v1313
    %1583 = vmatpush1.bf16.msra.mxu0 %v1312
    %1584 = vmatprep.subr.bf16.mxu0 %v1319
    %1585 = vmatpush1.bf16.msra.mxu0 %v1318
    %1586 = vmatprep.subr.bf16.mxu0 %v1325
    %1587 = vmatpush1.bf16.msra.mxu0 %v1324
    %1588 = vmatprep.subr.bf16.mxu0 %v1331
    %1589 = vmatpush1.bf16.msra.mxu0 %v1330
    %1590 = vmatprep.subr.bf16.mxu0 %v1337
    %1591 = vmatpush1.bf16.msra.mxu0 %v1336
    %1592 = vmatprep.subr.bf16.mxu0 %v1343
    %1593 = vmatpush1.bf16.msra.mxu0 %v1342
    %1594 = vmatprep.subr.bf16.mxu0 %v1349
    %1595 = vmatpush1.bf16.msra.mxu0 %v1348
    %1596 = vmatprep.subr.bf16.mxu0 %v1355
    %1597 = vmatpush1.bf16.msra.mxu0 %v1354
    %1598 = vmatprep.subr.bf16.mxu0 %v1361
    %1599 = vmatpush1.bf16.msra.mxu0 %v1360
    %1600 = vmatprep.subr.bf16.mxu0 %v1367
    %1601 = vmatpush1.bf16.msra.mxu0 %v1366
    %1602 = vmatprep.mubr.bf16.mxu0 %v202
    %1603 = vmatmul.mubr.bf16.gmra.mrb[0].mxu0 %v201
    %v1604 = vpop.f32.mrb[0].mxu0
    %v1605 = vadd.f32 %v962, %v1604
    %v1606 = vpop.f32.mrb[0].mxu0
    %v1607 = vadd.f32 %v964, %v1606
    %v1608 = vpop.f32.mrb[0].mxu0
    %v1609 = vadd.f32 %v966, %v1608
    %v1610 = vpop.f32.mrb[0].mxu0
    %v1611 = vadd.f32 %v968, %v1610
    %1612 = vmatprep.mubr.bf16.mxu0 %v204
    %1613 = vmatmul.mubr.bf16.gmra.mrb[0].mxu0 %v203
    %v1614 = vpop.f32.mrb[0].mxu0
    %v1615 = vadd.f32 %v972, %v1614
    %v1616 = vpop.f32.mrb[0].mxu0
    %v1617 = vadd.f32 %v974, %v1616
    %v1618 = vpop.f32.mrb[0].mxu0
    %v1619 = vadd.f32 %v976, %v1618
    %v1620 = vpop.f32.mrb[0].mxu0
    %v1621 = vadd.f32 %v978, %v1620
    %1622 = vdwg.mxu0
    %vm1623 = vcmask 1046528
    %v1624 = vrot.slane %v201, 1
    %v1625 = vrot.slane %v203, 1
    %v1626 = vsel %vm1623, %v1624, %v1625
    %v1627 = vrot.slane %v202, 1
    %v1628 = vrot.slane %v204, 1
    %v1629 = vsel %vm1623, %v1627, %v1628
    %vm1632 = vcmask 1046528
    %v1635 = vsel %vm1632, %v1625, 0
    %v1638 = vsel %vm1632, %v1628, 0
    %s1640 = scalar_lea.vmem [#allocation5], 1536
    %v1641 = vld [vmem:[%s1640] sm:$0xff]
    %v1642 = vld [vmem:[%s1640 + $0x8] sm:$0xff]
    %v1643 = vld [vmem:[%s1640 + $0x10] sm:$0xff]
    %v1644 = vld [vmem:[%s1640 + $0x18] sm:$0xff]
    %v1645 = vld [vmem:[%s1640 + $0x20] sm:$0xff]
    %v1646 = vld [vmem:[%s1640 + $0x28] sm:$0xff]
    %v1647 = vld [vmem:[%s1640 + $0x30] sm:$0xff]
    %v1648 = vld [vmem:[%s1640 + $0x38] sm:$0xff]
    %v1649 = vld [vmem:[%s1640 + $0x40] sm:$0xff]
    %v1650 = vld [vmem:[%s1640 + $0x48] sm:$0xff]
    %v1651 = vld [vmem:[%s1640 + $0x50] sm:$0xff]
    %v1652 = vld [vmem:[%s1640 + $0x58] sm:$0xff]
    %v1653 = vld [vmem:[%s1640 + $0x60] sm:$0xff]
    %v1654 = vld [vmem:[%s1640 + $0x68] sm:$0xff]
    %v1655 = vld [vmem:[%s1640 + $0x70] sm:$0xff]
    %v1656 = vld [vmem:[%s1640 + $0x78] sm:$0xff]
    %v1657 = vld [vmem:[%s1640 + $0x80] sm:$0xff]
    %v1658 = vld [vmem:[%s1640 + $0x88] sm:$0xff]
    %v1659 = vld [vmem:[%s1640 + $0x90] sm:$0xff]
    %v1660 = vld [vmem:[%s1640 + $0x98] sm:$0xff]
    %v1661 = vld [vmem:[%s1640 + $0xa0] sm:$0xff]
    %v1662 = vld [vmem:[%s1640 + $0xa8] sm:$0xff]
    %v1663 = vld [vmem:[%s1640 + $0xb0] sm:$0xff]
    %v1664 = vld [vmem:[%s1640 + $0xb8] sm:$0xff]
    %v1665 = vld [vmem:[%s1640 + $0xc0] sm:$0xff]
    %v1666 = vld [vmem:[%s1640 + $0xc8] sm:$0xff]
    %v1667 = vld [vmem:[%s1640 + $0xd0] sm:$0xff]
    %v1668 = vld [vmem:[%s1640 + $0xd8] sm:$0xff]
    %v1669 = vld [vmem:[%s1640 + $0xe0] sm:$0xff]
    %v1670 = vld [vmem:[%s1640 + $0xe8] sm:$0xff]
    %v1671 = vld [vmem:[%s1640 + $0xf0] sm:$0xff]
    %v1672 = vld [vmem:[%s1640 + $0xf8] sm:$0xff]
    %v1673 = vld [vmem:[%s1640 + $0x100] sm:$0xff]
    %v1674 = vld [vmem:[%s1640 + $0x108] sm:$0xff]
    %v1675 = vld [vmem:[%s1640 + $0x110] sm:$0xff]
    %v1676 = vld [vmem:[%s1640 + $0x118] sm:$0xff]
    %v1677 = vld [vmem:[%s1640 + $0x120] sm:$0xff]
    %v1678 = vld [vmem:[%s1640 + $0x128] sm:$0xff]
    %v1679 = vld [vmem:[%s1640 + $0x130] sm:$0xff]
    %v1680 = vld [vmem:[%s1640 + $0x138] sm:$0xff]
    %v1681 = vld [vmem:[%s1640 + $0x140] sm:$0xff]
    %v1682 = vld [vmem:[%s1640 + $0x148] sm:$0xff]
    %v1683 = vld [vmem:[%s1640 + $0x150] sm:$0xff]
    %v1684 = vld [vmem:[%s1640 + $0x158] sm:$0xff]
    %v1685 = vld [vmem:[%s1640 + $0x160] sm:$0xff]
    %v1686 = vld [vmem:[%s1640 + $0x168] sm:$0xff]
    %v1687 = vld [vmem:[%s1640 + $0x170] sm:$0xff]
    %v1688 = vld [vmem:[%s1640 + $0x178] sm:$0xff]
    %v1689 = vld [vmem:[%s1640 + $0x180] sm:$0xff]
    %v1690 = vld [vmem:[%s1640 + $0x188] sm:$0xff]
    %v1691 = vld [vmem:[%s1640 + $0x190] sm:$0xff]
    %v1692 = vld [vmem:[%s1640 + $0x198] sm:$0xff]
    %v1693 = vld [vmem:[%s1640 + $0x1a0] sm:$0xff]
    %v1694 = vld [vmem:[%s1640 + $0x1a8] sm:$0xff]
    %v1695 = vld [vmem:[%s1640 + $0x1b0] sm:$0xff]
    %v1696 = vld [vmem:[%s1640 + $0x1b8] sm:$0xff]
    %v1697 = vld [vmem:[%s1640 + $0x1c0] sm:$0xff]
    %v1698 = vld [vmem:[%s1640 + $0x1c8] sm:$0xff]
    %v1699 = vld [vmem:[%s1640 + $0x1d0] sm:$0xff]
    %v1700 = vld [vmem:[%s1640 + $0x1d8] sm:$0xff]
    %v1701 = vld [vmem:[%s1640 + $0x1e0] sm:$0xff]
    %v1702 = vld [vmem:[%s1640 + $0x1e8] sm:$0xff]
    %v1703 = vld [vmem:[%s1640 + $0x1f0] sm:$0xff]
    %v1704 = vld [vmem:[%s1640 + $0x1f8] sm:$0xff]
    %v1705 = vld [vmem:[%s1640 + $0x200] sm:$0xff]
    %v1706 = vld [vmem:[%s1640 + $0x208] sm:$0xff]
    %v1707 = vld [vmem:[%s1640 + $0x210] sm:$0xff]
    %v1708 = vld [vmem:[%s1640 + $0x218] sm:$0xff]
    %v1709 = vld [vmem:[%s1640 + $0x220] sm:$0xff]
    %v1710 = vld [vmem:[%s1640 + $0x228] sm:$0xff]
    %v1711 = vld [vmem:[%s1640 + $0x230] sm:$0xff]
    %v1712 = vld [vmem:[%s1640 + $0x238] sm:$0xff]
    %v1713 = vld [vmem:[%s1640 + $0x240] sm:$0xff]
    %v1714 = vld [vmem:[%s1640 + $0x248] sm:$0xff]
    %v1715 = vld [vmem:[%s1640 + $0x250] sm:$0xff]
    %v1716 = vld [vmem:[%s1640 + $0x258] sm:$0xff]
    %v1717 = vld [vmem:[%s1640 + $0x260] sm:$0xff]
    %v1718 = vld [vmem:[%s1640 + $0x268] sm:$0xff]
    %v1719 = vld [vmem:[%s1640 + $0x270] sm:$0xff]
    %v1720 = vld [vmem:[%s1640 + $0x278] sm:$0xff]
    %v1721 = vld [vmem:[%s1640 + $0x280] sm:$0xff]
    %v1722 = vld [vmem:[%s1640 + $0x288] sm:$0xff]
    %v1723 = vld [vmem:[%s1640 + $0x290] sm:$0xff]
    %v1724 = vld [vmem:[%s1640 + $0x298] sm:$0xff]
    %v1725 = vld [vmem:[%s1640 + $0x2a0] sm:$0xff]
    %v1726 = vld [vmem:[%s1640 + $0x2a8] sm:$0xff]
    %v1727 = vld [vmem:[%s1640 + $0x2b0] sm:$0xff]
    %v1728 = vld [vmem:[%s1640 + $0x2b8] sm:$0xff]
    %v1729 = vld [vmem:[%s1640 + $0x2c0] sm:$0xff]
    %v1730 = vld [vmem:[%s1640 + $0x2c8] sm:$0xff]
    %v1731 = vld [vmem:[%s1640 + $0x2d0] sm:$0xff]
    %v1732 = vld [vmem:[%s1640 + $0x2d8] sm:$0xff]
    %v1733 = vld [vmem:[%s1640 + $0x2e0] sm:$0xff]
    %v1734 = vld [vmem:[%s1640 + $0x2e8] sm:$0xff]
    %v1735 = vld [vmem:[%s1640 + $0x2f0] sm:$0xff]
    %v1736 = vld [vmem:[%s1640 + $0x2f8] sm:$0xff]
    %v1833 = vunpack.c.l.b16 %v1641
    %v1834 = vunpack.c.h.b16 %v1641
    %v1835 = vunpack.c.l.b16 %v1642
    %v1836 = vunpack.c.h.b16 %v1642
    %v1837 = vunpack.c.l.b16 %v1643
    %v1838 = vunpack.c.h.b16 %v1643
    %v1839 = vunpack.c.l.b16 %v1644
    %v1840 = vunpack.c.h.b16 %v1644
    %v1841 = vunpack.c.l.b16 %v1645
    %v1842 = vunpack.c.h.b16 %v1645
    %v1843 = vunpack.c.l.b16 %v1646
    %v1844 = vunpack.c.h.b16 %v1646
    %v1845 = vunpack.c.l.b16 %v1647
    %v1846 = vunpack.c.h.b16 %v1647
    %v1847 = vunpack.c.l.b16 %v1648
    %v1848 = vunpack.c.h.b16 %v1648
    %v1849 = vunpack.c.l.b16 %v1649
    %v1850 = vunpack.c.h.b16 %v1649
    %v1851 = vunpack.c.l.b16 %v1650
    %v1852 = vunpack.c.h.b16 %v1650
    %v1853 = vunpack.c.l.b16 %v1651
    %v1854 = vunpack.c.h.b16 %v1651
    %v1855 = vunpack.c.l.b16 %v1652
    %v1856 = vunpack.c.h.b16 %v1652
    %v1857 = vunpack.c.l.b16 %v1653
    %v1858 = vunpack.c.h.b16 %v1653
    %v1859 = vunpack.c.l.b16 %v1654
    %v1860 = vunpack.c.h.b16 %v1654
    %v1861 = vunpack.c.l.b16 %v1655
    %v1862 = vunpack.c.h.b16 %v1655
    %v1863 = vunpack.c.l.b16 %v1656
    %v1864 = vunpack.c.h.b16 %v1656
    %v1865 = vunpack.c.l.b16 %v1657
    %v1866 = vunpack.c.h.b16 %v1657
    %v1867 = vunpack.c.l.b16 %v1658
    %v1868 = vunpack.c.h.b16 %v1658
    %v1869 = vunpack.c.l.b16 %v1659
    %v1870 = vunpack.c.h.b16 %v1659
    %v1871 = vunpack.c.l.b16 %v1660
    %v1872 = vunpack.c.h.b16 %v1660
    %v1873 = vunpack.c.l.b16 %v1661
    %v1874 = vunpack.c.h.b16 %v1661
    %v1875 = vunpack.c.l.b16 %v1662
    %v1876 = vunpack.c.h.b16 %v1662
    %v1877 = vunpack.c.l.b16 %v1663
    %v1878 = vunpack.c.h.b16 %v1663
    %v1879 = vunpack.c.l.b16 %v1664
    %v1880 = vunpack.c.h.b16 %v1664
    %v1881 = vunpack.c.l.b16 %v1665
    %v1882 = vunpack.c.h.b16 %v1665
    %v1883 = vunpack.c.l.b16 %v1666
    %v1884 = vunpack.c.h.b16 %v1666
    %v1885 = vunpack.c.l.b16 %v1667
    %v1886 = vunpack.c.h.b16 %v1667
    %v1887 = vunpack.c.l.b16 %v1668
    %v1888 = vunpack.c.h.b16 %v1668
    %v1889 = vunpack.c.l.b16 %v1669
    %v1890 = vunpack.c.h.b16 %v1669
    %v1891 = vunpack.c.l.b16 %v1670
    %v1892 = vunpack.c.h.b16 %v1670
    %v1893 = vunpack.c.l.b16 %v1671
    %v1894 = vunpack.c.h.b16 %v1671
    %v1895 = vunpack.c.l.b16 %v1672
    %v1896 = vunpack.c.h.b16 %v1672
    %v1897 = vunpack.c.l.b16 %v1673
    %v1898 = vunpack.c.h.b16 %v1673
    %v1899 = vunpack.c.l.b16 %v1674
    %v1900 = vunpack.c.h.b16 %v1674
    %v1901 = vunpack.c.l.b16 %v1675
    %v1902 = vunpack.c.h.b16 %v1675
    %v1903 = vunpack.c.l.b16 %v1676
    %v1904 = vunpack.c.h.b16 %v1676
    %v1905 = vunpack.c.l.b16 %v1677
    %v1906 = vunpack.c.h.b16 %v1677
    %v1907 = vunpack.c.l.b16 %v1678
    %v1908 = vunpack.c.h.b16 %v1678
    %v1909 = vunpack.c.l.b16 %v1679
    %v1910 = vunpack.c.h.b16 %v1679
    %v1911 = vunpack.c.l.b16 %v1680
    %v1912 = vunpack.c.h.b16 %v1680
    %v1913 = vunpack.c.l.b16 %v1681
    %v1914 = vunpack.c.h.b16 %v1681
    %v1915 = vunpack.c.l.b16 %v1682
    %v1916 = vunpack.c.h.b16 %v1682
    %v1917 = vunpack.c.l.b16 %v1683
    %v1918 = vunpack.c.h.b16 %v1683
    %v1919 = vunpack.c.l.b16 %v1684
    %v1920 = vunpack.c.h.b16 %v1684
    %v1921 = vunpack.c.l.b16 %v1685
    %v1922 = vunpack.c.h.b16 %v1685
    %v1923 = vunpack.c.l.b16 %v1686
    %v1924 = vunpack.c.h.b16 %v1686
    %v1925 = vunpack.c.l.b16 %v1687
    %v1926 = vunpack.c.h.b16 %v1687
    %v1927 = vunpack.c.l.b16 %v1688
    %v1928 = vunpack.c.h.b16 %v1688
    %v1929 = vunpack.c.l.b16 %v1689
    %v1930 = vunpack.c.h.b16 %v1689
    %v1931 = vunpack.c.l.b16 %v1690
    %v1932 = vunpack.c.h.b16 %v1690
    %v1933 = vunpack.c.l.b16 %v1691
    %v1934 = vunpack.c.h.b16 %v1691
    %v1935 = vunpack.c.l.b16 %v1692
    %v1936 = vunpack.c.h.b16 %v1692
    %v1937 = vunpack.c.l.b16 %v1693
    %v1938 = vunpack.c.h.b16 %v1693
    %v1939 = vunpack.c.l.b16 %v1694
    %v1940 = vunpack.c.h.b16 %v1694
    %v1941 = vunpack.c.l.b16 %v1695
    %v1942 = vunpack.c.h.b16 %v1695
    %v1943 = vunpack.c.l.b16 %v1696
    %v1944 = vunpack.c.h.b16 %v1696
    %v1945 = vunpack.c.l.b16 %v1697
    %v1946 = vunpack.c.h.b16 %v1697
    %v1947 = vunpack.c.l.b16 %v1698
    %v1948 = vunpack.c.h.b16 %v1698
    %v1949 = vunpack.c.l.b16 %v1699
    %v1950 = vunpack.c.h.b16 %v1699
    %v1951 = vunpack.c.l.b16 %v1700
    %v1952 = vunpack.c.h.b16 %v1700
    %v1953 = vunpack.c.l.b16 %v1701
    %v1954 = vunpack.c.h.b16 %v1701
    %v1955 = vunpack.c.l.b16 %v1702
    %v1956 = vunpack.c.h.b16 %v1702
    %v1957 = vunpack.c.l.b16 %v1703
    %v1958 = vunpack.c.h.b16 %v1703
    %v1959 = vunpack.c.l.b16 %v1704
    %v1960 = vunpack.c.h.b16 %v1704
    %v1961 = vunpack.c.l.b16 %v1705
    %v1962 = vunpack.c.h.b16 %v1705
    %v1963 = vunpack.c.l.b16 %v1706
    %v1964 = vunpack.c.h.b16 %v1706
    %v1965 = vunpack.c.l.b16 %v1707
    %v1966 = vunpack.c.h.b16 %v1707
    %v1967 = vunpack.c.l.b16 %v1708
    %v1968 = vunpack.c.h.b16 %v1708
    %v1969 = vunpack.c.l.b16 %v1709
    %v1970 = vunpack.c.h.b16 %v1709
    %v1971 = vunpack.c.l.b16 %v1710
    %v1972 = vunpack.c.h.b16 %v1710
    %v1973 = vunpack.c.l.b16 %v1711
    %v1974 = vunpack.c.h.b16 %v1711
    %v1975 = vunpack.c.l.b16 %v1712
    %v1976 = vunpack.c.h.b16 %v1712
    %v1977 = vunpack.c.l.b16 %v1713
    %v1978 = vunpack.c.h.b16 %v1713
    %v1979 = vunpack.c.l.b16 %v1714
    %v1980 = vunpack.c.h.b16 %v1714
    %v1981 = vunpack.c.l.b16 %v1715
    %v1982 = vunpack.c.h.b16 %v1715
    %v1983 = vunpack.c.l.b16 %v1716
    %v1984 = vunpack.c.h.b16 %v1716
    %v1985 = vunpack.c.l.b16 %v1717
    %v1986 = vunpack.c.h.b16 %v1717
    %v1987 = vunpack.c.l.b16 %v1718
    %v1988 = vunpack.c.h.b16 %v1718
    %v1989 = vunpack.c.l.b16 %v1719
    %v1990 = vunpack.c.h.b16 %v1719
    %v1991 = vunpack.c.l.b16 %v1720
    %v1992 = vunpack.c.h.b16 %v1720
    %v1993 = vunpack.c.l.b16 %v1721
    %v1994 = vunpack.c.h.b16 %v1721
    %v1995 = vunpack.c.l.b16 %v1722
    %v1996 = vunpack.c.h.b16 %v1722
    %v1997 = vunpack.c.l.b16 %v1723
    %v1998 = vunpack.c.h.b16 %v1723
    %v1999 = vunpack.c.l.b16 %v1724
    %v2000 = vunpack.c.h.b16 %v1724
    %v2001 = vunpack.c.l.b16 %v1725
    %v2002 = vunpack.c.h.b16 %v1725
    %v2003 = vunpack.c.l.b16 %v1726
    %v2004 = vunpack.c.h.b16 %v1726
    %v2005 = vunpack.c.l.b16 %v1727
    %v2006 = vunpack.c.h.b16 %v1727
    %v2007 = vunpack.c.l.b16 %v1728
    %v2008 = vunpack.c.h.b16 %v1728
    %v2009 = vunpack.c.l.b16 %v1729
    %v2010 = vunpack.c.h.b16 %v1729
    %v2011 = vunpack.c.l.b16 %v1730
    %v2012 = vunpack.c.h.b16 %v1730
    %v2013 = vunpack.c.l.b16 %v1731
    %v2014 = vunpack.c.h.b16 %v1731
    %v2015 = vunpack.c.l.b16 %v1732
    %v2016 = vunpack.c.h.b16 %v1732
    %v2017 = vunpack.c.l.b16 %v1733
    %v2018 = vunpack.c.h.b16 %v1733
    %v2019 = vunpack.c.l.b16 %v1734
    %v2020 = vunpack.c.h.b16 %v1734
    %v2021 = vunpack.c.l.b16 %v1735
    %v2022 = vunpack.c.h.b16 %v1735
    %v2023 = vunpack.c.l.b16 %v1736
    %v2024 = vunpack.c.h.b16 %v1736
    %v2025 = vpack.c.b16 %v1839, %v1833
    %v2026 = vpack.c.b16 %v1840, %v1834
    %v2027 = vpack.c.b16 %v1841, %v1835
    %v2028 = vpack.c.b16 %v1842, %v1836
    %v2029 = vpack.c.b16 %v1843, %v1837
    %v2030 = vpack.c.b16 %v1844, %v1838
    %v2031 = vpack.c.b16 %v1851, %v1845
    %v2032 = vpack.c.b16 %v1852, %v1846
    %v2033 = vpack.c.b16 %v1853, %v1847
    %v2034 = vpack.c.b16 %v1854, %v1848
    %v2035 = vpack.c.b16 %v1855, %v1849
    %v2036 = vpack.c.b16 %v1856, %v1850
    %v2037 = vpack.c.b16 %v1863, %v1857
    %v2038 = vpack.c.b16 %v1864, %v1858
    %v2039 = vpack.c.b16 %v1865, %v1859
    %v2040 = vpack.c.b16 %v1866, %v1860
    %v2041 = vpack.c.b16 %v1867, %v1861
    %v2042 = vpack.c.b16 %v1868, %v1862
    %v2043 = vpack.c.b16 %v1875, %v1869
    %v2044 = vpack.c.b16 %v1876, %v1870
    %v2045 = vpack.c.b16 %v1877, %v1871
    %v2046 = vpack.c.b16 %v1878, %v1872
    %v2047 = vpack.c.b16 %v1879, %v1873
    %v2048 = vpack.c.b16 %v1880, %v1874
    %v2049 = vpack.c.b16 %v1887, %v1881
    %v2050 = vpack.c.b16 %v1888, %v1882
    %v2051 = vpack.c.b16 %v1889, %v1883
    %v2052 = vpack.c.b16 %v1890, %v1884
    %v2053 = vpack.c.b16 %v1891, %v1885
    %v2054 = vpack.c.b16 %v1892, %v1886
    %v2055 = vpack.c.b16 %v1899, %v1893
    %v2056 = vpack.c.b16 %v1900, %v1894
    %v2057 = vpack.c.b16 %v1901, %v1895
    %v2058 = vpack.c.b16 %v1902, %v1896
    %v2059 = vpack.c.b16 %v1903, %v1897
    %v2060 = vpack.c.b16 %v1904, %v1898
    %v2061 = vpack.c.b16 %v1911, %v1905
    %v2062 = vpack.c.b16 %v1912, %v1906
    %v2063 = vpack.c.b16 %v1913, %v1907
    %v2064 = vpack.c.b16 %v1914, %v1908
    %v2065 = vpack.c.b16 %v1915, %v1909
    %v2066 = vpack.c.b16 %v1916, %v1910
    %v2067 = vpack.c.b16 %v1923, %v1917
    %v2068 = vpack.c.b16 %v1924, %v1918
    %v2069 = vpack.c.b16 %v1925, %v1919
    %v2070 = vpack.c.b16 %v1926, %v1920
    %v2071 = vpack.c.b16 %v1927, %v1921
    %v2072 = vpack.c.b16 %v1928, %v1922
    %v2073 = vpack.c.b16 %v1935, %v1929
    %v2074 = vpack.c.b16 %v1936, %v1930
    %v2075 = vpack.c.b16 %v1937, %v1931
    %v2076 = vpack.c.b16 %v1938, %v1932
    %v2077 = vpack.c.b16 %v1939, %v1933
    %v2078 = vpack.c.b16 %v1940, %v1934
    %v2079 = vpack.c.b16 %v1947, %v1941
    %v2080 = vpack.c.b16 %v1948, %v1942
    %v2081 = vpack.c.b16 %v1949, %v1943
    %v2082 = vpack.c.b16 %v1950, %v1944
    %v2083 = vpack.c.b16 %v1951, %v1945
    %v2084 = vpack.c.b16 %v1952, %v1946
    %v2085 = vpack.c.b16 %v1959, %v1953
    %v2086 = vpack.c.b16 %v1960, %v1954
    %v2087 = vpack.c.b16 %v1961, %v1955
    %v2088 = vpack.c.b16 %v1962, %v1956
    %v2089 = vpack.c.b16 %v1963, %v1957
    %v2090 = vpack.c.b16 %v1964, %v1958
    %v2091 = vpack.c.b16 %v1971, %v1965
    %v2092 = vpack.c.b16 %v1972, %v1966
    %v2093 = vpack.c.b16 %v1973, %v1967
    %v2094 = vpack.c.b16 %v1974, %v1968
    %v2095 = vpack.c.b16 %v1975, %v1969
    %v2096 = vpack.c.b16 %v1976, %v1970
    %v2097 = vpack.c.b16 %v1983, %v1977
    %v2098 = vpack.c.b16 %v1984, %v1978
    %v2099 = vpack.c.b16 %v1985, %v1979
    %v2100 = vpack.c.b16 %v1986, %v1980
    %v2101 = vpack.c.b16 %v1987, %v1981
    %v2102 = vpack.c.b16 %v1988, %v1982
    %v2103 = vpack.c.b16 %v1995, %v1989
    %v2104 = vpack.c.b16 %v1996, %v1990
    %v2105 = vpack.c.b16 %v1997, %v1991
    %v2106 = vpack.c.b16 %v1998, %v1992
    %v2107 = vpack.c.b16 %v1999, %v1993
    %v2108 = vpack.c.b16 %v2000, %v1994
    %v2109 = vpack.c.b16 %v2007, %v2001
    %v2110 = vpack.c.b16 %v2008, %v2002
    %v2111 = vpack.c.b16 %v2009, %v2003
    %v2112 = vpack.c.b16 %v2010, %v2004
    %v2113 = vpack.c.b16 %v2011, %v2005
    %v2114 = vpack.c.b16 %v2012, %v2006
    %v2115 = vpack.c.b16 %v2019, %v2013
    %v2116 = vpack.c.b16 %v2020, %v2014
    %v2117 = vpack.c.b16 %v2021, %v2015
    %v2118 = vpack.c.b16 %v2022, %v2016
    %v2119 = vpack.c.b16 %v2023, %v2017
    %v2120 = vpack.c.b16 %v2024, %v2018
    %2217 = vmatprep.subr.bf16.mxu0 %v2026
    %2218 = vmatpush1.bf16.msra.mxu0 %v2025
    %2219 = vmatprep.subr.bf16.mxu0 %v2032
    %2220 = vmatpush1.bf16.msra.mxu0 %v2031
    %2221 = vmatprep.subr.bf16.mxu0 %v2038
    %2222 = vmatpush1.bf16.msra.mxu0 %v2037
    %2223 = vmatprep.subr.bf16.mxu0 %v2044
    %2224 = vmatpush1.bf16.msra.mxu0 %v2043
    %2225 = vmatprep.subr.bf16.mxu0 %v2050
    %2226 = vmatpush1.bf16.msra.mxu0 %v2049
    %2227 = vmatprep.subr.bf16.mxu0 %v2056
    %2228 = vmatpush1.bf16.msra.mxu0 %v2055
    %2229 = vmatprep.subr.bf16.mxu0 %v2062
    %2230 = vmatpush1.bf16.msra.mxu0 %v2061
    %2231 = vmatprep.subr.bf16.mxu0 %v2068
    %2232 = vmatpush1.bf16.msra.mxu0 %v2067
    %2233 = vmatprep.subr.bf16.mxu0 %v2074
    %2234 = vmatpush1.bf16.msra.mxu0 %v2073
    %2235 = vmatprep.subr.bf16.mxu0 %v2080
    %2236 = vmatpush1.bf16.msra.mxu0 %v2079
    %2237 = vmatprep.subr.bf16.mxu0 %v2086
    %2238 = vmatpush1.bf16.msra.mxu0 %v2085
    %2239 = vmatprep.subr.bf16.mxu0 %v2092
    %2240 = vmatpush1.bf16.msra.mxu0 %v2091
    %2241 = vmatprep.subr.bf16.mxu0 %v2098
    %2242 = vmatpush1.bf16.msra.mxu0 %v2097
    %2243 = vmatprep.subr.bf16.mxu0 %v2104
    %2244 = vmatpush1.bf16.msra.mxu0 %v2103
    %2245 = vmatprep.subr.bf16.mxu0 %v2110
    %2246 = vmatpush1.bf16.msra.mxu0 %v2109
    %2247 = vmatprep.subr.bf16.mxu0 %v2116
    %2248 = vmatpush1.bf16.msra.mxu0 %v2115
    %2249 = vmatprep.mubr.bf16.mxu0 %v1629
    %2250 = vmatmul.mubr.bf16.gmra.mrb[0].mxu0 %v1626
    %v2251 = vpop.f32.mrb[0].mxu0
    %v2252 = vadd.f32 0.0, %v2251
    %v2253 = vpop.f32.mrb[0].mxu0
    %v2254 = vadd.f32 0.0, %v2253
    %v2255 = vpop.f32.mrb[0].mxu0
    %v2256 = vadd.f32 0.0, %v2255
    %v2257 = vpop.f32.mrb[0].mxu0
    %v2258 = vadd.f32 0.0, %v2257
    %2259 = vmatprep.mubr.bf16.mxu0 %v1638
    %2260 = vmatmul.mubr.bf16.gmra.mrb[0].mxu0 %v1635
    %v2261 = vpop.f32.mrb[0].mxu0
    %v2262 = vadd.f32 0.0, %v2261
    %v2263 = vpop.f32.mrb[0].mxu0
    %v2264 = vadd.f32 0.0, %v2263
    %v2265 = vpop.f32.mrb[0].mxu0
    %v2266 = vadd.f32 0.0, %v2265
    %v2267 = vpop.f32.mrb[0].mxu0
    %v2268 = vadd.f32 0.0, %v2267
    %2269 = vdwg.mxu0
    %2270 = vmatprep.subr.bf16.mxu0 %v2028
    %2271 = vmatpush1.bf16.msra.mxu0 %v2027
    %2272 = vmatprep.subr.bf16.mxu0 %v2034
    %2273 = vmatpush1.bf16.msra.mxu0 %v2033
    %2274 = vmatprep.subr.bf16.mxu0 %v2040
    %2275 = vmatpush1.bf16.msra.mxu0 %v2039
    %2276 = vmatprep.subr.bf16.mxu0 %v2046
    %2277 = vmatpush1.bf16.msra.mxu0 %v2045
    %2278 = vmatprep.subr.bf16.mxu0 %v2052
    %2279 = vmatpush1.bf16.msra.mxu0 %v2051
    %2280 = vmatprep.subr.bf16.mxu0 %v2058
    %2281 = vmatpush1.bf16.msra.mxu0 %v2057
    %2282 = vmatprep.subr.bf16.mxu0 %v2064
    %2283 = vmatpush1.bf16.msra.mxu0 %v2063
    %2284 = vmatprep.subr.bf16.mxu0 %v2070
    %2285 = vmatpush1.bf16.msra.mxu0 %v2069
    %2286 = vmatprep.subr.bf16.mxu0 %v2076
    %2287 = vmatpush1.bf16.msra.mxu0 %v2075
    %2288 = vmatprep.subr.bf16.mxu0 %v2082
    %2289 = vmatpush1.bf16.msra.mxu0 %v2081
    %2290 = vmatprep.subr.bf16.mxu0 %v2088
    %2291 = vmatpush1.bf16.msra.mxu0 %v2087
    %2292 = vmatprep.subr.bf16.mxu0 %v2094
    %2293 = vmatpush1.bf16.msra.mxu0 %v2093
    %2294 = vmatprep.subr.bf16.mxu0 %v2100
    %2295 = vmatpush1.bf16.msra.mxu0 %v2099
    %2296 = vmatprep.subr.bf16.mxu0 %v2106
    %2297 = vmatpush1.bf16.msra.mxu0 %v2105
    %2298 = vmatprep.subr.bf16.mxu0 %v2112
    %2299 = vmatpush1.bf16.msra.mxu0 %v2111
    %2300 = vmatprep.subr.bf16.mxu0 %v2118
    %2301 = vmatpush1.bf16.msra.mxu0 %v2117
    %2302 = vmatprep.mubr.bf16.mxu0 %v1629
    %2303 = vmatmul.mubr.bf16.gmra.mrb[0].mxu0 %v1626
    %v2304 = vpop.f32.mrb[0].mxu0
    %v2305 = vadd.f32 0.0, %v2304
    %v2306 = vpop.f32.mrb[0].mxu0
    %v2307 = vadd.f32 0.0, %v2306
    %v2308 = vpop.f32.mrb[0].mxu0
    %v2309 = vadd.f32 0.0, %v2308
    %v2310 = vpop.f32.mrb[0].mxu0
    %v2311 = vadd.f32 0.0, %v2310
    %2312 = vmatprep.mubr.bf16.mxu0 %v1638
    %2313 = vmatmul.mubr.bf16.gmra.mrb[0].mxu0 %v1635
    %v2314 = vpop.f32.mrb[0].mxu0
    %v2315 = vadd.f32 0.0, %v2314
    %v2316 = vpop.f32.mrb[0].mxu0
    %v2317 = vadd.f32 0.0, %v2316
    %v2318 = vpop.f32.mrb[0].mxu0
    %v2319 = vadd.f32 0.0, %v2318
    %v2320 = vpop.f32.mrb[0].mxu0
    %v2321 = vadd.f32 0.0, %v2320
    %2322 = vdwg.mxu0
    %2323 = vmatprep.subr.bf16.mxu0 %v2030
    %2324 = vmatpush1.bf16.msra.mxu0 %v2029
    %2325 = vmatprep.subr.bf16.mxu0 %v2036
    %2326 = vmatpush1.bf16.msra.mxu0 %v2035
    %2327 = vmatprep.subr.bf16.mxu0 %v2042
    %2328 = vmatpush1.bf16.msra.mxu0 %v2041
    %2329 = vmatprep.subr.bf16.mxu0 %v2048
    %2330 = vmatpush1.bf16.msra.mxu0 %v2047
    %2331 = vmatprep.subr.bf16.mxu0 %v2054
    %2332 = vmatpush1.bf16.msra.mxu0 %v2053
    %2333 = vmatprep.subr.bf16.mxu0 %v2060
    %2334 = vmatpush1.bf16.msra.mxu0 %v2059
    %2335 = vmatprep.subr.bf16.mxu0 %v2066
    %2336 = vmatpush1.bf16.msra.mxu0 %v2065
    %2337 = vmatprep.subr.bf16.mxu0 %v2072
    %2338 = vmatpush1.bf16.msra.mxu0 %v2071
    %2339 = vmatprep.subr.bf16.mxu0 %v2078
    %2340 = vmatpush1.bf16.msra.mxu0 %v2077
    %2341 = vmatprep.subr.bf16.mxu0 %v2084
    %2342 = vmatpush1.bf16.msra.mxu0 %v2083
    %2343 = vmatprep.subr.bf16.mxu0 %v2090
    %2344 = vmatpush1.bf16.msra.mxu0 %v2089
    %2345 = vmatprep.subr.bf16.mxu0 %v2096
    %2346 = vmatpush1.bf16.msra.mxu0 %v2095
    %2347 = vmatprep.subr.bf16.mxu0 %v2102
    %2348 = vmatpush1.bf16.msra.mxu0 %v2101
    %2349 = vmatprep.subr.bf16.mxu0 %v2108
    %2350 = vmatpush1.bf16.msra.mxu0 %v2107
    %2351 = vmatprep.subr.bf16.mxu0 %v2114
    %2352 = vmatpush1.bf16.msra.mxu0 %v2113
    %2353 = vmatprep.subr.bf16.mxu0 %v2120
    %2354 = vmatpush1.bf16.msra.mxu0 %v2119
    %2355 = vmatprep.mubr.bf16.mxu0 %v1629
    %2356 = vmatmul.mubr.bf16.gmra.mrb[0].mxu0 %v1626
    %v2357 = vpop.f32.mrb[0].mxu0
    %v2358 = vadd.f32 0.0, %v2357
    %v2359 = vpop.f32.mrb[0].mxu0
    %v2360 = vadd.f32 0.0, %v2359
    %v2361 = vpop.f32.mrb[0].mxu0
    %v2362 = vadd.f32 0.0, %v2361
    %v2363 = vpop.f32.mrb[0].mxu0
    %v2364 = vadd.f32 0.0, %v2363
    %2365 = vmatprep.mubr.bf16.mxu0 %v1638
    %2366 = vmatmul.mubr.bf16.gmra.mrb[0].mxu0 %v1635
    %v2367 = vpop.f32.mrb[0].mxu0
    %v2368 = vadd.f32 0.0, %v2367
    %v2369 = vpop.f32.mrb[0].mxu0
    %v2370 = vadd.f32 0.0, %v2369
    %v2371 = vpop.f32.mrb[0].mxu0
    %v2372 = vadd.f32 0.0, %v2371
    %v2373 = vpop.f32.mrb[0].mxu0
    %v2374 = vadd.f32 0.0, %v2373
    %2375 = vdwg.mxu0
    %v2376 = vadd.f32 %v1499, %v2252
    %v2377 = vadd.f32 %v1501, %v2254
    %v2378 = vadd.f32 %v1552, %v2305
    %v2379 = vadd.f32 %v1554, %v2307
    %v2380 = vadd.f32 %v1605, %v2358
    %v2381 = vadd.f32 %v1607, %v2360
    %v2382 = vadd.f32 %v1503, %v2256
    %v2383 = vadd.f32 %v1505, %v2258
    %v2384 = vadd.f32 %v1556, %v2309
    %v2385 = vadd.f32 %v1558, %v2311
    %v2386 = vadd.f32 %v1609, %v2362
    %v2387 = vadd.f32 %v1611, %v2364
    %v2388 = vadd.f32 %v1509, %v2262
    %v2389 = vadd.f32 %v1511, %v2264
    %v2390 = vadd.f32 %v1562, %v2315
    %v2391 = vadd.f32 %v1564, %v2317
    %v2392 = vadd.f32 %v1615, %v2368
    %v2393 = vadd.f32 %v1617, %v2370
    %v2394 = vadd.f32 %v1513, %v2266
    %v2395 = vadd.f32 %v1515, %v2268
    %v2396 = vadd.f32 %v1566, %v2319
    %v2397 = vadd.f32 %v1568, %v2321
    %v2398 = vadd.f32 %v1619, %v2372
    %v2399 = vadd.f32 %v1621, %v2374
    %vm2400 = vsmask.f32 6400
    %v2401 = vrot.slane %v207, 1
    %v2402 = vrot.slane %v209, 2
    %v2403 = vor.u32 %v2401, %v2402
    %v2404 = vrot.slane %v230, 1
    %v2405 = vrot.slane %v214, 2
    %v2406 = vor.u32 %v2404, %v2405
    %v2407 = vsel %vm2400, %v2403, %v2406
    %v2408 = vrot.slane %v219, 1
    %v2409 = vrot.slane %v221, 2
    %v2410 = vor.u32 %v2408, %v2409
    %v2411 = vrot.slane %v233, 1
    %v2412 = vrot.slane %v226, 2
    %v2413 = vor.u32 %v2411, %v2412
    %v2414 = vsel %vm2400, %v2410, %v2413
    %vm2419 = vmand %vm1623, %vm2400
    %v2420 = vsel %vm2419, %v2406, 0
    %v2421 = vsel %vm2419, %v2413, 0
    %s2422 = scalar_lea.vmem [#allocation5], 2304
    %v2423 = vld [vmem:[%s2422] sm:$0xff]
    %v2424 = vld [vmem:[%s2422 + $0x8] sm:$0xff]
    %v2425 = vld [vmem:[%s2422 + $0x10] sm:$0xff]
    %v2426 = vld [vmem:[%s2422 + $0x18] sm:$0xff]
    %v2427 = vld [vmem:[%s2422 + $0x20] sm:$0xff]
    %v2428 = vld [vmem:[%s2422 + $0x28] sm:$0xff]
    %v2429 = vld [vmem:[%s2422 + $0x30] sm:$0xff]
    %v2430 = vld [vmem:[%s2422 + $0x38] sm:$0xff]
    %v2431 = vld [vmem:[%s2422 + $0x40] sm:$0xff]
    %v2432 = vld [vmem:[%s2422 + $0x48] sm:$0xff]
    %v2433 = vld [vmem:[%s2422 + $0x50] sm:$0xff]
    %v2434 = vld [vmem:[%s2422 + $0x58] sm:$0xff]
    %v2435 = vld [vmem:[%s2422 + $0x60] sm:$0xff]
    %v2436 = vld [vmem:[%s2422 + $0x68] sm:$0xff]
    %v2437 = vld [vmem:[%s2422 + $0x70] sm:$0xff]
    %v2438 = vld [vmem:[%s2422 + $0x78] sm:$0xff]
    %v2439 = vld [vmem:[%s2422 + $0x80] sm:$0xff]
    %v2440 = vld [vmem:[%s2422 + $0x88] sm:$0xff]
    %v2441 = vld [vmem:[%s2422 + $0x90] sm:$0xff]
    %v2442 = vld [vmem:[%s2422 + $0x98] sm:$0xff]
    %v2443 = vld [vmem:[%s2422 + $0xa0] sm:$0xff]
    %v2444 = vld [vmem:[%s2422 + $0xa8] sm:$0xff]
    %v2445 = vld [vmem:[%s2422 + $0xb0] sm:$0xff]
    %v2446 = vld [vmem:[%s2422 + $0xb8] sm:$0xff]
    %v2447 = vld [vmem:[%s2422 + $0xc0] sm:$0xff]
    %v2448 = vld [vmem:[%s2422 + $0xc8] sm:$0xff]
    %v2449 = vld [vmem:[%s2422 + $0xd0] sm:$0xff]
    %v2450 = vld [vmem:[%s2422 + $0xd8] sm:$0xff]
    %v2451 = vld [vmem:[%s2422 + $0xe0] sm:$0xff]
    %v2452 = vld [vmem:[%s2422 + $0xe8] sm:$0xff]
    %v2453 = vld [vmem:[%s2422 + $0xf0] sm:$0xff]
    %v2454 = vld [vmem:[%s2422 + $0xf8] sm:$0xff]
    %v2455 = vld [vmem:[%s2422 + $0x100] sm:$0xff]
    %v2456 = vld [vmem:[%s2422 + $0x108] sm:$0xff]
    %v2457 = vld [vmem:[%s2422 + $0x110] sm:$0xff]
    %v2458 = vld [vmem:[%s2422 + $0x118] sm:$0xff]
    %v2459 = vld [vmem:[%s2422 + $0x120] sm:$0xff]
    %v2460 = vld [vmem:[%s2422 + $0x128] sm:$0xff]
    %v2461 = vld [vmem:[%s2422 + $0x130] sm:$0xff]
    %v2462 = vld [vmem:[%s2422 + $0x138] sm:$0xff]
    %v2463 = vld [vmem:[%s2422 + $0x140] sm:$0xff]
    %v2464 = vld [vmem:[%s2422 + $0x148] sm:$0xff]
    %v2465 = vld [vmem:[%s2422 + $0x150] sm:$0xff]
    %v2466 = vld [vmem:[%s2422 + $0x158] sm:$0xff]
    %v2467 = vld [vmem:[%s2422 + $0x160] sm:$0xff]
    %v2468 = vld [vmem:[%s2422 + $0x168] sm:$0xff]
    %v2469 = vld [vmem:[%s2422 + $0x170] sm:$0xff]
    %v2470 = vld [vmem:[%s2422 + $0x178] sm:$0xff]
    %v2471 = vld [vmem:[%s2422 + $0x180] sm:$0xff]
    %v2472 = vld [vmem:[%s2422 + $0x188] sm:$0xff]
    %v2473 = vld [vmem:[%s2422 + $0x190] sm:$0xff]
    %v2474 = vld [vmem:[%s2422 + $0x198] sm:$0xff]
    %v2475 = vld [vmem:[%s2422 + $0x1a0] sm:$0xff]
    %v2476 = vld [vmem:[%s2422 + $0x1a8] sm:$0xff]
    %v2477 = vld [vmem:[%s2422 + $0x1b0] sm:$0xff]
    %v2478 = vld [vmem:[%s2422 + $0x1b8] sm:$0xff]
    %v2479 = vld [vmem:[%s2422 + $0x1c0] sm:$0xff]
    %v2480 = vld [vmem:[%s2422 + $0x1c8] sm:$0xff]
    %v2481 = vld [vmem:[%s2422 + $0x1d0] sm:$0xff]
    %v2482 = vld [vmem:[%s2422 + $0x1d8] sm:$0xff]
    %v2483 = vld [vmem:[%s2422 + $0x1e0] sm:$0xff]
    %v2484 = vld [vmem:[%s2422 + $0x1e8] sm:$0xff]
    %v2485 = vld [vmem:[%s2422 + $0x1f0] sm:$0xff]
    %v2486 = vld [vmem:[%s2422 + $0x1f8] sm:$0xff]
    %v2487 = vld [vmem:[%s2422 + $0x200] sm:$0xff]
    %v2488 = vld [vmem:[%s2422 + $0x208] sm:$0xff]
    %v2489 = vld [vmem:[%s2422 + $0x210] sm:$0xff]
    %v2490 = vld [vmem:[%s2422 + $0x218] sm:$0xff]
    %v2491 = vld [vmem:[%s2422 + $0x220] sm:$0xff]
    %v2492 = vld [vmem:[%s2422 + $0x228] sm:$0xff]
    %v2493 = vld [vmem:[%s2422 + $0x230] sm:$0xff]
    %v2494 = vld [vmem:[%s2422 + $0x238] sm:$0xff]
    %v2495 = vld [vmem:[%s2422 + $0x240] sm:$0xff]
    %v2496 = vld [vmem:[%s2422 + $0x248] sm:$0xff]
    %v2497 = vld [vmem:[%s2422 + $0x250] sm:$0xff]
    %v2498 = vld [vmem:[%s2422 + $0x258] sm:$0xff]
    %v2499 = vld [vmem:[%s2422 + $0x260] sm:$0xff]
    %v2500 = vld [vmem:[%s2422 + $0x268] sm:$0xff]
    %v2501 = vld [vmem:[%s2422 + $0x270] sm:$0xff]
    %v2502 = vld [vmem:[%s2422 + $0x278] sm:$0xff]
    %v2503 = vld [vmem:[%s2422 + $0x280] sm:$0xff]
    %v2504 = vld [vmem:[%s2422 + $0x288] sm:$0xff]
    %v2505 = vld [vmem:[%s2422 + $0x290] sm:$0xff]
    %v2506 = vld [vmem:[%s2422 + $0x298] sm:$0xff]
    %v2507 = vld [vmem:[%s2422 + $0x2a0] sm:$0xff]
    %v2508 = vld [vmem:[%s2422 + $0x2a8] sm:$0xff]
    %v2509 = vld [vmem:[%s2422 + $0x2b0] sm:$0xff]
    %v2510 = vld [vmem:[%s2422 + $0x2b8] sm:$0xff]
    %v2511 = vld [vmem:[%s2422 + $0x2c0] sm:$0xff]
    %v2512 = vld [vmem:[%s2422 + $0x2c8] sm:$0xff]
    %v2513 = vld [vmem:[%s2422 + $0x2d0] sm:$0xff]
    %v2514 = vld [vmem:[%s2422 + $0x2d8] sm:$0xff]
    %v2515 = vld [vmem:[%s2422 + $0x2e0] sm:$0xff]
    %v2516 = vld [vmem:[%s2422 + $0x2e8] sm:$0xff]
    %v2517 = vld [vmem:[%s2422 + $0x2f0] sm:$0xff]
    %v2518 = vld [vmem:[%s2422 + $0x2f8] sm:$0xff]
    %v2615 = vunpack.c.l.b16 %v2423
    %v2616 = vunpack.c.h.b16 %v2423
    %v2617 = vunpack.c.l.b16 %v2424
    %v2618 = vunpack.c.h.b16 %v2424
    %v2619 = vunpack.c.l.b16 %v2425
    %v2620 = vunpack.c.h.b16 %v2425
    %v2621 = vunpack.c.l.b16 %v2426
    %v2622 = vunpack.c.h.b16 %v2426
    %v2623 = vunpack.c.l.b16 %v2427
    %v2624 = vunpack.c.h.b16 %v2427
    %v2625 = vunpack.c.l.b16 %v2428
    %v2626 = vunpack.c.h.b16 %v2428
    %v2627 = vunpack.c.l.b16 %v2429
    %v2628 = vunpack.c.h.b16 %v2429
    %v2629 = vunpack.c.l.b16 %v2430
    %v2630 = vunpack.c.h.b16 %v2430
    %v2631 = vunpack.c.l.b16 %v2431
    %v2632 = vunpack.c.h.b16 %v2431
    %v2633 = vunpack.c.l.b16 %v2432
    %v2634 = vunpack.c.h.b16 %v2432
    %v2635 = vunpack.c.l.b16 %v2433
    %v2636 = vunpack.c.h.b16 %v2433
    %v2637 = vunpack.c.l.b16 %v2434
    %v2638 = vunpack.c.h.b16 %v2434
    %v2639 = vunpack.c.l.b16 %v2435
    %v2640 = vunpack.c.h.b16 %v2435
    %v2641 = vunpack.c.l.b16 %v2436
    %v2642 = vunpack.c.h.b16 %v2436
    %v2643 = vunpack.c.l.b16 %v2437
    %v2644 = vunpack.c.h.b16 %v2437
    %v2645 = vunpack.c.l.b16 %v2438
    %v2646 = vunpack.c.h.b16 %v2438
    %v2647 = vunpack.c.l.b16 %v2439
    %v2648 = vunpack.c.h.b16 %v2439
    %v2649 = vunpack.c.l.b16 %v2440
    %v2650 = vunpack.c.h.b16 %v2440
    %v2651 = vunpack.c.l.b16 %v2441
    %v2652 = vunpack.c.h.b16 %v2441
    %v2653 = vunpack.c.l.b16 %v2442
    %v2654 = vunpack.c.h.b16 %v2442
    %v2655 = vunpack.c.l.b16 %v2443
    %v2656 = vunpack.c.h.b16 %v2443
    %v2657 = vunpack.c.l.b16 %v2444
    %v2658 = vunpack.c.h.b16 %v2444
    %v2659 = vunpack.c.l.b16 %v2445
    %v2660 = vunpack.c.h.b16 %v2445
    %v2661 = vunpack.c.l.b16 %v2446
    %v2662 = vunpack.c.h.b16 %v2446
    %v2663 = vunpack.c.l.b16 %v2447
    %v2664 = vunpack.c.h.b16 %v2447
    %v2665 = vunpack.c.l.b16 %v2448
    %v2666 = vunpack.c.h.b16 %v2448
    %v2667 = vunpack.c.l.b16 %v2449
    %v2668 = vunpack.c.h.b16 %v2449
    %v2669 = vunpack.c.l.b16 %v2450
    %v2670 = vunpack.c.h.b16 %v2450
    %v2671 = vunpack.c.l.b16 %v2451
    %v2672 = vunpack.c.h.b16 %v2451
    %v2673 = vunpack.c.l.b16 %v2452
    %v2674 = vunpack.c.h.b16 %v2452
    %v2675 = vunpack.c.l.b16 %v2453
    %v2676 = vunpack.c.h.b16 %v2453
    %v2677 = vunpack.c.l.b16 %v2454
    %v2678 = vunpack.c.h.b16 %v2454
    %v2679 = vunpack.c.l.b16 %v2455
    %v2680 = vunpack.c.h.b16 %v2455
    %v2681 = vunpack.c.l.b16 %v2456
    %v2682 = vunpack.c.h.b16 %v2456
    %v2683 = vunpack.c.l.b16 %v2457
    %v2684 = vunpack.c.h.b16 %v2457
    %v2685 = vunpack.c.l.b16 %v2458
    %v2686 = vunpack.c.h.b16 %v2458
    %v2687 = vunpack.c.l.b16 %v2459
    %v2688 = vunpack.c.h.b16 %v2459
    %v2689 = vunpack.c.l.b16 %v2460
    %v2690 = vunpack.c.h.b16 %v2460
    %v2691 = vunpack.c.l.b16 %v2461
    %v2692 = vunpack.c.h.b16 %v2461
    %v2693 = vunpack.c.l.b16 %v2462
    %v2694 = vunpack.c.h.b16 %v2462
    %v2695 = vunpack.c.l.b16 %v2463
    %v2696 = vunpack.c.h.b16 %v2463
    %v2697 = vunpack.c.l.b16 %v2464
    %v2698 = vunpack.c.h.b16 %v2464
    %v2699 = vunpack.c.l.b16 %v2465
    %v2700 = vunpack.c.h.b16 %v2465
    %v2701 = vunpack.c.l.b16 %v2466
    %v2702 = vunpack.c.h.b16 %v2466
    %v2703 = vunpack.c.l.b16 %v2467
    %v2704 = vunpack.c.h.b16 %v2467
    %v2705 = vunpack.c.l.b16 %v2468
    %v2706 = vunpack.c.h.b16 %v2468
    %v2707 = vunpack.c.l.b16 %v2469
    %v2708 = vunpack.c.h.b16 %v2469
    %v2709 = vunpack.c.l.b16 %v2470
    %v2710 = vunpack.c.h.b16 %v2470
    %v2711 = vunpack.c.l.b16 %v2471
    %v2712 = vunpack.c.h.b16 %v2471
    %v2713 = vunpack.c.l.b16 %v2472
    %v2714 = vunpack.c.h.b16 %v2472
    %v2715 = vunpack.c.l.b16 %v2473
    %v2716 = vunpack.c.h.b16 %v2473
    %v2717 = vunpack.c.l.b16 %v2474
    %v2718 = vunpack.c.h.b16 %v2474
    %v2719 = vunpack.c.l.b16 %v2475
    %v2720 = vunpack.c.h.b16 %v2475
    %v2721 = vunpack.c.l.b16 %v2476
    %v2722 = vunpack.c.h.b16 %v2476
    %v2723 = vunpack.c.l.b16 %v2477
    %v2724 = vunpack.c.h.b16 %v2477
    %v2725 = vunpack.c.l.b16 %v2478
    %v2726 = vunpack.c.h.b16 %v2478
    %v2727 = vunpack.c.l.b16 %v2479
    %v2728 = vunpack.c.h.b16 %v2479
    %v2729 = vunpack.c.l.b16 %v2480
    %v2730 = vunpack.c.h.b16 %v2480
    %v2731 = vunpack.c.l.b16 %v2481
    %v2732 = vunpack.c.h.b16 %v2481
    %v2733 = vunpack.c.l.b16 %v2482
    %v2734 = vunpack.c.h.b16 %v2482
    %v2735 = vunpack.c.l.b16 %v2483
    %v2736 = vunpack.c.h.b16 %v2483
    %v2737 = vunpack.c.l.b16 %v2484
    %v2738 = vunpack.c.h.b16 %v2484
    %v2739 = vunpack.c.l.b16 %v2485
    %v2740 = vunpack.c.h.b16 %v2485
    %v2741 = vunpack.c.l.b16 %v2486
    %v2742 = vunpack.c.h.b16 %v2486
    %v2743 = vunpack.c.l.b16 %v2487
    %v2744 = vunpack.c.h.b16 %v2487
    %v2745 = vunpack.c.l.b16 %v2488
    %v2746 = vunpack.c.h.b16 %v2488
    %v2747 = vunpack.c.l.b16 %v2489
    %v2748 = vunpack.c.h.b16 %v2489
    %v2749 = vunpack.c.l.b16 %v2490
    %v2750 = vunpack.c.h.b16 %v2490
    %v2751 = vunpack.c.l.b16 %v2491
    %v2752 = vunpack.c.h.b16 %v2491
    %v2753 = vunpack.c.l.b16 %v2492
    %v2754 = vunpack.c.h.b16 %v2492
    %v2755 = vunpack.c.l.b16 %v2493
    %v2756 = vunpack.c.h.b16 %v2493
    %v2757 = vunpack.c.l.b16 %v2494
    %v2758 = vunpack.c.h.b16 %v2494
    %v2759 = vunpack.c.l.b16 %v2495
    %v2760 = vunpack.c.h.b16 %v2495
    %v2761 = vunpack.c.l.b16 %v2496
    %v2762 = vunpack.c.h.b16 %v2496
    %v2763 = vunpack.c.l.b16 %v2497
    %v2764 = vunpack.c.h.b16 %v2497
    %v2765 = vunpack.c.l.b16 %v2498
    %v2766 = vunpack.c.h.b16 %v2498
    %v2767 = vunpack.c.l.b16 %v2499
    %v2768 = vunpack.c.h.b16 %v2499
    %v2769 = vunpack.c.l.b16 %v2500
    %v2770 = vunpack.c.h.b16 %v2500
    %v2771 = vunpack.c.l.b16 %v2501
    %v2772 = vunpack.c.h.b16 %v2501
    %v2773 = vunpack.c.l.b16 %v2502
    %v2774 = vunpack.c.h.b16 %v2502
    %v2775 = vunpack.c.l.b16 %v2503
    %v2776 = vunpack.c.h.b16 %v2503
    %v2777 = vunpack.c.l.b16 %v2504
    %v2778 = vunpack.c.h.b16 %v2504
    %v2779 = vunpack.c.l.b16 %v2505
    %v2780 = vunpack.c.h.b16 %v2505
    %v2781 = vunpack.c.l.b16 %v2506
    %v2782 = vunpack.c.h.b16 %v2506
    %v2783 = vunpack.c.l.b16 %v2507
    %v2784 = vunpack.c.h.b16 %v2507
    %v2785 = vunpack.c.l.b16 %v2508
    %v2786 = vunpack.c.h.b16 %v2508
    %v2787 = vunpack.c.l.b16 %v2509
    %v2788 = vunpack.c.h.b16 %v2509
    %v2789 = vunpack.c.l.b16 %v2510
    %v2790 = vunpack.c.h.b16 %v2510
    %v2791 = vunpack.c.l.b16 %v2511
    %v2792 = vunpack.c.h.b16 %v2511
    %v2793 = vunpack.c.l.b16 %v2512
    %v2794 = vunpack.c.h.b16 %v2512
    %v2795 = vunpack.c.l.b16 %v2513
    %v2796 = vunpack.c.h.b16 %v2513
    %v2797 = vunpack.c.l.b16 %v2514
    %v2798 = vunpack.c.h.b16 %v2514
    %v2799 = vunpack.c.l.b16 %v2515
    %v2800 = vunpack.c.h.b16 %v2515
    %v2801 = vunpack.c.l.b16 %v2516
    %v2802 = vunpack.c.h.b16 %v2516
    %v2803 = vunpack.c.l.b16 %v2517
    %v2804 = vunpack.c.h.b16 %v2517
    %v2805 = vunpack.c.l.b16 %v2518
    %v2806 = vunpack.c.h.b16 %v2518
    %v2807 = vpack.c.b16 %v2621, %v2615
    %v2808 = vpack.c.b16 %v2622, %v2616
    %v2809 = vpack.c.b16 %v2623, %v2617
    %v2810 = vpack.c.b16 %v2624, %v2618
    %v2811 = vpack.c.b16 %v2625, %v2619
    %v2812 = vpack.c.b16 %v2626, %v2620
    %v2813 = vpack.c.b16 %v2633, %v2627
    %v2814 = vpack.c.b16 %v2634, %v2628
    %v2815 = vpack.c.b16 %v2635, %v2629
    %v2816 = vpack.c.b16 %v2636, %v2630
    %v2817 = vpack.c.b16 %v2637, %v2631
    %v2818 = vpack.c.b16 %v2638, %v2632
    %v2819 = vpack.c.b16 %v2645, %v2639
    %v2820 = vpack.c.b16 %v2646, %v2640
    %v2821 = vpack.c.b16 %v2647, %v2641
    %v2822 = vpack.c.b16 %v2648, %v2642
    %v2823 = vpack.c.b16 %v2649, %v2643
    %v2824 = vpack.c.b16 %v2650, %v2644
    %v2825 = vpack.c.b16 %v2657, %v2651
    %v2826 = vpack.c.b16 %v2658, %v2652
    %v2827 = vpack.c.b16 %v2659, %v2653
    %v2828 = vpack.c.b16 %v2660, %v2654
    %v2829 = vpack.c.b16 %v2661, %v2655
    %v2830 = vpack.c.b16 %v2662, %v2656
    %v2831 = vpack.c.b16 %v2669, %v2663
    %v2832 = vpack.c.b16 %v2670, %v2664
    %v2833 = vpack.c.b16 %v2671, %v2665
    %v2834 = vpack.c.b16 %v2672, %v2666
    %v2835 = vpack.c.b16 %v2673, %v2667
    %v2836 = vpack.c.b16 %v2674, %v2668
    %v2837 = vpack.c.b16 %v2681, %v2675
    %v2838 = vpack.c.b16 %v2682, %v2676
    %v2839 = vpack.c.b16 %v2683, %v2677
    %v2840 = vpack.c.b16 %v2684, %v2678
    %v2841 = vpack.c.b16 %v2685, %v2679
    %v2842 = vpack.c.b16 %v2686, %v2680
    %v2843 = vpack.c.b16 %v2693, %v2687
    %v2844 = vpack.c.b16 %v2694, %v2688
    %v2845 = vpack.c.b16 %v2695, %v2689
    %v2846 = vpack.c.b16 %v2696, %v2690
    %v2847 = vpack.c.b16 %v2697, %v2691
    %v2848 = vpack.c.b16 %v2698, %v2692
    %v2849 = vpack.c.b16 %v2705, %v2699
    %v2850 = vpack.c.b16 %v2706, %v2700
    %v2851 = vpack.c.b16 %v2707, %v2701
    %v2852 = vpack.c.b16 %v2708, %v2702
    %v2853 = vpack.c.b16 %v2709, %v2703
    %v2854 = vpack.c.b16 %v2710, %v2704
    %v2855 = vpack.c.b16 %v2717, %v2711
    %v2856 = vpack.c.b16 %v2718, %v2712
    %v2857 = vpack.c.b16 %v2719, %v2713
    %v2858 = vpack.c.b16 %v2720, %v2714
    %v2859 = vpack.c.b16 %v2721, %v2715
    %v2860 = vpack.c.b16 %v2722, %v2716
    %v2861 = vpack.c.b16 %v2729, %v2723
    %v2862 = vpack.c.b16 %v2730, %v2724
    %v2863 = vpack.c.b16 %v2731, %v2725
    %v2864 = vpack.c.b16 %v2732, %v2726
    %v2865 = vpack.c.b16 %v2733, %v2727
    %v2866 = vpack.c.b16 %v2734, %v2728
    %v2867 = vpack.c.b16 %v2741, %v2735
    %v2868 = vpack.c.b16 %v2742, %v2736
    %v2869 = vpack.c.b16 %v2743, %v2737
    %v2870 = vpack.c.b16 %v2744, %v2738
    %v2871 = vpack.c.b16 %v2745, %v2739
    %v2872 = vpack.c.b16 %v2746, %v2740
    %v2873 = vpack.c.b16 %v2753, %v2747
    %v2874 = vpack.c.b16 %v2754, %v2748
    %v2875 = vpack.c.b16 %v2755, %v2749
    %v2876 = vpack.c.b16 %v2756, %v2750
    %v2877 = vpack.c.b16 %v2757, %v2751
    %v2878 = vpack.c.b16 %v2758, %v2752
    %v2879 = vpack.c.b16 %v2765, %v2759
    %v2880 = vpack.c.b16 %v2766, %v2760
    %v2881 = vpack.c.b16 %v2767, %v2761
    %v2882 = vpack.c.b16 %v2768, %v2762
    %v2883 = vpack.c.b16 %v2769, %v2763
    %v2884 = vpack.c.b16 %v2770, %v2764
    %v2885 = vpack.c.b16 %v2777, %v2771
    %v2886 = vpack.c.b16 %v2778, %v2772
    %v2887 = vpack.c.b16 %v2779, %v2773
    %v2888 = vpack.c.b16 %v2780, %v2774
    %v2889 = vpack.c.b16 %v2781, %v2775
    %v2890 = vpack.c.b16 %v2782, %v2776
    %v2891 = vpack.c.b16 %v2789, %v2783
    %v2892 = vpack.c.b16 %v2790, %v2784
    %v2893 = vpack.c.b16 %v2791, %v2785
    %v2894 = vpack.c.b16 %v2792, %v2786
    %v2895 = vpack.c.b16 %v2793, %v2787
    %v2896 = vpack.c.b16 %v2794, %v2788
    %v2897 = vpack.c.b16 %v2801, %v2795
    %v2898 = vpack.c.b16 %v2802, %v2796
    %v2899 = vpack.c.b16 %v2803, %v2797
    %v2900 = vpack.c.b16 %v2804, %v2798
    %v2901 = vpack.c.b16 %v2805, %v2799
    %v2902 = vpack.c.b16 %v2806, %v2800
    %2999 = vmatprep.subr.bf16.mxu0 %v2808
    %3000 = vmatpush1.bf16.msra.mxu0 %v2807
    %3001 = vmatprep.subr.bf16.mxu0 %v2814
    %3002 = vmatpush1.bf16.msra.mxu0 %v2813
    %3003 = vmatprep.subr.bf16.mxu0 %v2820
    %3004 = vmatpush1.bf16.msra.mxu0 %v2819
    %3005 = vmatprep.subr.bf16.mxu0 %v2826
    %3006 = vmatpush1.bf16.msra.mxu0 %v2825
    %3007 = vmatprep.subr.bf16.mxu0 %v2832
    %3008 = vmatpush1.bf16.msra.mxu0 %v2831
    %3009 = vmatprep.subr.bf16.mxu0 %v2838
    %3010 = vmatpush1.bf16.msra.mxu0 %v2837
    %3011 = vmatprep.subr.bf16.mxu0 %v2844
    %3012 = vmatpush1.bf16.msra.mxu0 %v2843
    %3013 = vmatprep.subr.bf16.mxu0 %v2850
    %3014 = vmatpush1.bf16.msra.mxu0 %v2849
    %3015 = vmatprep.subr.bf16.mxu0 %v2856
    %3016 = vmatpush1.bf16.msra.mxu0 %v2855
    %3017 = vmatprep.subr.bf16.mxu0 %v2862
    %3018 = vmatpush1.bf16.msra.mxu0 %v2861
    %3019 = vmatprep.subr.bf16.mxu0 %v2868
    %3020 = vmatpush1.bf16.msra.mxu0 %v2867
    %3021 = vmatprep.subr.bf16.mxu0 %v2874
    %3022 = vmatpush1.bf16.msra.mxu0 %v2873
    %3023 = vmatprep.subr.bf16.mxu0 %v2880
    %3024 = vmatpush1.bf16.msra.mxu0 %v2879
    %3025 = vmatprep.subr.bf16.mxu0 %v2886
    %3026 = vmatpush1.bf16.msra.mxu0 %v2885
    %3027 = vmatprep.subr.bf16.mxu0 %v2892
    %3028 = vmatpush1.bf16.msra.mxu0 %v2891
    %3029 = vmatprep.subr.bf16.mxu0 %v2898
    %3030 = vmatpush1.bf16.msra.mxu0 %v2897
    %3031 = vmatprep.mubr.bf16.mxu0 %v2414
    %3032 = vmatmul.mubr.bf16.gmra.mrb[0].mxu0 %v2407
    %v3033 = vpop.f32.mrb[0].mxu0
    %v3034 = vadd.f32 0.0, %v3033
    %v3035 = vpop.f32.mrb[0].mxu0
    %v3036 = vadd.f32 0.0, %v3035
    %v3037 = vpop.f32.mrb[0].mxu0
    %v3038 = vadd.f32 0.0, %v3037
    %v3039 = vpop.f32.mrb[0].mxu0
    %v3040 = vadd.f32 0.0, %v3039
    %3041 = vmatprep.mubr.bf16.mxu0 %v2421
    %3042 = vmatmul.mubr.bf16.gmra.mrb[0].mxu0 %v2420
    %v3043 = vpop.f32.mrb[0].mxu0
    %v3044 = vadd.f32 0.0, %v3043
    %v3045 = vpop.f32.mrb[0].mxu0
    %v3046 = vadd.f32 0.0, %v3045
    %v3047 = vpop.f32.mrb[0].mxu0
    %v3048 = vadd.f32 0.0, %v3047
    %v3049 = vpop.f32.mrb[0].mxu0
    %v3050 = vadd.f32 0.0, %v3049
    %3051 = vdwg.mxu0
    %3052 = vmatprep.subr.bf16.mxu0 %v2810
    %3053 = vmatpush1.bf16.msra.mxu0 %v2809
    %3054 = vmatprep.subr.bf16.mxu0 %v2816
    %3055 = vmatpush1.bf16.msra.mxu0 %v2815
    %3056 = vmatprep.subr.bf16.mxu0 %v2822
    %3057 = vmatpush1.bf16.msra.mxu0 %v2821
    %3058 = vmatprep.subr.bf16.mxu0 %v2828
    %3059 = vmatpush1.bf16.msra.mxu0 %v2827
    %3060 = vmatprep.subr.bf16.mxu0 %v2834
    %3061 = vmatpush1.bf16.msra.mxu0 %v2833
    %3062 = vmatprep.subr.bf16.mxu0 %v2840
    %3063 = vmatpush1.bf16.msra.mxu0 %v2839
    %3064 = vmatprep.subr.bf16.mxu0 %v2846
    %3065 = vmatpush1.bf16.msra.mxu0 %v2845
    %3066 = vmatprep.subr.bf16.mxu0 %v2852
    %3067 = vmatpush1.bf16.msra.mxu0 %v2851
    %3068 = vmatprep.subr.bf16.mxu0 %v2858
    %3069 = vmatpush1.bf16.msra.mxu0 %v2857
    %3070 = vmatprep.subr.bf16.mxu0 %v2864
    %3071 = vmatpush1.bf16.msra.mxu0 %v2863
    %3072 = vmatprep.subr.bf16.mxu0 %v2870
    %3073 = vmatpush1.bf16.msra.mxu0 %v2869
    %3074 = vmatprep.subr.bf16.mxu0 %v2876
    %3075 = vmatpush1.bf16.msra.mxu0 %v2875
    %3076 = vmatprep.subr.bf16.mxu0 %v2882
    %3077 = vmatpush1.bf16.msra.mxu0 %v2881
    %3078 = vmatprep.subr.bf16.mxu0 %v2888
    %3079 = vmatpush1.bf16.msra.mxu0 %v2887
    %3080 = vmatprep.subr.bf16.mxu0 %v2894
    %3081 = vmatpush1.bf16.msra.mxu0 %v2893
    %3082 = vmatprep.subr.bf16.mxu0 %v2900
    %3083 = vmatpush1.bf16.msra.mxu0 %v2899
    %3084 = vmatprep.mubr.bf16.mxu0 %v2414
    %3085 = vmatmul.mubr.bf16.gmra.mrb[0].mxu0 %v2407
    %v3086 = vpop.f32.mrb[0].mxu0
    %v3087 = vadd.f32 0.0, %v3086
    %v3088 = vpop.f32.mrb[0].mxu0
    %v3089 = vadd.f32 0.0, %v3088
    %v3090 = vpop.f32.mrb[0].mxu0
    %v3091 = vadd.f32 0.0, %v3090
    %v3092 = vpop.f32.mrb[0].mxu0
    %v3093 = vadd.f32 0.0, %v3092
    %3094 = vmatprep.mubr.bf16.mxu0 %v2421
    %3095 = vmatmul.mubr.bf16.gmra.mrb[0].mxu0 %v2420
    %v3096 = vpop.f32.mrb[0].mxu0
    %v3097 = vadd.f32 0.0, %v3096
    %v3098 = vpop.f32.mrb[0].mxu0
    %v3099 = vadd.f32 0.0, %v3098
    %v3100 = vpop.f32.mrb[0].mxu0
    %v3101 = vadd.f32 0.0, %v3100
    %v3102 = vpop.f32.mrb[0].mxu0
    %v3103 = vadd.f32 0.0, %v3102
    %3104 = vdwg.mxu0
    %3105 = vmatprep.subr.bf16.mxu0 %v2812
    %3106 = vmatpush1.bf16.msra.mxu0 %v2811
    %3107 = vmatprep.subr.bf16.mxu0 %v2818
    %3108 = vmatpush1.bf16.msra.mxu0 %v2817
    %3109 = vmatprep.subr.bf16.mxu0 %v2824
    %3110 = vmatpush1.bf16.msra.mxu0 %v2823
    %3111 = vmatprep.subr.bf16.mxu0 %v2830
    %3112 = vmatpush1.bf16.msra.mxu0 %v2829
    %3113 = vmatprep.subr.bf16.mxu0 %v2836
    %3114 = vmatpush1.bf16.msra.mxu0 %v2835
    %3115 = vmatprep.subr.bf16.mxu0 %v2842
    %3116 = vmatpush1.bf16.msra.mxu0 %v2841
    %3117 = vmatprep.subr.bf16.mxu0 %v2848
    %3118 = vmatpush1.bf16.msra.mxu0 %v2847
    %3119 = vmatprep.subr.bf16.mxu0 %v2854
    %3120 = vmatpush1.bf16.msra.mxu0 %v2853
    %3121 = vmatprep.subr.bf16.mxu0 %v2860
    %3122 = vmatpush1.bf16.msra.mxu0 %v2859
    %3123 = vmatprep.subr.bf16.mxu0 %v2866
    %3124 = vmatpush1.bf16.msra.mxu0 %v2865
    %3125 = vmatprep.subr.bf16.mxu0 %v2872
    %3126 = vmatpush1.bf16.msra.mxu0 %v2871
    %3127 = vmatprep.subr.bf16.mxu0 %v2878
    %3128 = vmatpush1.bf16.msra.mxu0 %v2877
    %3129 = vmatprep.subr.bf16.mxu0 %v2884
    %3130 = vmatpush1.bf16.msra.mxu0 %v2883
    %3131 = vmatprep.subr.bf16.mxu0 %v2890
    %3132 = vmatpush1.bf16.msra.mxu0 %v2889
    %3133 = vmatprep.subr.bf16.mxu0 %v2896
    %3134 = vmatpush1.bf16.msra.mxu0 %v2895
    %3135 = vmatprep.subr.bf16.mxu0 %v2902
    %3136 = vmatpush1.bf16.msra.mxu0 %v2901
    %3137 = vmatprep.mubr.bf16.mxu0 %v2414
    %3138 = vmatmul.mubr.bf16.gmra.mrb[0].mxu0 %v2407
    %v3139 = vpop.f32.mrb[0].mxu0
    %v3140 = vadd.f32 0.0, %v3139
    %v3141 = vpop.f32.mrb[0].mxu0
    %v3142 = vadd.f32 0.0, %v3141
    %v3143 = vpop.f32.mrb[0].mxu0
    %v3144 = vadd.f32 0.0, %v3143
    %v3145 = vpop.f32.mrb[0].mxu0
    %v3146 = vadd.f32 0.0, %v3145
    %3147 = vmatprep.mubr.bf16.mxu0 %v2421
    %3148 = vmatmul.mubr.bf16.gmra.mrb[0].mxu0 %v2420
    %v3149 = vpop.f32.mrb[0].mxu0
    %v3150 = vadd.f32 0.0, %v3149
    %v3151 = vpop.f32.mrb[0].mxu0
    %v3152 = vadd.f32 0.0, %v3151
    %v3153 = vpop.f32.mrb[0].mxu0
    %v3154 = vadd.f32 0.0, %v3153
    %v3155 = vpop.f32.mrb[0].mxu0
    %v3156 = vadd.f32 0.0, %v3155
    %3157 = vdwg.mxu0
    %v3158 = vadd.f32 %v2376, %v3034
    %v3159 = vadd.f32 %v2377, %v3036
    %v3160 = vadd.f32 %v2378, %v3087
    %v3161 = vadd.f32 %v2379, %v3089
    %v3162 = vadd.f32 %v2380, %v3140
    %v3163 = vadd.f32 %v2381, %v3142
    %v3164 = vadd.f32 %v2382, %v3038
    %v3165 = vadd.f32 %v2383, %v3040
    %v3166 = vadd.f32 %v2384, %v3091
    %v3167 = vadd.f32 %v2385, %v3093
    %v3168 = vadd.f32 %v2386, %v3144
    %v3169 = vadd.f32 %v2387, %v3146
    %v3170 = vadd.f32 %v2388, %v3044
    %v3171 = vadd.f32 %v2389, %v3046
    %v3172 = vadd.f32 %v2390, %v3097
    %v3173 = vadd.f32 %v2391, %v3099
    %v3174 = vadd.f32 %v2392, %v3150
    %v3175 = vadd.f32 %v2393, %v3152
    %v3176 = vadd.f32 %v2394, %v3048
    %v3177 = vadd.f32 %v2395, %v3050
    %v3178 = vadd.f32 %v2396, %v3101
    %v3179 = vadd.f32 %v2397, %v3103
    %v3180 = vadd.f32 %v2398, %v3154
    %v3181 = vadd.f32 %v2399, %v3156
    %vm3182 = vcmask 1040384
    %v3183 = vsel %vm3182, %v3164, -inf
    %v3184 = vmax.f32 %v3158, %v3183
    %v3185 = vrot.slane %v3184, 4
    %v3186 = vmax.f32 %v3184, %v3185
    %v3187 = vrot.slane %v3186, 2
    %v3188 = vmax.f32 %v3186, %v3187
    %v3189 = vrot.slane %v3188, 1
    %v3190 = vmax.f32 %v3188, %v3189
    %v3191 = vsel %vm3182, %v3165, -inf
    %v3192 = vmax.f32 %v3159, %v3191
    %v3193 = vrot.slane %v3192, 4
    %v3194 = vmax.f32 %v3192, %v3193
    %v3195 = vrot.slane %v3194, 2
    %v3196 = vmax.f32 %v3194, %v3195
    %v3197 = vrot.slane %v3196, 1
    %v3198 = vmax.f32 %v3196, %v3197
    %v3199 = vsel %vm3182, %v3176, -inf
    %v3200 = vmax.f32 %v3170, %v3199
    %v3201 = vrot.slane %v3200, 4
    %v3202 = vmax.f32 %v3200, %v3201
    %v3203 = vrot.slane %v3202, 2
    %v3204 = vmax.f32 %v3202, %v3203
    %v3205 = vrot.slane %v3204, 1
    %v3206 = vmax.f32 %v3204, %v3205
    %v3207 = vsel %vm3182, %v3177, -inf
    %v3208 = vmax.f32 %v3171, %v3207
    %v3209 = vrot.slane %v3208, 4
    %v3210 = vmax.f32 %v3208, %v3209
    %v3211 = vrot.slane %v3210, 2
    %v3212 = vmax.f32 %v3210, %v3211
    %v3213 = vrot.slane %v3212, 1
    %v3214 = vmax.f32 %v3212, %v3213
    %vm3215 = vcmask 1041408
    %v3216 = vsel %vm3215, %v3166, -inf
    %v3217 = vmax.f32 %v3160, %v3216
    %v3218 = vrot.slane %v3217, 4
    %v3219 = vmax.f32 %v3217, %v3218
    %v3220 = vrot.slane %v3219, 2
    %v3221 = vmax.f32 %v3219, %v3220
    %v3222 = vrot.slane %v3221, 1
    %v3223 = vmax.f32 %v3221, %v3222
    %v3224 = vsel %vm3215, %v3167, -inf
    %v3225 = vmax.f32 %v3161, %v3224
    %v3226 = vrot.slane %v3225, 4
    %v3227 = vmax.f32 %v3225, %v3226
    %v3228 = vrot.slane %v3227, 2
    %v3229 = vmax.f32 %v3227, %v3228
    %v3230 = vrot.slane %v3229, 1
    %v3231 = vmax.f32 %v3229, %v3230
    %v3232 = vsel %vm3215, %v3178, -inf
    %v3233 = vmax.f32 %v3172, %v3232
    %v3234 = vrot.slane %v3233, 4
    %v3235 = vmax.f32 %v3233, %v3234
    %v3236 = vrot.slane %v3235, 2
    %v3237 = vmax.f32 %v3235, %v3236
    %v3238 = vrot.slane %v3237, 1
    %v3239 = vmax.f32 %v3237, %v3238
    %v3240 = vsel %vm3215, %v3179, -inf
    %v3241 = vmax.f32 %v3173, %v3240
    %v3242 = vrot.slane %v3241, 4
    %v3243 = vmax.f32 %v3241, %v3242
    %v3244 = vrot.slane %v3243, 2
    %v3245 = vmax.f32 %v3243, %v3244
    %v3246 = vrot.slane %v3245, 1
    %v3247 = vmax.f32 %v3245, %v3246
    %vm3248 = vcmask 1042432
    %v3249 = vsel %vm3248, %v3168, -inf
    %v3250 = vmax.f32 %v3162, %v3249
    %v3251 = vrot.slane %v3250, 4
    %v3252 = vmax.f32 %v3250, %v3251
    %v3253 = vrot.slane %v3252, 2
    %v3254 = vmax.f32 %v3252, %v3253
    %v3255 = vrot.slane %v3254, 1
    %v3256 = vmax.f32 %v3254, %v3255
    %v3257 = vsel %vm3248, %v3169, -inf
    %v3258 = vmax.f32 %v3163, %v3257
    %v3259 = vrot.slane %v3258, 4
    %v3260 = vmax.f32 %v3258, %v3259
    %v3261 = vrot.slane %v3260, 2
    %v3262 = vmax.f32 %v3260, %v3261
    %v3263 = vrot.slane %v3262, 1
    %v3264 = vmax.f32 %v3262, %v3263
    %v3265 = vsel %vm3248, %v3180, -inf
    %v3266 = vmax.f32 %v3174, %v3265
    %v3267 = vrot.slane %v3266, 4
    %v3268 = vmax.f32 %v3266, %v3267
    %v3269 = vrot.slane %v3268, 2
    %v3270 = vmax.f32 %v3268, %v3269
    %v3271 = vrot.slane %v3270, 1
    %v3272 = vmax.f32 %v3270, %v3271
    %v3273 = vsel %vm3248, %v3181, -inf
    %v3274 = vmax.f32 %v3175, %v3273
    %v3275 = vrot.slane %v3274, 4
    %v3276 = vmax.f32 %v3274, %v3275
    %v3277 = vrot.slane %v3276, 2
    %v3278 = vmax.f32 %v3276, %v3277
    %v3279 = vrot.slane %v3278, 1
    %v3280 = vmax.f32 %v3278, %v3279
    %vm3285 = vcmask 1041409
    %v3286 = vsel %vm3285, %v3206, %v3190
    %v3287 = vsel %vm3285, %v3214, %v3198
    %v3294 = vsel %vm3285, %v3239, %v3223
    %v3295 = vsel %vm3285, %v3247, %v3231
    %v3302 = vsel %vm3285, %v3272, %v3256
    %v3303 = vsel %vm3285, %v3280, %v3264
    %v3306 = vld [vmem:[#allocation7] sm:$0x3f]
    %v3308 = vlaneseq
    %v3309 = vshrl.u32 %v3308, 7
    %v3310 = vsub.s32 0, %v3309
    %v3311 = vrot.slane %v3306, %v3310
    %v3312 = vlaneseq
    %v3313 = vshrl.u32 %v3312, 7
    %v3314 = vsub.s32 1, %v3313
    %v3315 = vrot.slane %v3306, %v3314
    %v3316 = vlaneseq
    %v3317 = vshrl.u32 %v3316, 7
    %v3318 = vsub.s32 2, %v3317
    %v3319 = vrot.slane %v3306, %v3318
    %v3320 = vlaneseq
    %v3321 = vshrl.u32 %v3320, 7
    %v3322 = vsub.s32 3, %v3321
    %v3323 = vrot.slane %v3306, %v3322
    %v3324 = vlaneseq
    %v3325 = vshrl.u32 %v3324, 7
    %v3326 = vsub.s32 4, %v3325
    %v3327 = vrot.slane %v3306, %v3326
    %v3328 = vlaneseq
    %v3329 = vshrl.u32 %v3328, 7
    %v3330 = vsub.s32 5, %v3329
    %v3331 = vrot.slane %v3306, %v3330
    %v3338 = vadd.f32 %v3286, %v3311
    %v3339 = vadd.f32 %v3287, %v3315
    %v3340 = vadd.f32 %v3294, %v3319
    %v3341 = vadd.f32 %v3295, %v3323
    %v3342 = vadd.f32 %v3302, %v3327
    %v3343 = vadd.f32 %v3303, %v3331
    %v3344 = vmax.f32 %v3338, 0.0
    %v3345 = vmax.f32 %v3339, 0.0
    %v3346 = vmax.f32 %v3340, 0.0
    %v3347 = vmax.f32 %v3341, 0.0
    %v3348 = vmax.f32 %v3342, 0.0
    %v3349 = vmax.f32 %v3343, 0.0
    %v3356 = vcombine.low %v3344, %v3345
    %v3357 = vcombine.low %v3346, %v3347
    %v3359 = vunpack.c.l.s4 1983009808
    %v3360 = vunpack.c.0.s8 %v3359
    %v3361 = vlaneseq
    %v3362 = vshrl.u32 %v3361, 7
    %v3363 = vsub.s32 %v3360, %v3362
    %v3364 = vrot.slane %v3356, %v3363
    %v3366 = vunpack.c.l.s4 1983009808
    %v3367 = vunpack.c.0.s8 %v3366
    %v3368 = vlaneseq
    %v3369 = vshrl.u32 %v3368, 7
    %v3370 = vsub.s32 %v3367, %v3369
    %v3371 = vrot.slane %v3357, %v3370
    %v3372 = vcombine.low %v3364, %v3371
    %v3373 = vcombine.low %v3348, %v3349
    %v3375 = vunpack.c.l.s4 1983009808
    %v3376 = vunpack.c.0.s8 %v3375
    %v3377 = vlaneseq
    %v3378 = vshrl.u32 %v3377, 7
    %v3379 = vsub.s32 %v3376, %v3378
    %v3380 = vrot.slane %v3373, %v3379
    %3383 = vst [vmem:[#allocation12] sm:$0xff] %v3372
    %3384 = vst [vmem:[#allocation12 + $0x8] sm:$0xf] %v3380
    %v3385 = vpack.c.bf16 %v3344, %v3344
    %v3386 = vpack.c.bf16 %v3345, %v3345
    %v3387 = vpack.c.bf16 %v3346, %v3346
    %v3388 = vpack.c.bf16 %v3347, %v3347
    %v3389 = vpack.c.bf16 %v3348, %v3348
    %v3390 = vpack.c.bf16 %v3349, %v3349
    %v3391 = vld [vmem:[#allocation8] sm:$0xf]
    %v3392 = vld [vmem:[#allocation8 + $0x4] sm:$0xf]
    %v3393 = vld [vmem:[#allocation8 + $0x8] sm:$0xf]
    %v3394 = vld [vmem:[#allocation8 + $0xc] sm:$0xf]
    %v3395 = vld [vmem:[#allocation8 + $0x10] sm:$0xf]
    %v3396 = vld [vmem:[#allocation8 + $0x14] sm:$0xf]
    %v3397 = vld [vmem:[#allocation8 + $0x18] sm:$0xf]
    %v3398 = vld [vmem:[#allocation8 + $0x1c] sm:$0xf]
    %v3399 = vld [vmem:[#allocation8 + $0x20] sm:$0xf]
    %v3400 = vld [vmem:[#allocation8 + $0x24] sm:$0xf]
    %v3401 = vld [vmem:[#allocation8 + $0x28] sm:$0xf]
    %v3402 = vld [vmem:[#allocation8 + $0x2c] sm:$0xf]
    %v3403 = vld [vmem:[#allocation8 + $0x30] sm:$0xf]
    %v3404 = vld [vmem:[#allocation8 + $0x34] sm:$0xf]
    %v3405 = vld [vmem:[#allocation8 + $0x38] sm:$0xf]
    %v3406 = vld [vmem:[#allocation8 + $0x3c] sm:$0xf]
    %v3407 = vld [vmem:[#allocation8 + $0x40] sm:$0xf]
    %v3408 = vld [vmem:[#allocation8 + $0x44] sm:$0xf]
    %v3409 = vld [vmem:[#allocation8 + $0x48] sm:$0xf]
    %v3410 = vld [vmem:[#allocation8 + $0x4c] sm:$0xf]
    %v3411 = vld [vmem:[#allocation8 + $0x50] sm:$0xf]
    %v3412 = vld [vmem:[#allocation8 + $0x54] sm:$0xf]
    %v3413 = vld [vmem:[#allocation8 + $0x58] sm:$0xf]
    %v3414 = vld [vmem:[#allocation8 + $0x5c] sm:$0xf]
    %v3415 = vld [vmem:[#allocation8 + $0x60] sm:$0xf]
    %v3416 = vld [vmem:[#allocation8 + $0x64] sm:$0xf]
    %v3417 = vld [vmem:[#allocation8 + $0x68] sm:$0xf]
    %v3418 = vld [vmem:[#allocation8 + $0x6c] sm:$0xf]
    %v3419 = vld [vmem:[#allocation8 + $0x70] sm:$0xf]
    %v3420 = vld [vmem:[#allocation8 + $0x74] sm:$0xf]
    %v3421 = vld [vmem:[#allocation8 + $0x78] sm:$0xf]
    %v3422 = vld [vmem:[#allocation8 + $0x7c] sm:$0xf]
    %v3423 = vld [vmem:[#allocation8 + $0x80] sm:$0xf]
    %v3424 = vld [vmem:[#allocation8 + $0x84] sm:$0xf]
    %v3425 = vld [vmem:[#allocation8 + $0x88] sm:$0xf]
    %v3426 = vld [vmem:[#allocation8 + $0x8c] sm:$0xf]
    %v3427 = vld [vmem:[#allocation8 + $0x90] sm:$0xf]
    %v3428 = vld [vmem:[#allocation8 + $0x94] sm:$0xf]
    %v3429 = vld [vmem:[#allocation8 + $0x98] sm:$0xf]
    %v3430 = vld [vmem:[#allocation8 + $0x9c] sm:$0xf]
    %v3431 = vld [vmem:[#allocation8 + $0xa0] sm:$0xf]
    %v3432 = vld [vmem:[#allocation8 + $0xa4] sm:$0xf]
    %v3433 = vld [vmem:[#allocation8 + $0xa8] sm:$0xf]
    %v3434 = vld [vmem:[#allocation8 + $0xac] sm:$0xf]
    %v3435 = vld [vmem:[#allocation8 + $0xb0] sm:$0xf]
    %v3436 = vld [vmem:[#allocation8 + $0xb4] sm:$0xf]
    %v3437 = vld [vmem:[#allocation8 + $0xb8] sm:$0xf]
    %v3438 = vld [vmem:[#allocation8 + $0xbc] sm:$0xf]
    %v3439 = vld [vmem:[#allocation8 + $0xc0] sm:$0xf]
    %v3440 = vld [vmem:[#allocation8 + $0xc4] sm:$0xf]
    %v3441 = vld [vmem:[#allocation8 + $0xc8] sm:$0xf]
    %v3442 = vld [vmem:[#allocation8 + $0xcc] sm:$0xf]
    %v3443 = vld [vmem:[#allocation8 + $0xd0] sm:$0xf]
    %v3444 = vld [vmem:[#allocation8 + $0xd4] sm:$0xf]
    %v3445 = vld [vmem:[#allocation8 + $0xd8] sm:$0xf]
    %v3446 = vld [vmem:[#allocation8 + $0xdc] sm:$0xf]
    %v3447 = vld [vmem:[#allocation8 + $0xe0] sm:$0xf]
    %v3448 = vld [vmem:[#allocation8 + $0xe4] sm:$0xf]
    %v3449 = vld [vmem:[#allocation8 + $0xe8] sm:$0xf]
    %v3450 = vld [vmem:[#allocation8 + $0xec] sm:$0xf]
    %v3451 = vld [vmem:[#allocation8 + $0xf0] sm:$0xf]
    %v3452 = vld [vmem:[#allocation8 + $0xf4] sm:$0xf]
    %v3453 = vld [vmem:[#allocation8 + $0xf8] sm:$0xf]
    %v3454 = vld [vmem:[#allocation8 + $0xfc] sm:$0xf]
    %v3455 = vld [vmem:[#allocation8 + $0x100] sm:$0xf]
    %v3456 = vld [vmem:[#allocation8 + $0x104] sm:$0xf]
    %v3457 = vld [vmem:[#allocation8 + $0x108] sm:$0xf]
    %v3458 = vld [vmem:[#allocation8 + $0x10c] sm:$0xf]
    %v3459 = vld [vmem:[#allocation8 + $0x110] sm:$0xf]
    %v3460 = vld [vmem:[#allocation8 + $0x114] sm:$0xf]
    %v3461 = vld [vmem:[#allocation8 + $0x118] sm:$0xf]
    %v3462 = vld [vmem:[#allocation8 + $0x11c] sm:$0xf]
    %v3463 = vld [vmem:[#allocation8 + $0x120] sm:$0xf]
    %v3464 = vld [vmem:[#allocation8 + $0x124] sm:$0xf]
    %v3465 = vld [vmem:[#allocation8 + $0x128] sm:$0xf]
    %v3466 = vld [vmem:[#allocation8 + $0x12c] sm:$0xf]
    %v3467 = vld [vmem:[#allocation8 + $0x130] sm:$0xf]
    %v3468 = vld [vmem:[#allocation8 + $0x134] sm:$0xf]
    %v3469 = vld [vmem:[#allocation8 + $0x138] sm:$0xf]
    %v3470 = vld [vmem:[#allocation8 + $0x13c] sm:$0xf]
    %v3471 = vld [vmem:[#allocation8 + $0x140] sm:$0xf]
    %v3472 = vld [vmem:[#allocation8 + $0x144] sm:$0xf]
    %v3473 = vld [vmem:[#allocation8 + $0x148] sm:$0xf]
    %v3474 = vld [vmem:[#allocation8 + $0x14c] sm:$0xf]
    %v3475 = vld [vmem:[#allocation8 + $0x150] sm:$0xf]
    %v3476 = vld [vmem:[#allocation8 + $0x154] sm:$0xf]
    %v3477 = vld [vmem:[#allocation8 + $0x158] sm:$0xf]
    %v3478 = vld [vmem:[#allocation8 + $0x15c] sm:$0xf]
    %v3479 = vld [vmem:[#allocation8 + $0x160] sm:$0xf]
    %v3480 = vld [vmem:[#allocation8 + $0x164] sm:$0xf]
    %v3481 = vld [vmem:[#allocation8 + $0x168] sm:$0xf]
    %v3482 = vld [vmem:[#allocation8 + $0x16c] sm:$0xf]
    %v3483 = vld [vmem:[#allocation8 + $0x170] sm:$0xf]
    %v3484 = vld [vmem:[#allocation8 + $0x174] sm:$0xf]
    %v3485 = vld [vmem:[#allocation8 + $0x178] sm:$0xf]
    %v3486 = vld [vmem:[#allocation8 + $0x17c] sm:$0xf]
    %v3487 = vld [vmem:[#allocation10] sm:$0x1]
    %v3489 = vlaneseq
    %v3490 = vshrl.u32 %v3489, 7
    %v3491 = vsub.s32 0, %v3490
    %v3492 = vrot.slane %v3487, %v3491
    %v3590 = vunpack.c.l.b16 %v3391
    %v3591 = vunpack.c.l.b16 %v3392
    %v3592 = vunpack.c.l.b16 %v3393
    %v3593 = vunpack.c.l.b16 %v3394
    %v3594 = vunpack.c.l.b16 %v3395
    %v3595 = vunpack.c.l.b16 %v3396
    %v3596 = vunpack.c.l.b16 %v3397
    %v3597 = vunpack.c.l.b16 %v3398
    %v3598 = vunpack.c.l.b16 %v3399
    %v3599 = vunpack.c.l.b16 %v3400
    %v3600 = vunpack.c.l.b16 %v3401
    %v3601 = vunpack.c.l.b16 %v3402
    %v3602 = vunpack.c.l.b16 %v3403
    %v3603 = vunpack.c.l.b16 %v3404
    %v3604 = vunpack.c.l.b16 %v3405
    %v3605 = vunpack.c.l.b16 %v3406
    %v3606 = vunpack.c.l.b16 %v3407
    %v3607 = vunpack.c.l.b16 %v3408
    %v3608 = vunpack.c.l.b16 %v3409
    %v3609 = vunpack.c.l.b16 %v3410
    %v3610 = vunpack.c.l.b16 %v3411
    %v3611 = vunpack.c.l.b16 %v3412
    %v3612 = vunpack.c.l.b16 %v3413
    %v3613 = vunpack.c.l.b16 %v3414
    %v3614 = vunpack.c.l.b16 %v3415
    %v3615 = vunpack.c.l.b16 %v3416
    %v3616 = vunpack.c.l.b16 %v3417
    %v3617 = vunpack.c.l.b16 %v3418
    %v3618 = vunpack.c.l.b16 %v3419
    %v3619 = vunpack.c.l.b16 %v3420
    %v3620 = vunpack.c.l.b16 %v3421
    %v3621 = vunpack.c.l.b16 %v3422
    %v3622 = vunpack.c.l.b16 %v3423
    %v3623 = vunpack.c.l.b16 %v3424
    %v3624 = vunpack.c.l.b16 %v3425
    %v3625 = vunpack.c.l.b16 %v3426
    %v3626 = vunpack.c.l.b16 %v3427
    %v3627 = vunpack.c.l.b16 %v3428
    %v3628 = vunpack.c.l.b16 %v3429
    %v3629 = vunpack.c.l.b16 %v3430
    %v3630 = vunpack.c.l.b16 %v3431
    %v3631 = vunpack.c.l.b16 %v3432
    %v3632 = vunpack.c.l.b16 %v3433
    %v3633 = vunpack.c.l.b16 %v3434
    %v3634 = vunpack.c.l.b16 %v3435
    %v3635 = vunpack.c.l.b16 %v3436
    %v3636 = vunpack.c.l.b16 %v3437
    %v3637 = vunpack.c.l.b16 %v3438
    %v3638 = vunpack.c.l.b16 %v3439
    %v3639 = vunpack.c.l.b16 %v3440
    %v3640 = vunpack.c.l.b16 %v3441
    %v3641 = vunpack.c.l.b16 %v3442
    %v3642 = vunpack.c.l.b16 %v3443
    %v3643 = vunpack.c.l.b16 %v3444
    %v3644 = vunpack.c.l.b16 %v3445
    %v3645 = vunpack.c.l.b16 %v3446
    %v3646 = vunpack.c.l.b16 %v3447
    %v3647 = vunpack.c.l.b16 %v3448
    %v3648 = vunpack.c.l.b16 %v3449
    %v3649 = vunpack.c.l.b16 %v3450
    %v3650 = vunpack.c.l.b16 %v3451
    %v3651 = vunpack.c.l.b16 %v3452
    %v3652 = vunpack.c.l.b16 %v3453
    %v3653 = vunpack.c.l.b16 %v3454
    %v3654 = vunpack.c.l.b16 %v3455
    %v3655 = vunpack.c.l.b16 %v3456
    %v3656 = vunpack.c.l.b16 %v3457
    %v3657 = vunpack.c.l.b16 %v3458
    %v3658 = vunpack.c.l.b16 %v3459
    %v3659 = vunpack.c.l.b16 %v3460
    %v3660 = vunpack.c.l.b16 %v3461
    %v3661 = vunpack.c.l.b16 %v3462
    %v3662 = vunpack.c.l.b16 %v3463
    %v3663 = vunpack.c.l.b16 %v3464
    %v3664 = vunpack.c.l.b16 %v3465
    %v3665 = vunpack.c.l.b16 %v3466
    %v3666 = vunpack.c.l.b16 %v3467
    %v3667 = vunpack.c.l.b16 %v3468
    %v3668 = vunpack.c.l.b16 %v3469
    %v3669 = vunpack.c.l.b16 %v3470
    %v3670 = vunpack.c.l.b16 %v3471
    %v3671 = vunpack.c.l.b16 %v3472
    %v3672 = vunpack.c.l.b16 %v3473
    %v3673 = vunpack.c.l.b16 %v3474
    %v3674 = vunpack.c.l.b16 %v3475
    %v3675 = vunpack.c.l.b16 %v3476
    %v3676 = vunpack.c.l.b16 %v3477
    %v3677 = vunpack.c.l.b16 %v3478
    %v3678 = vunpack.c.l.b16 %v3479
    %v3679 = vunpack.c.l.b16 %v3480
    %v3680 = vunpack.c.l.b16 %v3481
    %v3681 = vunpack.c.l.b16 %v3482
    %v3682 = vunpack.c.l.b16 %v3483
    %v3683 = vunpack.c.l.b16 %v3484
    %v3684 = vunpack.c.l.b16 %v3485
    %v3685 = vunpack.c.l.b16 %v3486
    %v3686 = vpack.c.b16 %v3591, %v3590
    %v3687 = vpack.c.b16 %v3593, %v3592
    %v3688 = vpack.c.b16 %v3595, %v3594
    %v3689 = vpack.c.b16 %v3597, %v3596
    %v3690 = vpack.c.b16 %v3599, %v3598
    %v3691 = vpack.c.b16 %v3601, %v3600
    %v3692 = vpack.c.b16 %v3603, %v3602
    %v3693 = vpack.c.b16 %v3605, %v3604
    %v3694 = vpack.c.b16 %v3607, %v3606
    %v3695 = vpack.c.b16 %v3609, %v3608
    %v3696 = vpack.c.b16 %v3611, %v3610
    %v3697 = vpack.c.b16 %v3613, %v3612
    %v3698 = vpack.c.b16 %v3615, %v3614
    %v3699 = vpack.c.b16 %v3617, %v3616
    %v3700 = vpack.c.b16 %v3619, %v3618
    %v3701 = vpack.c.b16 %v3621, %v3620
    %v3702 = vpack.c.b16 %v3623, %v3622
    %v3703 = vpack.c.b16 %v3625, %v3624
    %v3704 = vpack.c.b16 %v3627, %v3626
    %v3705 = vpack.c.b16 %v3629, %v3628
    %v3706 = vpack.c.b16 %v3631, %v3630
    %v3707 = vpack.c.b16 %v3633, %v3632
    %v3708 = vpack.c.b16 %v3635, %v3634
    %v3709 = vpack.c.b16 %v3637, %v3636
    %v3710 = vpack.c.b16 %v3639, %v3638
    %v3711 = vpack.c.b16 %v3641, %v3640
    %v3712 = vpack.c.b16 %v3643, %v3642
    %v3713 = vpack.c.b16 %v3645, %v3644
    %v3714 = vpack.c.b16 %v3647, %v3646
    %v3715 = vpack.c.b16 %v3649, %v3648
    %v3716 = vpack.c.b16 %v3651, %v3650
    %v3717 = vpack.c.b16 %v3653, %v3652
    %v3718 = vpack.c.b16 %v3655, %v3654
    %v3719 = vpack.c.b16 %v3657, %v3656
    %v3720 = vpack.c.b16 %v3659, %v3658
    %v3721 = vpack.c.b16 %v3661, %v3660
    %v3722 = vpack.c.b16 %v3663, %v3662
    %v3723 = vpack.c.b16 %v3665, %v3664
    %v3724 = vpack.c.b16 %v3667, %v3666
    %v3725 = vpack.c.b16 %v3669, %v3668
    %v3726 = vpack.c.b16 %v3671, %v3670
    %v3727 = vpack.c.b16 %v3673, %v3672
    %v3728 = vpack.c.b16 %v3675, %v3674
    %v3729 = vpack.c.b16 %v3677, %v3676
    %v3730 = vpack.c.b16 %v3679, %v3678
    %v3731 = vpack.c.b16 %v3681, %v3680
    %v3732 = vpack.c.b16 %v3683, %v3682
    %v3733 = vpack.c.b16 %v3685, %v3684
    %3782 = vmatprep.subr.bf16.mxu0 0
    %3783 = vmatpush1.bf16.msra.mxu0 %v3686
    %3784 = vmatprep.subr.bf16.mxu0 0
    %3785 = vmatpush1.bf16.msra.mxu0 %v3687
    %3786 = vmatprep.subr.bf16.mxu0 0
    %3787 = vmatpush1.bf16.msra.mxu0 %v3688
    %3788 = vmatprep.subr.bf16.mxu0 0
    %3789 = vmatpush1.bf16.msra.mxu0 %v3689
    %3790 = vmatprep.subr.bf16.mxu0 0
    %3791 = vmatpush1.bf16.msra.mxu0 %v3690
    %3792 = vmatprep.subr.bf16.mxu0 0
    %3793 = vmatpush1.bf16.msra.mxu0 %v3691
    %3794 = vmatprep.subr.bf16.mxu0 0
    %3795 = vmatpush1.bf16.msra.mxu0 %v3692
    %3796 = vmatprep.subr.bf16.mxu0 0
    %3797 = vmatpush1.bf16.msra.mxu0 %v3693
    %3798 = vmatprep.subr.bf16.mxu0 0
    %3799 = vmatpush1.bf16.msra.mxu0 %v3694
    %3800 = vmatprep.subr.bf16.mxu0 0
    %3801 = vmatpush1.bf16.msra.mxu0 %v3695
    %3802 = vmatprep.subr.bf16.mxu0 0
    %3803 = vmatpush1.bf16.msra.mxu0 %v3696
    %3804 = vmatprep.subr.bf16.mxu0 0
    %3805 = vmatpush1.bf16.msra.mxu0 %v3697
    %3806 = vmatprep.subr.bf16.mxu0 0
    %3807 = vmatpush1.bf16.msra.mxu0 %v3698
    %3808 = vmatprep.subr.bf16.mxu0 0
    %3809 = vmatpush1.bf16.msra.mxu0 %v3699
    %3810 = vmatprep.subr.bf16.mxu0 0
    %3811 = vmatpush1.bf16.msra.mxu0 %v3700
    %3812 = vmatprep.subr.bf16.mxu0 0
    %3813 = vmatpush1.bf16.msra.mxu0 %v3701
    %3814 = vmatprep.mubr.bf16.mxu0 %v3386
    %3815 = vmatmul.mubr.bf16.gmra.mrb[0].mxu0 %v3385
    %v3816 = vpop.f32.mrb[0].mxu0
    %v3817 = vadd.f32 %v3492, %v3816
    %v3818 = vpop.f32.mrb[0].mxu0
    %v3819 = vpop.f32.mrb[0].mxu0
    %v3820 = vpop.f32.mrb[0].mxu0
    %3821 = vdwg.mxu0
    %3822 = vmatprep.subr.bf16.mxu0 0
    %3823 = vmatpush1.bf16.msra.mxu0 %v3702
    %3824 = vmatprep.subr.bf16.mxu0 0
    %3825 = vmatpush1.bf16.msra.mxu0 %v3703
    %3826 = vmatprep.subr.bf16.mxu0 0
    %3827 = vmatpush1.bf16.msra.mxu0 %v3704
    %3828 = vmatprep.subr.bf16.mxu0 0
    %3829 = vmatpush1.bf16.msra.mxu0 %v3705
    %3830 = vmatprep.subr.bf16.mxu0 0
    %3831 = vmatpush1.bf16.msra.mxu0 %v3706
    %3832 = vmatprep.subr.bf16.mxu0 0
    %3833 = vmatpush1.bf16.msra.mxu0 %v3707
    %3834 = vmatprep.subr.bf16.mxu0 0
    %3835 = vmatpush1.bf16.msra.mxu0 %v3708
    %3836 = vmatprep.subr.bf16.mxu0 0
    %3837 = vmatpush1.bf16.msra.mxu0 %v3709
    %3838 = vmatprep.subr.bf16.mxu0 0
    %3839 = vmatpush1.bf16.msra.mxu0 %v3710
    %3840 = vmatprep.subr.bf16.mxu0 0
    %3841 = vmatpush1.bf16.msra.mxu0 %v3711
    %3842 = vmatprep.subr.bf16.mxu0 0
    %3843 = vmatpush1.bf16.msra.mxu0 %v3712
    %3844 = vmatprep.subr.bf16.mxu0 0
    %3845 = vmatpush1.bf16.msra.mxu0 %v3713
    %3846 = vmatprep.subr.bf16.mxu0 0
    %3847 = vmatpush1.bf16.msra.mxu0 %v3714
    %3848 = vmatprep.subr.bf16.mxu0 0
    %3849 = vmatpush1.bf16.msra.mxu0 %v3715
    %3850 = vmatprep.subr.bf16.mxu0 0
    %3851 = vmatpush1.bf16.msra.mxu0 %v3716
    %3852 = vmatprep.subr.bf16.mxu0 0
    %3853 = vmatpush1.bf16.msra.mxu0 %v3717
    %3854 = vmatprep.mubr.bf16.mxu0 %v3388
    %3855 = vmatmul.mubr.bf16.gmra.mrb[0].mxu0 %v3387
    %v3856 = vpop.f32.mrb[0].mxu0
    %v3857 = vadd.f32 %v3817, %v3856
    %v3858 = vpop.f32.mrb[0].mxu0
    %v3859 = vpop.f32.mrb[0].mxu0
    %v3860 = vpop.f32.mrb[0].mxu0
    %3861 = vdwg.mxu0
    %3862 = vmatprep.subr.bf16.mxu0 0
    %3863 = vmatpush1.bf16.msra.mxu0 %v3718
    %3864 = vmatprep.subr.bf16.mxu0 0
    %3865 = vmatpush1.bf16.msra.mxu0 %v3719
    %3866 = vmatprep.subr.bf16.mxu0 0
    %3867 = vmatpush1.bf16.msra.mxu0 %v3720
    %3868 = vmatprep.subr.bf16.mxu0 0
    %3869 = vmatpush1.bf16.msra.mxu0 %v3721
    %3870 = vmatprep.subr.bf16.mxu0 0
    %3871 = vmatpush1.bf16.msra.mxu0 %v3722
    %3872 = vmatprep.subr.bf16.mxu0 0
    %3873 = vmatpush1.bf16.msra.mxu0 %v3723
    %3874 = vmatprep.subr.bf16.mxu0 0
    %3875 = vmatpush1.bf16.msra.mxu0 %v3724
    %3876 = vmatprep.subr.bf16.mxu0 0
    %3877 = vmatpush1.bf16.msra.mxu0 %v3725
    %3878 = vmatprep.subr.bf16.mxu0 0
    %3879 = vmatpush1.bf16.msra.mxu0 %v3726
    %3880 = vmatprep.subr.bf16.mxu0 0
    %3881 = vmatpush1.bf16.msra.mxu0 %v3727
    %3882 = vmatprep.subr.bf16.mxu0 0
    %3883 = vmatpush1.bf16.msra.mxu0 %v3728
    %3884 = vmatprep.subr.bf16.mxu0 0
    %3885 = vmatpush1.bf16.msra.mxu0 %v3729
    %3886 = vmatprep.subr.bf16.mxu0 0
    %3887 = vmatpush1.bf16.msra.mxu0 %v3730
    %3888 = vmatprep.subr.bf16.mxu0 0
    %3889 = vmatpush1.bf16.msra.mxu0 %v3731
    %3890 = vmatprep.subr.bf16.mxu0 0
    %3891 = vmatpush1.bf16.msra.mxu0 %v3732
    %3892 = vmatprep.subr.bf16.mxu0 0
    %3893 = vmatpush1.bf16.msra.mxu0 %v3733
    %3894 = vmatprep.mubr.bf16.mxu0 %v3390
    %3895 = vmatmul.mubr.bf16.gmra.mrb[0].mxu0 %v3389
    %v3896 = vpop.f32.mrb[0].mxu0
    %v3897 = vadd.f32 %v3857, %v3896
    %v3898 = vpop.f32.mrb[0].mxu0
    %v3899 = vpop.f32.mrb[0].mxu0
    %v3900 = vpop.f32.mrb[0].mxu0
    %3901 = vdwg.mxu0
    %3902 = vst [vmem:[#allocation11] sm:$0x3] %v3897
    // Predicated region
    $region42: #{tpu_custom_call.1} parent=1 // pred_check
      _
    $region43: #{tpu_custom_call.1} parent=1 // pred_check_branch
      %3904 = sbr.rel (0) target = $region45
    $region44: #{tpu_custom_call.1} parent=1 // pred_region
      %s3906 = ssub.s32 32, 32
      %3907 = vsyncadd [#allocation4], %s3906
      %s3909 = sshll.u32 [#allocation11], 4
      %s3910 = int_to_ptr.vmem [resolvable:$true] %s3909
      %3912 = dma.vmem_to_hbm [thread:$0]  %s3910, 32, %s5, [#allocation4]
    $region45: #{tpu_custom_call.1} parent=1 // pred_fallthru
      _
    // Predicated region
    $region46: #{tpu_custom_call.1} parent=1 // pred_check
      _
    $region47: #{tpu_custom_call.1} parent=1 // pred_check_branch
      %3914 = sbr.rel (0) target = $region49
    $region48: #{tpu_custom_call.1} parent=1 // pred_region
      %s3916 = ssub.s32 192, 192
      %3917 = vsyncadd [#allocation13], %s3916
      %s3919 = sshll.u32 [#allocation12], 4
      %s3920 = int_to_ptr.vmem [resolvable:$true] %s3919
      %3922 = dma.vmem_to_hbm [thread:$0]  %s3920, 192, %s6, [#allocation13]
    $region49: #{tpu_custom_call.1} parent=1 // pred_fallthru
      _
    // Predicated region
    $region50: #{tpu_custom_call.1} parent=1 // pred_check
      _
    $region51: #{tpu_custom_call.1} parent=1 // pred_check_branch
      %3924 = sbr.rel (0) target = $region53
    $region52: #{tpu_custom_call.1} parent=1 // pred_region
      %3925 = dma.done [#allocation4], 32
    $region53: #{tpu_custom_call.1} parent=1 // pred_fallthru
      _
    // Predicated region
    $region54: #{tpu_custom_call.1} parent=1 // pred_check
      _
    $region55: #{tpu_custom_call.1} parent=1 // pred_check_branch
      %3927 = sbr.rel (0) target = $region57
    $region56: #{tpu_custom_call.1} parent=1 // pred_region
      %3928 = dma.done [#allocation13], 192
    $region57: #{tpu_custom_call.1} parent=1 // pred_fallthru
      _
    %3929 = vsyncpa [#allocation3], 1
    %3930 = vsyncpa [#allocation6], 1
    %3931 = vsyncpa [#allocation9], 1
    %3932 = vsyncpa [#allocation4], 1
    %3933 = vsyncpa [#allocation13], 1

</llo_original>
